<compile_context>
chip_gen: v7x
topology: tpu7x:2x2x1
jax: 0.10.0
libtpu: 0.0.40
codegen_flags: <defaults>
</compile_context>

<pallas_src>
import jax
import jax.numpy as jnp
import numpy as np
from jax.experimental import pallas as pl
from jax.experimental.pallas import tpu as pltpu


def _round_up(x: int, m: int) -> int:
    return (x + m - 1) // m * m


# ---------------------------------------------------------------------------
# Kernel 1: conv-as-matmul + bias + ReLU + fused 2x2 max-pool epilogue.
# ---------------------------------------------------------------------------
def _conv_relu_pool_kernel(x_ref, w_ref, b_ref, o_ref):
    # x_ref: (4, M_TILE, K_pad) bf16 -- leading axis = 2x2 pool-window positions
    # w_ref: (K_pad, N_pad)     bf16 -- zero-padded
    # b_ref: (1, N_pad)         f32
    # o_ref: (M_TILE, N_pad)    f32
    w = w_ref[...]
    b = b_ref[...]

    def head(i):
        acc = jnp.dot(x_ref[i], w, preferred_element_type=jnp.float32)
        return jnp.maximum(acc + b, 0.0)  # bias + ReLU kept in f32 (v5e-safe)

    o_ref[...] = jnp.maximum(jnp.maximum(head(0), head(1)),
                             jnp.maximum(head(2), head(3)))


def conv_relu_pool(patches, w_mat, bias, m_tile_max=256):
    """patches: (4, M, K) f32 with M = B*PH*PW pooled positions, K = kh*kw*C_in.
    w_mat: (K, C_out), bias: (C_out,).  Returns (M, C_out) f32."""
    _, M, K = patches.shape
    C_out = w_mat.shape[1]
    K_pad = _round_up(K, 128)
    N_pad = _round_up(C_out, 128)
    m_tile = min(m_tile_max, _round_up(M, 8))
    M_pad = _round_up(M, m_tile)

    xp = jnp.zeros((4, M_pad, K_pad), jnp.bfloat16)
    xp = xp.at[:, :M, :K].set(patches.astype(jnp.bfloat16))
    wp = jnp.zeros((K_pad, N_pad), jnp.bfloat16).at[:K, :C_out].set(
        w_mat.astype(jnp.bfloat16))
    bp = jnp.zeros((1, N_pad), jnp.float32).at[0, :C_out].set(
        bias.astype(jnp.float32))

    out = pl.pallas_call(
        _conv_relu_pool_kernel,
        out_shape=jax.ShapeDtypeStruct((M_pad, N_pad), jnp.float32),
        grid_spec=pltpu.PrefetchScalarGridSpec(
            num_scalar_prefetch=0,
            grid=(M_pad // m_tile,),
            in_specs=[
                pl.BlockSpec((4, m_tile, K_pad), lambda i: (0, i, 0)),
                pl.BlockSpec((K_pad, N_pad), lambda i: (0, 0)),
                pl.BlockSpec((1, N_pad), lambda i: (0, 0)),
            ],
            out_specs=pl.BlockSpec((m_tile, N_pad), lambda i: (i, 0)),
        ),
        compiler_params=pltpu.CompilerParams(
            dimension_semantics=("parallel",)),
    )(xp, wp, bp)
    return out[:M, :C_out]


# ---------------------------------------------------------------------------
# Kernel 2: fused fc1 -> ReLU -> fc2 -> ReLU -> fc3 (all weights resident in VMEM).
# ---------------------------------------------------------------------------
def _fc_fused_kernel(x_ref, w1_ref, b1_ref, w2_ref, b2_ref, w3_ref, b3_ref, o_ref):
    h = jnp.dot(x_ref[...], w1_ref[...],
                preferred_element_type=jnp.float32) + b1_ref[...]
    h = jnp.maximum(h, 0.0)
    h = jnp.dot(h.astype(jnp.bfloat16), w2_ref[...],
                preferred_element_type=jnp.float32) + b2_ref[...]
    h = jnp.maximum(h, 0.0)
    o_ref[...] = jnp.dot(h.astype(jnp.bfloat16), w3_ref[...],
                         preferred_element_type=jnp.float32) + b3_ref[...]


def fc_stack(x, w1, b1, w2, b2, w3, b3, m_tile_max=256):
    """x: (B, K1).  w_i: (in_i, out_i) already transposed.  Returns (B, out3) f32."""
    B, K1 = x.shape
    H1, H2, N = w1.shape[1], w2.shape[1], w3.shape[1]
    K1p, H1p, H2p, Np = (_round_up(d, 128) for d in (K1, H1, H2, N))
    m_tile = min(m_tile_max, _round_up(B, 8))
    Bp = _round_up(B, m_tile)

    xp = jnp.zeros((Bp, K1p), jnp.bfloat16).at[:B, :K1].set(x.astype(jnp.bfloat16))
    w1p = jnp.zeros((K1p, H1p), jnp.bfloat16).at[:K1, :H1].set(w1.astype(jnp.bfloat16))
    b1p = jnp.zeros((1, H1p), jnp.float32).at[0, :H1].set(b1.astype(jnp.float32))
    w2p = jnp.zeros((H1p, H2p), jnp.bfloat16).at[:H1, :H2].set(w2.astype(jnp.bfloat16))
    b2p = jnp.zeros((1, H2p), jnp.float32).at[0, :H2].set(b2.astype(jnp.float32))
    w3p = jnp.zeros((H2p, Np), jnp.bfloat16).at[:H2, :N].set(w3.astype(jnp.bfloat16))
    b3p = jnp.zeros((1, Np), jnp.float32).at[0, :N].set(b3.astype(jnp.float32))

    out = pl.pallas_call(
        _fc_fused_kernel,
        out_shape=jax.ShapeDtypeStruct((Bp, Np), jnp.float32),
        grid_spec=pltpu.PrefetchScalarGridSpec(
            num_scalar_prefetch=0,
            grid=(Bp // m_tile,),
            in_specs=[
                pl.BlockSpec((m_tile, K1p), lambda i: (i, 0)),
                pl.BlockSpec((K1p, H1p), lambda i: (0, 0)),
                pl.BlockSpec((1, H1p), lambda i: (0, 0)),
                pl.BlockSpec((H1p, H2p), lambda i: (0, 0)),
                pl.BlockSpec((1, H2p), lambda i: (0, 0)),
                pl.BlockSpec((H2p, Np), lambda i: (0, 0)),
                pl.BlockSpec((1, Np), lambda i: (0, 0)),
            ],
            out_specs=pl.BlockSpec((m_tile, Np), lambda i: (i, 0)),
        ),
        compiler_params=pltpu.CompilerParams(
            dimension_semantics=("parallel",)),
    )(xp, w1p, b1p, w2p, b2p, w3p, b3p)
    return out[:B, :N]


# ---------------------------------------------------------------------------
# Wrapper-side layout glue (plain JAX): NHWC im2col grouped by 2x2 pool windows.
# ---------------------------------------------------------------------------
def _im2col_pool_patches(x_nhwc, ksize):
    """Extract ksize x ksize valid-conv patches (stride 1) and group the conv-output
    grid into 2x2 max-pool windows along a leading axis of size 4.
    Returns (4, B*PH*PW, ksize*ksize*C); K is flattened in (kh, kw, c) order."""
    B, H, W, C = x_nhwc.shape
    OH, OW = H - ksize + 1, W - ksize + 1
    PH, PW = OH // 2, OW // 2
    ih = jnp.arange(OH)[:, None] + jnp.arange(ksize)[None, :]      # (OH, k)
    iw = jnp.arange(OW)[:, None] + jnp.arange(ksize)[None, :]      # (OW, k)
    p = x_nhwc[:, ih]                  # (B, OH, k, W, C)
    p = p[:, :, :, iw]                 # (B, OH, k, OW, k, C)
    p = jnp.transpose(p, (0, 1, 3, 2, 4, 5))                       # (B, OH, OW, kh, kw, C)
    p = p.reshape(B, OH, OW, ksize * ksize * C)
    p = p.reshape(B, PH, 2, PW, 2, ksize * ksize * C)
    p = jnp.transpose(p, (2, 4, 0, 1, 3, 5))                       # (2, 2, B, PH, PW, K)
    return p.reshape(4, B * PH * PW, ksize * ksize * C)


def net_forward(x, params):
    """x: (B, 3, 32, 32) NCHW, exactly as the PyTorch module expects."""
    cw1, cb1, cw2, cb2, fw1, fb1, fw2, fb2, fw3, fb3 = params
    B = x.shape[0]
    x_nhwc = jnp.transpose(x, (0, 2, 3, 1))                        # NCHW -> NHWC

    # conv1 (3 -> 6, 5x5) + ReLU + 2x2 max-pool, fused in one Pallas call
    p1 = _im2col_pool_patches(x_nhwc, 5)                           # (4, B*14*14, 75)
    w1m = jnp.transpose(cw1, (2, 3, 1, 0)).reshape(5 * 5 * 3, 6)   # (kh,kw,ci) x co
    y1 = conv_relu_pool(p1, w1m, cb1).reshape(B, 14, 14, 6)

    # conv2 (6 -> 16, 5x5) + ReLU + 2x2 max-pool
    p2 = _im2col_pool_patches(y1, 5)                               # (4, B*5*5, 150)
    w2m = jnp.transpose(cw2, (2, 3, 1, 0)).reshape(5 * 5 * 6, 16)
    y2 = conv_relu_pool(p2, w2m, cb2).reshape(B, 5, 5, 16)

    # flatten in PyTorch (C, H, W) order, then fused fc1->relu->fc2->relu->fc3
    flat = jnp.transpose(y2, (0, 3, 1, 2)).reshape(B, 16 * 5 * 5)
    return fc_stack(flat, fw1.T, fb1, fw2.T, fb2, fw3.T, fb3)


# ---------------------------------------------------------------------------
# Pure-JAX reference (PyTorch semantics) for a correctness sanity check.
# ---------------------------------------------------------------------------
def reference_forward(x, params):
    cw1, cb1, cw2, cb2, fw1, fb1, fw2, fb2, fw3, fb3 = params

    def conv(a, w, b):
        y = jax.lax.conv_general_dilated(
            a, w, (1, 1), "VALID", dimension_numbers=("NCHW", "OIHW", "NCHW"))
        return jax.nn.relu(y + b[None, :, None, None])

    def pool2(a):
        Bn, C, H, W = a.shape
        return a.reshape(Bn, C, H // 2, 2, W // 2, 2).max(axis=(3, 5))

    y = pool2(conv(x, cw1, cb1))
    y = pool2(conv(y, cw2, cb2))
    y = y.reshape(y.shape[0], -1)
    y = jax.nn.relu(y @ fw1.T + fb1)
    y = jax.nn.relu(y @ fw2.T + fb2)
    return y @ fw3.T + fb3


if __name__ == "__main__":
    key = jax.random.PRNGKey(0)
    ks = jax.random.split(key, 11)

    def u(k, shape, fan_in):
        bound = 1.0 / np.sqrt(fan_in)
        return jax.random.uniform(k, shape, jnp.float32, -bound, bound)

    params = (
        u(ks[0], (6, 3, 5, 5), 3 * 25), u(ks[1], (6,), 3 * 25),      # conv1
        u(ks[2], (16, 6, 5, 5), 6 * 25), u(ks[3], (16,), 6 * 25),    # conv2
        u(ks[4], (120, 400), 400), u(ks[5], (120,), 400),            # fc1
        u(ks[6], (84, 120), 120), u(ks[7], (84,), 120),              # fc2
        u(ks[8], (10, 84), 84), u(ks[9], (10,), 84),                 # fc3
    )
    x = jax.random.normal(ks[10], (2, 3, 32, 32), jnp.float32)

    out = jax.block_until_ready(jax.jit(net_forward)(x, params))
    ref = jax.block_until_ready(reference_forward(x, params))

    assert out.shape == (2, 10)
    assert bool(jnp.all(jnp.isfinite(out)))
    max_err = float(jnp.max(jnp.abs(out - ref)))
    assert max_err < 7.5e-2, f"max abs error too large: {max_err}"
    print("KERNEL_OK")
</pallas_src>

<mosaic_0001>
module attributes {stable_mosaic.version = 11 : i64} {
  func.func @_conv_relu_pool_kernel(%arg0: i32, %arg1: memref<4x256x128xbf16, #tpu.memory_space<vmem>>, %arg2: memref<128x128xbf16, #tpu.memory_space<vmem>>, %arg3: memref<1x128xf32, #tpu.memory_space<vmem>>, %arg4: memref<256x128xf32, #tpu.memory_space<vmem>>) attributes {dimension_semantics = [#tpu.dimension_semantics<parallel>], iteration_bounds = array<i64: 2>, scalar_prefetch = 0 : i64, scratch_operands = 0 : i64, tpu.core_type = #tpu.core_type<tc>, window_params = [{transform_indices = @transform_0, window_bounds = array<i64: 4, 256, 128>}, {pipeline_mode = #tpu.pipeline_mode<synchronous>, transform_indices = @transform_1, window_bounds = array<i64: 128, 128>}, {pipeline_mode = #tpu.pipeline_mode<synchronous>, transform_indices = @transform_2, window_bounds = array<i64: 1, 128>}, {transform_indices = @transform_3, window_bounds = array<i64: 256, 128>}]} {
    %c0 = arith.constant 0 : index
    %c0_0 = arith.constant 0 : index
    %0 = vector.load %arg2[%c0, %c0_0] : memref<128x128xbf16, #tpu.memory_space<vmem>>, vector<128x128xbf16>
    %c0_1 = arith.constant 0 : index
    %c0_2 = arith.constant 0 : index
    %1 = vector.load %arg3[%c0_1, %c0_2] : memref<1x128xf32, #tpu.memory_space<vmem>>, vector<1x128xf32>
    %c0_3 = arith.constant 0 : index
    %c0_4 = arith.constant 0 : index
    %c0_5 = arith.constant 0 : index
    %2 = vector.load %arg1[%c0_3, %c0_4, %c0_5] : memref<4x256x128xbf16, #tpu.memory_space<vmem>>, vector<1x256x128xbf16>
    %3 = vector.shape_cast %2 : vector<1x256x128xbf16> to vector<256x128xbf16>
    %cst = arith.constant dense<0.000000e+00> : vector<256x128xf32>
    %4 = tpu.matmul %3, %0, %cst {dimension_numbers = #tpu.dot_dimension_numbers<[1], [0], [0], [1], [0, 0, 1, 1], [], []>} : vector<256x128xbf16>, vector<128x128xbf16>, vector<256x128xf32> -> vector<256x128xf32>
    %5 = vector.broadcast %1 : vector<1x128xf32> to vector<256x128xf32>
    %6 = arith.addf %4, %5 : vector<256x128xf32>
    %cst_6 = arith.constant 0.000000e+00 : f32
    %7 = vector.broadcast %cst_6 : f32 to vector<256x128xf32>
    %8 = arith.maximumf %6, %7 : vector<256x128xf32>
    %c1 = arith.constant 1 : index
    %c0_7 = arith.constant 0 : index
    %c0_8 = arith.constant 0 : index
    %9 = vector.load %arg1[%c1, %c0_7, %c0_8] : memref<4x256x128xbf16, #tpu.memory_space<vmem>>, vector<1x256x128xbf16>
    %10 = vector.shape_cast %9 : vector<1x256x128xbf16> to vector<256x128xbf16>
    %cst_9 = arith.constant dense<0.000000e+00> : vector<256x128xf32>
    %11 = tpu.matmul %10, %0, %cst_9 {dimension_numbers = #tpu.dot_dimension_numbers<[1], [0], [0], [1], [0, 0, 1, 1], [], []>} : vector<256x128xbf16>, vector<128x128xbf16>, vector<256x128xf32> -> vector<256x128xf32>
    %12 = vector.broadcast %1 : vector<1x128xf32> to vector<256x128xf32>
    %13 = arith.addf %11, %12 : vector<256x128xf32>
    %cst_10 = arith.constant 0.000000e+00 : f32
    %14 = vector.broadcast %cst_10 : f32 to vector<256x128xf32>
    %15 = arith.maximumf %13, %14 : vector<256x128xf32>
    %16 = arith.maximumf %8, %15 : vector<256x128xf32>
    %c2 = arith.constant 2 : index
    %c0_11 = arith.constant 0 : index
    %c0_12 = arith.constant 0 : index
    %17 = vector.load %arg1[%c2, %c0_11, %c0_12] : memref<4x256x128xbf16, #tpu.memory_space<vmem>>, vector<1x256x128xbf16>
    %18 = vector.shape_cast %17 : vector<1x256x128xbf16> to vector<256x128xbf16>
    %cst_13 = arith.constant dense<0.000000e+00> : vector<256x128xf32>
    %19 = tpu.matmul %18, %0, %cst_13 {dimension_numbers = #tpu.dot_dimension_numbers<[1], [0], [0], [1], [0, 0, 1, 1], [], []>} : vector<256x128xbf16>, vector<128x128xbf16>, vector<256x128xf32> -> vector<256x128xf32>
    %20 = vector.broadcast %1 : vector<1x128xf32> to vector<256x128xf32>
    %21 = arith.addf %19, %20 : vector<256x128xf32>
    %cst_14 = arith.constant 0.000000e+00 : f32
    %22 = vector.broadcast %cst_14 : f32 to vector<256x128xf32>
    %23 = arith.maximumf %21, %22 : vector<256x128xf32>
    %c3 = arith.constant 3 : index
    %c0_15 = arith.constant 0 : index
    %c0_16 = arith.constant 0 : index
    %24 = vector.load %arg1[%c3, %c0_15, %c0_16] : memref<4x256x128xbf16, #tpu.memory_space<vmem>>, vector<1x256x128xbf16>
    %25 = vector.shape_cast %24 : vector<1x256x128xbf16> to vector<256x128xbf16>
    %cst_17 = arith.constant dense<0.000000e+00> : vector<256x128xf32>
    %26 = tpu.matmul %25, %0, %cst_17 {dimension_numbers = #tpu.dot_dimension_numbers<[1], [0], [0], [1], [0, 0, 1, 1], [], []>} : vector<256x128xbf16>, vector<128x128xbf16>, vector<256x128xf32> -> vector<256x128xf32>
    %27 = vector.broadcast %1 : vector<1x128xf32> to vector<256x128xf32>
    %28 = arith.addf %26, %27 : vector<256x128xf32>
    %cst_18 = arith.constant 0.000000e+00 : f32
    %29 = vector.broadcast %cst_18 : f32 to vector<256x128xf32>
    %30 = arith.maximumf %28, %29 : vector<256x128xf32>
    %31 = arith.maximumf %23, %30 : vector<256x128xf32>
    %32 = arith.maximumf %16, %31 : vector<256x128xf32>
    %c0_19 = arith.constant 0 : index
    %c0_20 = arith.constant 0 : index
    %33 = vector.load %arg4[%c0_19, %c0_20] : memref<256x128xf32, #tpu.memory_space<vmem>>, vector<256x128xf32>
    tpu.vector_store %arg4[%c0_19, %c0_20], %32 {strides = array<i32>} : memref<256x128xf32, #tpu.memory_space<vmem>>, vector<256x128xf32>,
    return
  }
  func.func @transform_0(%arg0: i32) -> (i32, i32, i32) {
    %c0_i32 = arith.constant 0 : i32
    %c0_i32_0 = arith.constant 0 : i32
    %c0_i32_1 = arith.constant 0 : i32
    return %c0_i32, %arg0, %c0_i32_0 : i32, i32, i32
  }
  func.func @transform_1(%arg0: i32) -> (i32, i32) {
    %c0_i32 = arith.constant 0 : i32
    %c0_i32_0 = arith.constant 0 : i32
    %c0_i32_1 = arith.constant 0 : i32
    return %c0_i32, %c0_i32_0 : i32, i32
  }
  func.func @transform_2(%arg0: i32) -> (i32, i32) {
    %c0_i32 = arith.constant 0 : i32
    %c0_i32_0 = arith.constant 0 : i32
    %c0_i32_1 = arith.constant 0 : i32
    return %c0_i32, %c0_i32_0 : i32, i32
  }
  func.func @transform_3(%arg0: i32) -> (i32, i32) {
    %c0_i32 = arith.constant 0 : i32
    %c0_i32_0 = arith.constant 0 : i32
    return %arg0, %c0_i32 : i32, i32
  }
}

module attributes {stable_mosaic.version = 11 : i64} {
  func.func @_conv_relu_pool_kernel(%arg0: i32, %arg1: memref<4x56x256xbf16, #tpu.memory_space<vmem>>, %arg2: memref<256x128xbf16, #tpu.memory_space<vmem>>, %arg3: memref<1x128xf32, #tpu.memory_space<vmem>>, %arg4: memref<56x128xf32, #tpu.memory_space<vmem>>) attributes {dimension_semantics = [#tpu.dimension_semantics<parallel>], iteration_bounds = array<i64: 1>, scalar_prefetch = 0 : i64, scratch_operands = 0 : i64, tpu.core_type = #tpu.core_type<tc>, window_params = [{transform_indices = @transform_0, window_bounds = array<i64: 4, 56, 256>}, {pipeline_mode = #tpu.pipeline_mode<synchronous>, transform_indices = @transform_1, window_bounds = array<i64: 256, 128>}, {pipeline_mode = #tpu.pipeline_mode<synchronous>, transform_indices = @transform_2, window_bounds = array<i64: 1, 128>}, {transform_indices = @transform_3, window_bounds = array<i64: 56, 128>}]} {
    %c0 = arith.constant 0 : index
    %c0_0 = arith.constant 0 : index
    %0 = vector.load %arg2[%c0, %c0_0] : memref<256x128xbf16, #tpu.memory_space<vmem>>, vector<256x128xbf16>
    %c0_1 = arith.constant 0 : index
    %c0_2 = arith.constant 0 : index
    %1 = vector.load %arg3[%c0_1, %c0_2] : memref<1x128xf32, #tpu.memory_space<vmem>>, vector<1x128xf32>
    %c0_3 = arith.constant 0 : index
    %c0_4 = arith.constant 0 : index
    %c0_5 = arith.constant 0 : index
    %2 = vector.load %arg1[%c0_3, %c0_4, %c0_5] : memref<4x56x256xbf16, #tpu.memory_space<vmem>>, vector<1x56x256xbf16>
    %3 = vector.shape_cast %2 : vector<1x56x256xbf16> to vector<56x256xbf16>
    %cst = arith.constant dense<0.000000e+00> : vector<56x128xf32>
    %4 = tpu.matmul %3, %0, %cst {dimension_numbers = #tpu.dot_dimension_numbers<[1], [0], [0], [1], [0, 0, 1, 1], [], []>} : vector<56x256xbf16>, vector<256x128xbf16>, vector<56x128xf32> -> vector<56x128xf32>
    %5 = vector.broadcast %1 : vector<1x128xf32> to vector<56x128xf32>
    %6 = arith.addf %4, %5 : vector<56x128xf32>
    %cst_6 = arith.constant 0.000000e+00 : f32
    %7 = vector.broadcast %cst_6 : f32 to vector<56x128xf32>
    %8 = arith.maximumf %6, %7 : vector<56x128xf32>
    %c1 = arith.constant 1 : index
    %c0_7 = arith.constant 0 : index
    %c0_8 = arith.constant 0 : index
    %9 = vector.load %arg1[%c1, %c0_7, %c0_8] : memref<4x56x256xbf16, #tpu.memory_space<vmem>>, vector<1x56x256xbf16>
    %10 = vector.shape_cast %9 : vector<1x56x256xbf16> to vector<56x256xbf16>
    %cst_9 = arith.constant dense<0.000000e+00> : vector<56x128xf32>
    %11 = tpu.matmul %10, %0, %cst_9 {dimension_numbers = #tpu.dot_dimension_numbers<[1], [0], [0], [1], [0, 0, 1, 1], [], []>} : vector<56x256xbf16>, vector<256x128xbf16>, vector<56x128xf32> -> vector<56x128xf32>
    %12 = vector.broadcast %1 : vector<1x128xf32> to vector<56x128xf32>
    %13 = arith.addf %11, %12 : vector<56x128xf32>
    %cst_10 = arith.constant 0.000000e+00 : f32
    %14 = vector.broadcast %cst_10 : f32 to vector<56x128xf32>
    %15 = arith.maximumf %13, %14 : vector<56x128xf32>
    %16 = arith.maximumf %8, %15 : vector<56x128xf32>
    %c2 = arith.constant 2 : index
    %c0_11 = arith.constant 0 : index
    %c0_12 = arith.constant 0 : index
    %17 = vector.load %arg1[%c2, %c0_11, %c0_12] : memref<4x56x256xbf16, #tpu.memory_space<vmem>>, vector<1x56x256xbf16>
    %18 = vector.shape_cast %17 : vector<1x56x256xbf16> to vector<56x256xbf16>
    %cst_13 = arith.constant dense<0.000000e+00> : vector<56x128xf32>
    %19 = tpu.matmul %18, %0, %cst_13 {dimension_numbers = #tpu.dot_dimension_numbers<[1], [0], [0], [1], [0, 0, 1, 1], [], []>} : vector<56x256xbf16>, vector<256x128xbf16>, vector<56x128xf32> -> vector<56x128xf32>
    %20 = vector.broadcast %1 : vector<1x128xf32> to vector<56x128xf32>
    %21 = arith.addf %19, %20 : vector<56x128xf32>
    %cst_14 = arith.constant 0.000000e+00 : f32
    %22 = vector.broadcast %cst_14 : f32 to vector<56x128xf32>
    %23 = arith.maximumf %21, %22 : vector<56x128xf32>
    %c3 = arith.constant 3 : index
    %c0_15 = arith.constant 0 : index
    %c0_16 = arith.constant 0 : index
    %24 = vector.load %arg1[%c3, %c0_15, %c0_16] : memref<4x56x256xbf16, #tpu.memory_space<vmem>>, vector<1x56x256xbf16>
    %25 = vector.shape_cast %24 : vector<1x56x256xbf16> to vector<56x256xbf16>
    %cst_17 = arith.constant dense<0.000000e+00> : vector<56x128xf32>
    %26 = tpu.matmul %25, %0, %cst_17 {dimension_numbers = #tpu.dot_dimension_numbers<[1], [0], [0], [1], [0, 0, 1, 1], [], []>} : vector<56x256xbf16>, vector<256x128xbf16>, vector<56x128xf32> -> vector<56x128xf32>
    %27 = vector.broadcast %1 : vector<1x128xf32> to vector<56x128xf32>
    %28 = arith.addf %26, %27 : vector<56x128xf32>
    %cst_18 = arith.constant 0.000000e+00 : f32
    %29 = vector.broadcast %cst_18 : f32 to vector<56x128xf32>
    %30 = arith.maximumf %28, %29 : vector<56x128xf32>
    %31 = arith.maximumf %23, %30 : vector<56x128xf32>
    %32 = arith.maximumf %16, %31 : vector<56x128xf32>
    %c0_19 = arith.constant 0 : index
    %c0_20 = arith.constant 0 : index
    %33 = vector.load %arg4[%c0_19, %c0_20] : memref<56x128xf32, #tpu.memory_space<vmem>>, vector<56x128xf32>
    tpu.vector_store %arg4[%c0_19, %c0_20], %32 {strides = array<i32>} : memref<56x128xf32, #tpu.memory_space<vmem>>, vector<56x128xf32>,
    return
  }
  func.func @transform_0(%arg0: i32) -> (i32, i32, i32) {
    %c0_i32 = arith.constant 0 : i32
    %c0_i32_0 = arith.constant 0 : i32
    %c0_i32_1 = arith.constant 0 : i32
    return %c0_i32, %arg0, %c0_i32_0 : i32, i32, i32
  }
  func.func @transform_1(%arg0: i32) -> (i32, i32) {
    %c0_i32 = arith.constant 0 : i32
    %c0_i32_0 = arith.constant 0 : i32
    %c0_i32_1 = arith.constant 0 : i32
    return %c0_i32, %c0_i32_0 : i32, i32
  }
  func.func @transform_2(%arg0: i32) -> (i32, i32) {
    %c0_i32 = arith.constant 0 : i32
    %c0_i32_0 = arith.constant 0 : i32
    %c0_i32_1 = arith.constant 0 : i32
    return %c0_i32, %c0_i32_0 : i32, i32
  }
  func.func @transform_3(%arg0: i32) -> (i32, i32) {
    %c0_i32 = arith.constant 0 : i32
    %c0_i32_0 = arith.constant 0 : i32
    return %arg0, %c0_i32 : i32, i32
  }
}

module attributes {stable_mosaic.version = 11 : i64} {
  func.func @_fc_fused_kernel(%arg0: i32, %arg1: memref<8x512xbf16, #tpu.memory_space<vmem>>, %arg2: memref<512x128xbf16, #tpu.memory_space<vmem>>, %arg3: memref<1x128xf32, #tpu.memory_space<vmem>>, %arg4: memref<128x128xbf16, #tpu.memory_space<vmem>>, %arg5: memref<1x128xf32, #tpu.memory_space<vmem>>, %arg6: memref<128x128xbf16, #tpu.memory_space<vmem>>, %arg7: memref<1x128xf32, #tpu.memory_space<vmem>>, %arg8: memref<8x128xf32, #tpu.memory_space<vmem>>) attributes {dimension_semantics = [#tpu.dimension_semantics<parallel>], iteration_bounds = array<i64: 1>, scalar_prefetch = 0 : i64, scratch_operands = 0 : i64, tpu.core_type = #tpu.core_type<tc>, window_params = [{transform_indices = @transform_0, window_bounds = array<i64: 8, 512>}, {pipeline_mode = #tpu.pipeline_mode<synchronous>, transform_indices = @transform_1, window_bounds = array<i64: 512, 128>}, {pipeline_mode = #tpu.pipeline_mode<synchronous>, transform_indices = @transform_2, window_bounds = array<i64: 1, 128>}, {pipeline_mode = #tpu.pipeline_mode<synchronous>, transform_indices = @transform_3, window_bounds = array<i64: 128, 128>}, {pipeline_mode = #tpu.pipeline_mode<synchronous>, transform_indices = @transform_4, window_bounds = array<i64: 1, 128>}, {pipeline_mode = #tpu.pipeline_mode<synchronous>, transform_indices = @transform_5, window_bounds = array<i64: 128, 128>}, {pipeline_mode = #tpu.pipeline_mode<synchronous>, transform_indices = @transform_6, window_bounds = array<i64: 1, 128>}, {transform_indices = @transform_7, window_bounds = array<i64: 8, 128>}]} {
    %c0 = arith.constant 0 : index
    %c0_0 = arith.constant 0 : index
    %0 = vector.load %arg1[%c0, %c0_0] : memref<8x512xbf16, #tpu.memory_space<vmem>>, vector<8x512xbf16>
    %c0_1 = arith.constant 0 : index
    %c0_2 = arith.constant 0 : index
    %1 = vector.load %arg2[%c0_1, %c0_2] : memref<512x128xbf16, #tpu.memory_space<vmem>>, vector<512x128xbf16>
    %cst = arith.constant dense<0.000000e+00> : vector<8x128xf32>
    %2 = tpu.matmul %0, %1, %cst {dimension_numbers = #tpu.dot_dimension_numbers<[1], [0], [0], [1], [0, 0, 1, 1], [], []>} : vector<8x512xbf16>, vector<512x128xbf16>, vector<8x128xf32> -> vector<8x128xf32>
    %c0_3 = arith.constant 0 : index
    %c0_4 = arith.constant 0 : index
    %3 = vector.load %arg3[%c0_3, %c0_4] : memref<1x128xf32, #tpu.memory_space<vmem>>, vector<1x128xf32>
    %4 = vector.broadcast %3 : vector<1x128xf32> to vector<8x128xf32>
    %5 = arith.addf %2, %4 : vector<8x128xf32>
    %cst_5 = arith.constant 0.000000e+00 : f32
    %6 = vector.broadcast %cst_5 : f32 to vector<8x128xf32>
    %7 = arith.maximumf %5, %6 : vector<8x128xf32>
    %8 = arith.truncf %7 : vector<8x128xf32> to vector<8x128xbf16>
    %c0_6 = arith.constant 0 : index
    %c0_7 = arith.constant 0 : index
    %9 = vector.load %arg4[%c0_6, %c0_7] : memref<128x128xbf16, #tpu.memory_space<vmem>>, vector<128x128xbf16>
    %cst_8 = arith.constant dense<0.000000e+00> : vector<8x128xf32>
    %10 = tpu.matmul %8, %9, %cst_8 {dimension_numbers = #tpu.dot_dimension_numbers<[1], [0], [0], [1], [0, 0, 1, 1], [], []>} : vector<8x128xbf16>, vector<128x128xbf16>, vector<8x128xf32> -> vector<8x128xf32>
    %c0_9 = arith.constant 0 : index
    %c0_10 = arith.constant 0 : index
    %11 = vector.load %arg5[%c0_9, %c0_10] : memref<1x128xf32, #tpu.memory_space<vmem>>, vector<1x128xf32>
    %12 = vector.broadcast %11 : vector<1x128xf32> to vector<8x128xf32>
    %13 = arith.addf %10, %12 : vector<8x128xf32>
    %cst_11 = arith.constant 0.000000e+00 : f32
    %14 = vector.broadcast %cst_11 : f32 to vector<8x128xf32>
    %15 = arith.maximumf %13, %14 : vector<8x128xf32>
    %16 = arith.truncf %15 : vector<8x128xf32> to vector<8x128xbf16>
    %c0_12 = arith.constant 0 : index
    %c0_13 = arith.constant 0 : index
    %17 = vector.load %arg6[%c0_12, %c0_13] : memref<128x128xbf16, #tpu.memory_space<vmem>>, vector<128x128xbf16>
    %cst_14 = arith.constant dense<0.000000e+00> : vector<8x128xf32>
    %18 = tpu.matmul %16, %17, %cst_14 {dimension_numbers = #tpu.dot_dimension_numbers<[1], [0], [0], [1], [0, 0, 1, 1], [], []>} : vector<8x128xbf16>, vector<128x128xbf16>, vector<8x128xf32> -> vector<8x128xf32>
    %c0_15 = arith.constant 0 : index
    %c0_16 = arith.constant 0 : index
    %19 = vector.load %arg7[%c0_15, %c0_16] : memref<1x128xf32, #tpu.memory_space<vmem>>, vector<1x128xf32>
    %20 = vector.broadcast %19 : vector<1x128xf32> to vector<8x128xf32>
    %21 = arith.addf %18, %20 : vector<8x128xf32>
    %c0_17 = arith.constant 0 : index
    %c0_18 = arith.constant 0 : index
    %22 = vector.load %arg8[%c0_17, %c0_18] : memref<8x128xf32, #tpu.memory_space<vmem>>, vector<8x128xf32>
    tpu.vector_store %arg8[%c0_17, %c0_18], %21 {strides = array<i32>} : memref<8x128xf32, #tpu.memory_space<vmem>>, vector<8x128xf32>,
    return
  }
  func.func @transform_0(%arg0: i32) -> (i32, i32) {
    %c0_i32 = arith.constant 0 : i32
    %c0_i32_0 = arith.constant 0 : i32
    return %arg0, %c0_i32 : i32, i32
  }
  func.func @transform_1(%arg0: i32) -> (i32, i32) {
    %c0_i32 = arith.constant 0 : i32
    %c0_i32_0 = arith.constant 0 : i32
    %c0_i32_1 = arith.constant 0 : i32
    return %c0_i32, %c0_i32_0 : i32, i32
  }
  func.func @transform_2(%arg0: i32) -> (i32, i32) {
    %c0_i32 = arith.constant 0 : i32
    %c0_i32_0 = arith.constant 0 : i32
    %c0_i32_1 = arith.constant 0 : i32
    return %c0_i32, %c0_i32_0 : i32, i32
  }
  func.func @transform_3(%arg0: i32) -> (i32, i32) {
    %c0_i32 = arith.constant 0 : i32
    %c0_i32_0 = arith.constant 0 : i32
    %c0_i32_1 = arith.constant 0 : i32
    return %c0_i32, %c0_i32_0 : i32, i32
  }
  func.func @transform_4(%arg0: i32) -> (i32, i32) {
    %c0_i32 = arith.constant 0 : i32
    %c0_i32_0 = arith.constant 0 : i32
    %c0_i32_1 = arith.constant 0 : i32
    return %c0_i32, %c0_i32_0 : i32, i32
  }
  func.func @transform_5(%arg0: i32) -> (i32, i32) {
    %c0_i32 = arith.constant 0 : i32
    %c0_i32_0 = arith.constant 0 : i32
    %c0_i32_1 = arith.constant 0 : i32
    return %c0_i32, %c0_i32_0 : i32, i32
  }
  func.func @transform_6(%arg0: i32) -> (i32, i32) {
    %c0_i32 = arith.constant 0 : i32
    %c0_i32_0 = arith.constant 0 : i32
    %c0_i32_1 = arith.constant 0 : i32
    return %c0_i32, %c0_i32_0 : i32, i32
  }
  func.func @transform_7(%arg0: i32) -> (i32, i32) {
    %c0_i32 = arith.constant 0 : i32
    %c0_i32_0 = arith.constant 0 : i32
    return %arg0, %c0_i32 : i32, i32
  }
}

</mosaic_0001>

<llo_original>
// kernel: net_forward.3
$region0: #{net_forward.3}
  #allocation0 [shape = 'u32[]', space=smem, size = 0x4, offset = 0x4, fixed_abs, tag = 'smem constant byte address 0x4 - core index']
  #allocation1 [shape = 'u32[144,128]{1,0:T(1,128)}', space=vmem, size = 0x12000, scoped, tag = 'internal scratch']
  %s0 = inlined_call_operand.vmem [shape: bf16[4,512,128], index: 0, kind: input, shape index: {}]
  %s1 = inlined_call_operand.vmem [shape: bf16[128,128], index: 1, kind: input, shape index: {}]
  %s2 = inlined_call_operand.vmem [shape: f32[1,128], index: 2, kind: input, shape index: {}]
  %s3 = inlined_call_operand.vmem [shape: f32[512,128], index: 3, kind: output, shape index: {}]
  %s4 = sld [smem:[#allocation0]]
  $region86: #{net_forward.3} parent=0
    _
  %s6 = ssub.s32 1, %s4
  %s7 = scalar_select 0, %s6, %s4
  $region1: #{net_forward.3} parent=0
    #allocation2 [shape = 'u8[524288]{0}', space=vmem, size = 0x80000, scoped, tag = 'input window, operand 0']
    loop: start=0, step=1, limit=4
    $region2: #{net_forward.3} parent=1 // loop_pre_header
      _
    $region3: #{net_forward.3} parent=1 // loop_header
      %s9 = sphi 0, %s13
      %p10 = scmp.ge.s32.totalorder %s9, 4
      %s19 = sphi 0, %s21
      %s22 = sphi 0, %s19
      %s23 = sphi 0, %s22
      %s39 = sphi 0, %s23
      %s43 = sphi 0, %s43
      %s45 = sphi 0, %s43
      %s46 = sphi 0, %s45
      %s60 = sphi 0, %s46
      %s64 = sphi 0, %s64
      %s66 = sphi 0, %s64
      %s67 = sphi 0, %s66
      %s81 = sphi 0, %s67
      %s87 = sphi 0, %s89
      %s90 = sphi 0, %s87
      %s91 = sphi 0, %s90
      %s107 = sphi 0, %s91
    $region4: #{net_forward.3} parent=1 // loop_header_branch
      %12 = sbr.rel (%p10) target = $region8
    $region5: #{net_forward.3} parent=1 // loop_body
      %s14 = ssub.s32 %s9, 1
      %s15 = ssub.s32 %s9, 2
      %s16 = sadd.s32 %s9, 1
      %s17 = ssub.s32 %s9, %s16
      %p18 = scmp.eq.s32.totalorder %s17, 0
      %s20 = sadd.s32 %s19, 1
      %s21 = scalar_select %p18, %s19, %s20
      %p24 = pneg %p18
      %p25 = scmp.eq.s32.totalorder %s9, 1
      %p26 = por %p24, %p25
      %p27 = scmp.ne.s32.totalorder %s19, %s22
      %p28 = scmp.eq.s32.totalorder %s9, 0
      %p29 = por %p27, %p28
      %p30 = scmp.ne.s32.totalorder %s19, %s22
      %p31 = scmp.eq.s32.totalorder %s14, 1
      %p32 = por %p30, %p31
      %p33 = scmp.ne.s32.totalorder %s22, %s23
      %p34 = scmp.eq.s32.totalorder %s14, 0
      %p35 = por %p33, %p34
      %p36 = scmp.ne.s32.totalorder %s22, %s23
      %p37 = scmp.eq.s32.totalorder %s15, 1
      %p38 = por %p36, %p37
      %p40 = scmp.ne.s32.totalorder %s23, %s39
      %p41 = scmp.eq.s32.totalorder %s15, 0
      %p42 = por %p40, %p41
      %s44 = sadd.s32 %s43, 1
      %p47 = scmp.eq.s32.totalorder %s9, 1
      %p48 = scmp.ne.s32.totalorder %s43, %s45
      %p49 = scmp.eq.s32.totalorder %s9, 0
      %p50 = por %p48, %p49
      %p51 = scmp.ne.s32.totalorder %s43, %s45
      %p52 = scmp.eq.s32.totalorder %s14, 1
      %p53 = por %p51, %p52
      %p54 = scmp.ne.s32.totalorder %s45, %s46
      %p55 = scmp.eq.s32.totalorder %s14, 0
      %p56 = por %p54, %p55
      %p57 = scmp.ne.s32.totalorder %s45, %s46
      %p58 = scmp.eq.s32.totalorder %s15, 1
      %p59 = por %p57, %p58
      %p61 = scmp.ne.s32.totalorder %s46, %s60
      %p62 = scmp.eq.s32.totalorder %s15, 0
      %p63 = por %p61, %p62
      %s65 = sadd.s32 %s64, 1
      %p68 = scmp.eq.s32.totalorder %s9, 1
      %p69 = scmp.ne.s32.totalorder %s64, %s66
      %p70 = scmp.eq.s32.totalorder %s9, 0
      %p71 = por %p69, %p70
      %p72 = scmp.ne.s32.totalorder %s64, %s66
      %p73 = scmp.eq.s32.totalorder %s14, 1
      %p74 = por %p72, %p73
      %p75 = scmp.ne.s32.totalorder %s66, %s67
      %p76 = scmp.eq.s32.totalorder %s14, 0
      %p77 = por %p75, %p76
      %p78 = scmp.ne.s32.totalorder %s66, %s67
      %p79 = scmp.eq.s32.totalorder %s15, 1
      %p80 = por %p78, %p79
      %p82 = scmp.ne.s32.totalorder %s67, %s81
      %p83 = scmp.eq.s32.totalorder %s15, 0
      %p84 = por %p82, %p83
      %s85 = ssub.s32 %s9, %s16
      %p86 = scmp.eq.s32.totalorder %s85, 0
      %s88 = sadd.s32 %s87, 1
      %s89 = scalar_select %p86, %s87, %s88
      %p92 = pneg %p86
      %p93 = scmp.eq.s32.totalorder %s9, 1
      %p94 = por %p92, %p93
      %p95 = scmp.ne.s32.totalorder %s87, %s90
      %p96 = scmp.eq.s32.totalorder %s9, 0
      %p97 = por %p95, %p96
      %p98 = scmp.ne.s32.totalorder %s87, %s90
      %p99 = scmp.eq.s32.totalorder %s14, 1
      %p100 = por %p98, %p99
      %p101 = scmp.ne.s32.totalorder %s90, %s91
      %p102 = scmp.eq.s32.totalorder %s14, 0
      %p103 = por %p101, %p102
      %p104 = scmp.ne.s32.totalorder %s90, %s91
      %p105 = scmp.eq.s32.totalorder %s15, 1
      %p106 = por %p104, %p105
      %p108 = scmp.ne.s32.totalorder %s91, %s107
      %p109 = scmp.eq.s32.totalorder %s15, 0
      %p110 = por %p108, %p109
      %p111 = scmp.le.s32.totalorder 1, %s9
      %p112 = scmp.lt.s32.totalorder %s9, 3
      %p113 = pnand %p111, %p112
      %p114 = pneg %p113
      // Predicated region
      $region9: #{net_forward.3} parent=5 // pred_check
        _
      $region10: #{net_forward.3} parent=5 // pred_check_branch
        %116 = sbr.rel (%p113) target = $region12
      $region11: #{net_forward.3} parent=5 // pred_region
        %s117 = ssub.s32 %s9, 1
        // Predicated region
        $region13: #{net_forward.3} parent=11 // pred_check
          %p118 = pneg %p56
        $region14: #{net_forward.3} parent=11 // pred_check_branch
          %120 = sbr.rel (%p118) target = $region16
        $region15: #{net_forward.3} parent=11 // pred_region
          _
        $region16: #{net_forward.3} parent=11 // pred_fallthru
          _
        // Predicated region
        $region17: #{net_forward.3} parent=11 // pred_check
          %p121 = pneg %p77
        $region18: #{net_forward.3} parent=11 // pred_check_branch
          %123 = sbr.rel (%p121) target = $region20
        $region19: #{net_forward.3} parent=11 // pred_region
          _
        $region20: #{net_forward.3} parent=11 // pred_fallthru
          _
      $region12: #{net_forward.3} parent=5 // pred_fallthru
        _
      %p124 = scmp.lt.s32.totalorder %s9, 2
      // Predicated region
      $region21: #{net_forward.3} parent=5 // pred_check
        %p125 = pneg %p124
      $region22: #{net_forward.3} parent=5 // pred_check_branch
        %127 = sbr.rel (%p125) target = $region24
      $region23: #{net_forward.3} parent=5 // pred_region
        // Predicated region
        $region25: #{net_forward.3} parent=23 // pred_check
          %p128 = pneg %p29
        $region26: #{net_forward.3} parent=23 // pred_check_branch
          %130 = sbr.rel (%p128) target = $region28
        $region27: #{net_forward.3} parent=23 // pred_region
          %s131 = sand.u32 %s19, 1
          %s132 = sand.u32 %s19, 1
          %s133 = smul.addr %s132, 512
          %s134 = scalar_lea.vmem [#allocation2], %s133
          %s135 = smul.u32 32, %s9
          %s136 = smul.addr %s135, 4
          %s137 = scalar_lea.vmem %s0, %s136
          // Predicated region
          $region29: #{net_forward.3} parent=27 // pred_check
            _
          $region30: #{net_forward.3} parent=27 // pred_check_branch
            %139 = sbr.rel (0) target = $region32
          $region31: #{net_forward.3} parent=27 // pred_region
            // Predicated region
            $region33: #{net_forward.3} parent=31 // pred_check
              _
            $region34: #{net_forward.3} parent=31 // pred_check_branch
              %141 = sbr.rel target = $region36
            $region35: #{net_forward.3} parent=31 // pred_region
              // Predicated region
              $region48: #{net_forward.3} parent=35 // pred_check
                _
              $region49: #{net_forward.3} parent=35 // pred_check_branch
                %410 = sbr.rel (0) target = $region51
              $region50: #{net_forward.3} parent=35 // pred_region
                loop: start=0, step=1, limit=1
                $region52: #{net_forward.3} parent=50 // loop_pre_header
                  _
                $region53: #{net_forward.3} parent=50 // loop_header
                  %s412 = sphi 0, %s416
                  %p413 = scmp.ge.s32.totalorder %s412, 1
                  %s417 = sphi %s137, %s137
                  %s418 = sphi %s134, %s134
                $region54: #{net_forward.3} parent=50 // loop_header_branch
                  %415 = sbr.rel (%p413) target = $region58
                $region55: #{net_forward.3} parent=50 // loop_body
                  _
                $region56: #{net_forward.3} parent=50 // loop_footer
                  %s416 = sadd.s32 1, %s412
                $region57: #{net_forward.3} parent=50 // loop_footer_branch
                  %411 = sbr.rel target = $region53
                $region58: #{net_forward.3} parent=50 // loop_exit
                  _
                loop: start=0, step=1, limit=1
                $region59: #{net_forward.3} parent=50 // loop_pre_header
                  _
                $region60: #{net_forward.3} parent=50 // loop_header
                  %s421 = sphi 0, %s425
                  %p422 = scmp.ge.s32.totalorder %s421, 1
                  %s426 = sphi %s137, %s137
                  %s427 = sphi %s134, %s134
                $region61: #{net_forward.3} parent=50 // loop_header_branch
                  %424 = sbr.rel (%p422) target = $region65
                $region62: #{net_forward.3} parent=50 // loop_body
                  %v428 = vld [vmem:[%s426] sm:$0xf]
                  %429 = vst [vmem:[%s427] sm:$0xf] %v428
                  %v430 = vld [vmem:[%s426 + $0x4] sm:$0xf]
                  %431 = vst [vmem:[%s427 + $0x4] sm:$0xf] %v430
                  %v432 = vld [vmem:[%s426 + $0x8] sm:$0xf]
                  %433 = vst [vmem:[%s427 + $0x8] sm:$0xf] %v432
                  %v434 = vld [vmem:[%s426 + $0xc] sm:$0xf]
                  %435 = vst [vmem:[%s427 + $0xc] sm:$0xf] %v434
                  %v436 = vld [vmem:[%s426 + $0x10] sm:$0xf]
                  %437 = vst [vmem:[%s427 + $0x10] sm:$0xf] %v436
                  %v438 = vld [vmem:[%s426 + $0x14] sm:$0xf]
                  %439 = vst [vmem:[%s427 + $0x14] sm:$0xf] %v438
                  %v440 = vld [vmem:[%s426 + $0x18] sm:$0xf]
                  %441 = vst [vmem:[%s427 + $0x18] sm:$0xf] %v440
                  %v442 = vld [vmem:[%s426 + $0x1c] sm:$0xf]
                  %443 = vst [vmem:[%s427 + $0x1c] sm:$0xf] %v442
                  %v444 = vld [vmem:[%s426 + $0x20] sm:$0xf]
                  %445 = vst [vmem:[%s427 + $0x20] sm:$0xf] %v444
                  %v446 = vld [vmem:[%s426 + $0x24] sm:$0xf]
                  %447 = vst [vmem:[%s427 + $0x24] sm:$0xf] %v446
                  %v448 = vld [vmem:[%s426 + $0x28] sm:$0xf]
                  %449 = vst [vmem:[%s427 + $0x28] sm:$0xf] %v448
                  %v450 = vld [vmem:[%s426 + $0x2c] sm:$0xf]
                  %451 = vst [vmem:[%s427 + $0x2c] sm:$0xf] %v450
                  %v452 = vld [vmem:[%s426 + $0x30] sm:$0xf]
                  %453 = vst [vmem:[%s427 + $0x30] sm:$0xf] %v452
                  %v454 = vld [vmem:[%s426 + $0x34] sm:$0xf]
                  %455 = vst [vmem:[%s427 + $0x34] sm:$0xf] %v454
                  %v456 = vld [vmem:[%s426 + $0x38] sm:$0xf]
                  %457 = vst [vmem:[%s427 + $0x38] sm:$0xf] %v456
                  %v458 = vld [vmem:[%s426 + $0x3c] sm:$0xf]
                  %459 = vst [vmem:[%s427 + $0x3c] sm:$0xf] %v458
                  %v460 = vld [vmem:[%s426 + $0x40] sm:$0xf]
                  %461 = vst [vmem:[%s427 + $0x40] sm:$0xf] %v460
                  %v462 = vld [vmem:[%s426 + $0x44] sm:$0xf]
                  %463 = vst [vmem:[%s427 + $0x44] sm:$0xf] %v462
                  %v464 = vld [vmem:[%s426 + $0x48] sm:$0xf]
                  %465 = vst [vmem:[%s427 + $0x48] sm:$0xf] %v464
                  %v466 = vld [vmem:[%s426 + $0x4c] sm:$0xf]
                  %467 = vst [vmem:[%s427 + $0x4c] sm:$0xf] %v466
                  %v468 = vld [vmem:[%s426 + $0x50] sm:$0xf]
                  %469 = vst [vmem:[%s427 + $0x50] sm:$0xf] %v468
                  %v470 = vld [vmem:[%s426 + $0x54] sm:$0xf]
                  %471 = vst [vmem:[%s427 + $0x54] sm:$0xf] %v470
                  %v472 = vld [vmem:[%s426 + $0x58] sm:$0xf]
                  %473 = vst [vmem:[%s427 + $0x58] sm:$0xf] %v472
                  %v474 = vld [vmem:[%s426 + $0x5c] sm:$0xf]
                  %475 = vst [vmem:[%s427 + $0x5c] sm:$0xf] %v474
                  %v476 = vld [vmem:[%s426 + $0x60] sm:$0xf]
                  %477 = vst [vmem:[%s427 + $0x60] sm:$0xf] %v476
                  %v478 = vld [vmem:[%s426 + $0x64] sm:$0xf]
                  %479 = vst [vmem:[%s427 + $0x64] sm:$0xf] %v478
                  %v480 = vld [vmem:[%s426 + $0x68] sm:$0xf]
                  %481 = vst [vmem:[%s427 + $0x68] sm:$0xf] %v480
                  %v482 = vld [vmem:[%s426 + $0x6c] sm:$0xf]
                  %483 = vst [vmem:[%s427 + $0x6c] sm:$0xf] %v482
                  %v484 = vld [vmem:[%s426 + $0x70] sm:$0xf]
                  %485 = vst [vmem:[%s427 + $0x70] sm:$0xf] %v484
                  %v486 = vld [vmem:[%s426 + $0x74] sm:$0xf]
                  %487 = vst [vmem:[%s427 + $0x74] sm:$0xf] %v486
                  %v488 = vld [vmem:[%s426 + $0x78] sm:$0xf]
                  %489 = vst [vmem:[%s427 + $0x78] sm:$0xf] %v488
                  %v490 = vld [vmem:[%s426 + $0x7c] sm:$0xf]
                  %491 = vst [vmem:[%s427 + $0x7c] sm:$0xf] %v490
                  %v492 = vld [vmem:[%s426 + $0x100] sm:$0xf]
                  %493 = vst [vmem:[%s427 + $0x80] sm:$0xf] %v492
                  %v494 = vld [vmem:[%s426 + $0x104] sm:$0xf]
                  %495 = vst [vmem:[%s427 + $0x84] sm:$0xf] %v494
                  %v496 = vld [vmem:[%s426 + $0x108] sm:$0xf]
                  %497 = vst [vmem:[%s427 + $0x88] sm:$0xf] %v496
                  %v498 = vld [vmem:[%s426 + $0x10c] sm:$0xf]
                  %499 = vst [vmem:[%s427 + $0x8c] sm:$0xf] %v498
                  %v500 = vld [vmem:[%s426 + $0x110] sm:$0xf]
                  %501 = vst [vmem:[%s427 + $0x90] sm:$0xf] %v500
                  %v502 = vld [vmem:[%s426 + $0x114] sm:$0xf]
                  %503 = vst [vmem:[%s427 + $0x94] sm:$0xf] %v502
                  %v504 = vld [vmem:[%s426 + $0x118] sm:$0xf]
                  %505 = vst [vmem:[%s427 + $0x98] sm:$0xf] %v504
                  %v506 = vld [vmem:[%s426 + $0x11c] sm:$0xf]
                  %507 = vst [vmem:[%s427 + $0x9c] sm:$0xf] %v506
                  %v508 = vld [vmem:[%s426 + $0x120] sm:$0xf]
                  %509 = vst [vmem:[%s427 + $0xa0] sm:$0xf] %v508
                  %v510 = vld [vmem:[%s426 + $0x124] sm:$0xf]
                  %511 = vst [vmem:[%s427 + $0xa4] sm:$0xf] %v510
                  %v512 = vld [vmem:[%s426 + $0x128] sm:$0xf]
                  %513 = vst [vmem:[%s427 + $0xa8] sm:$0xf] %v512
                  %v514 = vld [vmem:[%s426 + $0x12c] sm:$0xf]
                  %515 = vst [vmem:[%s427 + $0xac] sm:$0xf] %v514
                  %v516 = vld [vmem:[%s426 + $0x130] sm:$0xf]
                  %517 = vst [vmem:[%s427 + $0xb0] sm:$0xf] %v516
                  %v518 = vld [vmem:[%s426 + $0x134] sm:$0xf]
                  %519 = vst [vmem:[%s427 + $0xb4] sm:$0xf] %v518
                  %v520 = vld [vmem:[%s426 + $0x138] sm:$0xf]
                  %521 = vst [vmem:[%s427 + $0xb8] sm:$0xf] %v520
                  %v522 = vld [vmem:[%s426 + $0x13c] sm:$0xf]
                  %523 = vst [vmem:[%s427 + $0xbc] sm:$0xf] %v522
                  %v524 = vld [vmem:[%s426 + $0x140] sm:$0xf]
                  %525 = vst [vmem:[%s427 + $0xc0] sm:$0xf] %v524
                  %v526 = vld [vmem:[%s426 + $0x144] sm:$0xf]
                  %527 = vst [vmem:[%s427 + $0xc4] sm:$0xf] %v526
                  %v528 = vld [vmem:[%s426 + $0x148] sm:$0xf]
                  %529 = vst [vmem:[%s427 + $0xc8] sm:$0xf] %v528
                  %v530 = vld [vmem:[%s426 + $0x14c] sm:$0xf]
                  %531 = vst [vmem:[%s427 + $0xcc] sm:$0xf] %v530
                  %v532 = vld [vmem:[%s426 + $0x150] sm:$0xf]
                  %533 = vst [vmem:[%s427 + $0xd0] sm:$0xf] %v532
                  %v534 = vld [vmem:[%s426 + $0x154] sm:$0xf]
                  %535 = vst [vmem:[%s427 + $0xd4] sm:$0xf] %v534
                  %v536 = vld [vmem:[%s426 + $0x158] sm:$0xf]
                  %537 = vst [vmem:[%s427 + $0xd8] sm:$0xf] %v536
                  %v538 = vld [vmem:[%s426 + $0x15c] sm:$0xf]
                  %539 = vst [vmem:[%s427 + $0xdc] sm:$0xf] %v538
                  %v540 = vld [vmem:[%s426 + $0x160] sm:$0xf]
                  %541 = vst [vmem:[%s427 + $0xe0] sm:$0xf] %v540
                  %v542 = vld [vmem:[%s426 + $0x164] sm:$0xf]
                  %543 = vst [vmem:[%s427 + $0xe4] sm:$0xf] %v542
                  %v544 = vld [vmem:[%s426 + $0x168] sm:$0xf]
                  %545 = vst [vmem:[%s427 + $0xe8] sm:$0xf] %v544
                  %v546 = vld [vmem:[%s426 + $0x16c] sm:$0xf]
                  %547 = vst [vmem:[%s427 + $0xec] sm:$0xf] %v546
                  %v548 = vld [vmem:[%s426 + $0x170] sm:$0xf]
                  %549 = vst [vmem:[%s427 + $0xf0] sm:$0xf] %v548
                  %v550 = vld [vmem:[%s426 + $0x174] sm:$0xf]
                  %551 = vst [vmem:[%s427 + $0xf4] sm:$0xf] %v550
                  %v552 = vld [vmem:[%s426 + $0x178] sm:$0xf]
                  %553 = vst [vmem:[%s427 + $0xf8] sm:$0xf] %v552
                  %v554 = vld [vmem:[%s426 + $0x17c] sm:$0xf]
                  %555 = vst [vmem:[%s427 + $0xfc] sm:$0xf] %v554
                  %v556 = vld [vmem:[%s426 + $0x200] sm:$0xf]
                  %557 = vst [vmem:[%s427 + $0x100] sm:$0xf] %v556
                  %v558 = vld [vmem:[%s426 + $0x204] sm:$0xf]
                  %559 = vst [vmem:[%s427 + $0x104] sm:$0xf] %v558
                  %v560 = vld [vmem:[%s426 + $0x208] sm:$0xf]
                  %561 = vst [vmem:[%s427 + $0x108] sm:$0xf] %v560
                  %v562 = vld [vmem:[%s426 + $0x20c] sm:$0xf]
                  %563 = vst [vmem:[%s427 + $0x10c] sm:$0xf] %v562
                  %v564 = vld [vmem:[%s426 + $0x210] sm:$0xf]
                  %565 = vst [vmem:[%s427 + $0x110] sm:$0xf] %v564
                  %v566 = vld [vmem:[%s426 + $0x214] sm:$0xf]
                  %567 = vst [vmem:[%s427 + $0x114] sm:$0xf] %v566
                  %v568 = vld [vmem:[%s426 + $0x218] sm:$0xf]
                  %569 = vst [vmem:[%s427 + $0x118] sm:$0xf] %v568
                  %v570 = vld [vmem:[%s426 + $0x21c] sm:$0xf]
                  %571 = vst [vmem:[%s427 + $0x11c] sm:$0xf] %v570
                  %v572 = vld [vmem:[%s426 + $0x220] sm:$0xf]
                  %573 = vst [vmem:[%s427 + $0x120] sm:$0xf] %v572
                  %v574 = vld [vmem:[%s426 + $0x224] sm:$0xf]
                  %575 = vst [vmem:[%s427 + $0x124] sm:$0xf] %v574
                  %v576 = vld [vmem:[%s426 + $0x228] sm:$0xf]
                  %577 = vst [vmem:[%s427 + $0x128] sm:$0xf] %v576
                  %v578 = vld [vmem:[%s426 + $0x22c] sm:$0xf]
                  %579 = vst [vmem:[%s427 + $0x12c] sm:$0xf] %v578
                  %v580 = vld [vmem:[%s426 + $0x230] sm:$0xf]
                  %581 = vst [vmem:[%s427 + $0x130] sm:$0xf] %v580
                  %v582 = vld [vmem:[%s426 + $0x234] sm:$0xf]
                  %583 = vst [vmem:[%s427 + $0x134] sm:$0xf] %v582
                  %v584 = vld [vmem:[%s426 + $0x238] sm:$0xf]
                  %585 = vst [vmem:[%s427 + $0x138] sm:$0xf] %v584
                  %v586 = vld [vmem:[%s426 + $0x23c] sm:$0xf]
                  %587 = vst [vmem:[%s427 + $0x13c] sm:$0xf] %v586
                  %v588 = vld [vmem:[%s426 + $0x240] sm:$0xf]
                  %589 = vst [vmem:[%s427 + $0x140] sm:$0xf] %v588
                  %v590 = vld [vmem:[%s426 + $0x244] sm:$0xf]
                  %591 = vst [vmem:[%s427 + $0x144] sm:$0xf] %v590
                  %v592 = vld [vmem:[%s426 + $0x248] sm:$0xf]
                  %593 = vst [vmem:[%s427 + $0x148] sm:$0xf] %v592
                  %v594 = vld [vmem:[%s426 + $0x24c] sm:$0xf]
                  %595 = vst [vmem:[%s427 + $0x14c] sm:$0xf] %v594
                  %v596 = vld [vmem:[%s426 + $0x250] sm:$0xf]
                  %597 = vst [vmem:[%s427 + $0x150] sm:$0xf] %v596
                  %v598 = vld [vmem:[%s426 + $0x254] sm:$0xf]
                  %599 = vst [vmem:[%s427 + $0x154] sm:$0xf] %v598
                  %v600 = vld [vmem:[%s426 + $0x258] sm:$0xf]
                  %601 = vst [vmem:[%s427 + $0x158] sm:$0xf] %v600
                  %v602 = vld [vmem:[%s426 + $0x25c] sm:$0xf]
                  %603 = vst [vmem:[%s427 + $0x15c] sm:$0xf] %v602
                  %v604 = vld [vmem:[%s426 + $0x260] sm:$0xf]
                  %605 = vst [vmem:[%s427 + $0x160] sm:$0xf] %v604
                  %v606 = vld [vmem:[%s426 + $0x264] sm:$0xf]
                  %607 = vst [vmem:[%s427 + $0x164] sm:$0xf] %v606
                  %v608 = vld [vmem:[%s426 + $0x268] sm:$0xf]
                  %609 = vst [vmem:[%s427 + $0x168] sm:$0xf] %v608
                  %v610 = vld [vmem:[%s426 + $0x26c] sm:$0xf]
                  %611 = vst [vmem:[%s427 + $0x16c] sm:$0xf] %v610
                  %v612 = vld [vmem:[%s426 + $0x270] sm:$0xf]
                  %613 = vst [vmem:[%s427 + $0x170] sm:$0xf] %v612
                  %v614 = vld [vmem:[%s426 + $0x274] sm:$0xf]
                  %615 = vst [vmem:[%s427 + $0x174] sm:$0xf] %v614
                  %v616 = vld [vmem:[%s426 + $0x278] sm:$0xf]
                  %617 = vst [vmem:[%s427 + $0x178] sm:$0xf] %v616
                  %v618 = vld [vmem:[%s426 + $0x27c] sm:$0xf]
                  %619 = vst [vmem:[%s427 + $0x17c] sm:$0xf] %v618
                  %v620 = vld [vmem:[%s426 + $0x300] sm:$0xf]
                  %621 = vst [vmem:[%s427 + $0x180] sm:$0xf] %v620
                  %v622 = vld [vmem:[%s426 + $0x304] sm:$0xf]
                  %623 = vst [vmem:[%s427 + $0x184] sm:$0xf] %v622
                  %v624 = vld [vmem:[%s426 + $0x308] sm:$0xf]
                  %625 = vst [vmem:[%s427 + $0x188] sm:$0xf] %v624
                  %v626 = vld [vmem:[%s426 + $0x30c] sm:$0xf]
                  %627 = vst [vmem:[%s427 + $0x18c] sm:$0xf] %v626
                  %v628 = vld [vmem:[%s426 + $0x310] sm:$0xf]
                  %629 = vst [vmem:[%s427 + $0x190] sm:$0xf] %v628
                  %v630 = vld [vmem:[%s426 + $0x314] sm:$0xf]
                  %631 = vst [vmem:[%s427 + $0x194] sm:$0xf] %v630
                  %v632 = vld [vmem:[%s426 + $0x318] sm:$0xf]
                  %633 = vst [vmem:[%s427 + $0x198] sm:$0xf] %v632
                  %v634 = vld [vmem:[%s426 + $0x31c] sm:$0xf]
                  %635 = vst [vmem:[%s427 + $0x19c] sm:$0xf] %v634
                  %v636 = vld [vmem:[%s426 + $0x320] sm:$0xf]
                  %637 = vst [vmem:[%s427 + $0x1a0] sm:$0xf] %v636
                  %v638 = vld [vmem:[%s426 + $0x324] sm:$0xf]
                  %639 = vst [vmem:[%s427 + $0x1a4] sm:$0xf] %v638
                  %v640 = vld [vmem:[%s426 + $0x328] sm:$0xf]
                  %641 = vst [vmem:[%s427 + $0x1a8] sm:$0xf] %v640
                  %v642 = vld [vmem:[%s426 + $0x32c] sm:$0xf]
                  %643 = vst [vmem:[%s427 + $0x1ac] sm:$0xf] %v642
                  %v644 = vld [vmem:[%s426 + $0x330] sm:$0xf]
                  %645 = vst [vmem:[%s427 + $0x1b0] sm:$0xf] %v644
                  %v646 = vld [vmem:[%s426 + $0x334] sm:$0xf]
                  %647 = vst [vmem:[%s427 + $0x1b4] sm:$0xf] %v646
                  %v648 = vld [vmem:[%s426 + $0x338] sm:$0xf]
                  %649 = vst [vmem:[%s427 + $0x1b8] sm:$0xf] %v648
                  %v650 = vld [vmem:[%s426 + $0x33c] sm:$0xf]
                  %651 = vst [vmem:[%s427 + $0x1bc] sm:$0xf] %v650
                  %v652 = vld [vmem:[%s426 + $0x340] sm:$0xf]
                  %653 = vst [vmem:[%s427 + $0x1c0] sm:$0xf] %v652
                  %v654 = vld [vmem:[%s426 + $0x344] sm:$0xf]
                  %655 = vst [vmem:[%s427 + $0x1c4] sm:$0xf] %v654
                  %v656 = vld [vmem:[%s426 + $0x348] sm:$0xf]
                  %657 = vst [vmem:[%s427 + $0x1c8] sm:$0xf] %v656
                  %v658 = vld [vmem:[%s426 + $0x34c] sm:$0xf]
                  %659 = vst [vmem:[%s427 + $0x1cc] sm:$0xf] %v658
                  %v660 = vld [vmem:[%s426 + $0x350] sm:$0xf]
                  %661 = vst [vmem:[%s427 + $0x1d0] sm:$0xf] %v660
                  %v662 = vld [vmem:[%s426 + $0x354] sm:$0xf]
                  %663 = vst [vmem:[%s427 + $0x1d4] sm:$0xf] %v662
                  %v664 = vld [vmem:[%s426 + $0x358] sm:$0xf]
                  %665 = vst [vmem:[%s427 + $0x1d8] sm:$0xf] %v664
                  %v666 = vld [vmem:[%s426 + $0x35c] sm:$0xf]
                  %667 = vst [vmem:[%s427 + $0x1dc] sm:$0xf] %v666
                  %v668 = vld [vmem:[%s426 + $0x360] sm:$0xf]
                  %669 = vst [vmem:[%s427 + $0x1e0] sm:$0xf] %v668
                  %v670 = vld [vmem:[%s426 + $0x364] sm:$0xf]
                  %671 = vst [vmem:[%s427 + $0x1e4] sm:$0xf] %v670
                  %v672 = vld [vmem:[%s426 + $0x368] sm:$0xf]
                  %673 = vst [vmem:[%s427 + $0x1e8] sm:$0xf] %v672
                  %v674 = vld [vmem:[%s426 + $0x36c] sm:$0xf]
                  %675 = vst [vmem:[%s427 + $0x1ec] sm:$0xf] %v674
                  %v676 = vld [vmem:[%s426 + $0x370] sm:$0xf]
                  %677 = vst [vmem:[%s427 + $0x1f0] sm:$0xf] %v676
                  %v678 = vld [vmem:[%s426 + $0x374] sm:$0xf]
                  %679 = vst [vmem:[%s427 + $0x1f4] sm:$0xf] %v678
                  %v680 = vld [vmem:[%s426 + $0x378] sm:$0xf]
                  %681 = vst [vmem:[%s427 + $0x1f8] sm:$0xf] %v680
                  %v682 = vld [vmem:[%s426 + $0x37c] sm:$0xf]
                  %683 = vst [vmem:[%s427 + $0x1fc] sm:$0xf] %v682
                $region63: #{net_forward.3} parent=50 // loop_footer
                  %s425 = sadd.s32 1, %s421
                $region64: #{net_forward.3} parent=50 // loop_footer_branch
                  %420 = sbr.rel target = $region60
                $region65: #{net_forward.3} parent=50 // loop_exit
                  _
              $region51: #{net_forward.3} parent=35 // pred_fallthru
                _
            $region36: #{net_forward.3} parent=31 // pred_fallthru
              _
            // Predicated region
            $region37: #{net_forward.3} parent=31 // pred_check
              _
            $region38: #{net_forward.3} parent=31 // pred_check_branch
              %143 = sbr.rel (0) target = $region40
            $region39: #{net_forward.3} parent=31 // pred_region
              loop: start=0, step=1, limit=1
              $region41: #{net_forward.3} parent=39 // loop_pre_header
                _
              $region42: #{net_forward.3} parent=39 // loop_header
                %s146 = sphi 0, %s150
                %p147 = scmp.ge.s32.totalorder %s146, 1
                %s151 = sphi %s137, %s137
                %s152 = sphi %s134, %s134
              $region43: #{net_forward.3} parent=39 // loop_header_branch
                %149 = sbr.rel (%p147) target = $region47
              $region44: #{net_forward.3} parent=39 // loop_body
                %v153 = vld [vmem:[%s151] sm:$0xf]
                %154 = vst [vmem:[%s152] sm:$0xf] %v153
                %v155 = vld [vmem:[%s151 + $0x4] sm:$0xf]
                %156 = vst [vmem:[%s152 + $0x4] sm:$0xf] %v155
                %v157 = vld [vmem:[%s151 + $0x8] sm:$0xf]
                %158 = vst [vmem:[%s152 + $0x8] sm:$0xf] %v157
                %v159 = vld [vmem:[%s151 + $0xc] sm:$0xf]
                %160 = vst [vmem:[%s152 + $0xc] sm:$0xf] %v159
                %v161 = vld [vmem:[%s151 + $0x10] sm:$0xf]
                %162 = vst [vmem:[%s152 + $0x10] sm:$0xf] %v161
                %v163 = vld [vmem:[%s151 + $0x14] sm:$0xf]
                %164 = vst [vmem:[%s152 + $0x14] sm:$0xf] %v163
                %v165 = vld [vmem:[%s151 + $0x18] sm:$0xf]
                %166 = vst [vmem:[%s152 + $0x18] sm:$0xf] %v165
                %v167 = vld [vmem:[%s151 + $0x1c] sm:$0xf]
                %168 = vst [vmem:[%s152 + $0x1c] sm:$0xf] %v167
                %v169 = vld [vmem:[%s151 + $0x20] sm:$0xf]
                %170 = vst [vmem:[%s152 + $0x20] sm:$0xf] %v169
                %v171 = vld [vmem:[%s151 + $0x24] sm:$0xf]
                %172 = vst [vmem:[%s152 + $0x24] sm:$0xf] %v171
                %v173 = vld [vmem:[%s151 + $0x28] sm:$0xf]
                %174 = vst [vmem:[%s152 + $0x28] sm:$0xf] %v173
                %v175 = vld [vmem:[%s151 + $0x2c] sm:$0xf]
                %176 = vst [vmem:[%s152 + $0x2c] sm:$0xf] %v175
                %v177 = vld [vmem:[%s151 + $0x30] sm:$0xf]
                %178 = vst [vmem:[%s152 + $0x30] sm:$0xf] %v177
                %v179 = vld [vmem:[%s151 + $0x34] sm:$0xf]
                %180 = vst [vmem:[%s152 + $0x34] sm:$0xf] %v179
                %v181 = vld [vmem:[%s151 + $0x38] sm:$0xf]
                %182 = vst [vmem:[%s152 + $0x38] sm:$0xf] %v181
                %v183 = vld [vmem:[%s151 + $0x3c] sm:$0xf]
                %184 = vst [vmem:[%s152 + $0x3c] sm:$0xf] %v183
                %v185 = vld [vmem:[%s151 + $0x40] sm:$0xf]
                %186 = vst [vmem:[%s152 + $0x40] sm:$0xf] %v185
                %v187 = vld [vmem:[%s151 + $0x44] sm:$0xf]
                %188 = vst [vmem:[%s152 + $0x44] sm:$0xf] %v187
                %v189 = vld [vmem:[%s151 + $0x48] sm:$0xf]
                %190 = vst [vmem:[%s152 + $0x48] sm:$0xf] %v189
                %v191 = vld [vmem:[%s151 + $0x4c] sm:$0xf]
                %192 = vst [vmem:[%s152 + $0x4c] sm:$0xf] %v191
                %v193 = vld [vmem:[%s151 + $0x50] sm:$0xf]
                %194 = vst [vmem:[%s152 + $0x50] sm:$0xf] %v193
                %v195 = vld [vmem:[%s151 + $0x54] sm:$0xf]
                %196 = vst [vmem:[%s152 + $0x54] sm:$0xf] %v195
                %v197 = vld [vmem:[%s151 + $0x58] sm:$0xf]
                %198 = vst [vmem:[%s152 + $0x58] sm:$0xf] %v197
                %v199 = vld [vmem:[%s151 + $0x5c] sm:$0xf]
                %200 = vst [vmem:[%s152 + $0x5c] sm:$0xf] %v199
                %v201 = vld [vmem:[%s151 + $0x60] sm:$0xf]
                %202 = vst [vmem:[%s152 + $0x60] sm:$0xf] %v201
                %v203 = vld [vmem:[%s151 + $0x64] sm:$0xf]
                %204 = vst [vmem:[%s152 + $0x64] sm:$0xf] %v203
                %v205 = vld [vmem:[%s151 + $0x68] sm:$0xf]
                %206 = vst [vmem:[%s152 + $0x68] sm:$0xf] %v205
                %v207 = vld [vmem:[%s151 + $0x6c] sm:$0xf]
                %208 = vst [vmem:[%s152 + $0x6c] sm:$0xf] %v207
                %v209 = vld [vmem:[%s151 + $0x70] sm:$0xf]
                %210 = vst [vmem:[%s152 + $0x70] sm:$0xf] %v209
                %v211 = vld [vmem:[%s151 + $0x74] sm:$0xf]
                %212 = vst [vmem:[%s152 + $0x74] sm:$0xf] %v211
                %v213 = vld [vmem:[%s151 + $0x78] sm:$0xf]
                %214 = vst [vmem:[%s152 + $0x78] sm:$0xf] %v213
                %v215 = vld [vmem:[%s151 + $0x7c] sm:$0xf]
                %216 = vst [vmem:[%s152 + $0x7c] sm:$0xf] %v215
                %v217 = vld [vmem:[%s151 + $0x100] sm:$0xf]
                %218 = vst [vmem:[%s152 + $0x80] sm:$0xf] %v217
                %v219 = vld [vmem:[%s151 + $0x104] sm:$0xf]
                %220 = vst [vmem:[%s152 + $0x84] sm:$0xf] %v219
                %v221 = vld [vmem:[%s151 + $0x108] sm:$0xf]
                %222 = vst [vmem:[%s152 + $0x88] sm:$0xf] %v221
                %v223 = vld [vmem:[%s151 + $0x10c] sm:$0xf]
                %224 = vst [vmem:[%s152 + $0x8c] sm:$0xf] %v223
                %v225 = vld [vmem:[%s151 + $0x110] sm:$0xf]
                %226 = vst [vmem:[%s152 + $0x90] sm:$0xf] %v225
                %v227 = vld [vmem:[%s151 + $0x114] sm:$0xf]
                %228 = vst [vmem:[%s152 + $0x94] sm:$0xf] %v227
                %v229 = vld [vmem:[%s151 + $0x118] sm:$0xf]
                %230 = vst [vmem:[%s152 + $0x98] sm:$0xf] %v229
                %v231 = vld [vmem:[%s151 + $0x11c] sm:$0xf]
                %232 = vst [vmem:[%s152 + $0x9c] sm:$0xf] %v231
                %v233 = vld [vmem:[%s151 + $0x120] sm:$0xf]
                %234 = vst [vmem:[%s152 + $0xa0] sm:$0xf] %v233
                %v235 = vld [vmem:[%s151 + $0x124] sm:$0xf]
                %236 = vst [vmem:[%s152 + $0xa4] sm:$0xf] %v235
                %v237 = vld [vmem:[%s151 + $0x128] sm:$0xf]
                %238 = vst [vmem:[%s152 + $0xa8] sm:$0xf] %v237
                %v239 = vld [vmem:[%s151 + $0x12c] sm:$0xf]
                %240 = vst [vmem:[%s152 + $0xac] sm:$0xf] %v239
                %v241 = vld [vmem:[%s151 + $0x130] sm:$0xf]
                %242 = vst [vmem:[%s152 + $0xb0] sm:$0xf] %v241
                %v243 = vld [vmem:[%s151 + $0x134] sm:$0xf]
                %244 = vst [vmem:[%s152 + $0xb4] sm:$0xf] %v243
                %v245 = vld [vmem:[%s151 + $0x138] sm:$0xf]
                %246 = vst [vmem:[%s152 + $0xb8] sm:$0xf] %v245
                %v247 = vld [vmem:[%s151 + $0x13c] sm:$0xf]
                %248 = vst [vmem:[%s152 + $0xbc] sm:$0xf] %v247
                %v249 = vld [vmem:[%s151 + $0x140] sm:$0xf]
                %250 = vst [vmem:[%s152 + $0xc0] sm:$0xf] %v249
                %v251 = vld [vmem:[%s151 + $0x144] sm:$0xf]
                %252 = vst [vmem:[%s152 + $0xc4] sm:$0xf] %v251
                %v253 = vld [vmem:[%s151 + $0x148] sm:$0xf]
                %254 = vst [vmem:[%s152 + $0xc8] sm:$0xf] %v253
                %v255 = vld [vmem:[%s151 + $0x14c] sm:$0xf]
                %256 = vst [vmem:[%s152 + $0xcc] sm:$0xf] %v255
                %v257 = vld [vmem:[%s151 + $0x150] sm:$0xf]
                %258 = vst [vmem:[%s152 + $0xd0] sm:$0xf] %v257
                %v259 = vld [vmem:[%s151 + $0x154] sm:$0xf]
                %260 = vst [vmem:[%s152 + $0xd4] sm:$0xf] %v259
                %v261 = vld [vmem:[%s151 + $0x158] sm:$0xf]
                %262 = vst [vmem:[%s152 + $0xd8] sm:$0xf] %v261
                %v263 = vld [vmem:[%s151 + $0x15c] sm:$0xf]
                %264 = vst [vmem:[%s152 + $0xdc] sm:$0xf] %v263
                %v265 = vld [vmem:[%s151 + $0x160] sm:$0xf]
                %266 = vst [vmem:[%s152 + $0xe0] sm:$0xf] %v265
                %v267 = vld [vmem:[%s151 + $0x164] sm:$0xf]
                %268 = vst [vmem:[%s152 + $0xe4] sm:$0xf] %v267
                %v269 = vld [vmem:[%s151 + $0x168] sm:$0xf]
                %270 = vst [vmem:[%s152 + $0xe8] sm:$0xf] %v269
                %v271 = vld [vmem:[%s151 + $0x16c] sm:$0xf]
                %272 = vst [vmem:[%s152 + $0xec] sm:$0xf] %v271
                %v273 = vld [vmem:[%s151 + $0x170] sm:$0xf]
                %274 = vst [vmem:[%s152 + $0xf0] sm:$0xf] %v273
                %v275 = vld [vmem:[%s151 + $0x174] sm:$0xf]
                %276 = vst [vmem:[%s152 + $0xf4] sm:$0xf] %v275
                %v277 = vld [vmem:[%s151 + $0x178] sm:$0xf]
                %278 = vst [vmem:[%s152 + $0xf8] sm:$0xf] %v277
                %v279 = vld [vmem:[%s151 + $0x17c] sm:$0xf]
                %280 = vst [vmem:[%s152 + $0xfc] sm:$0xf] %v279
                %v281 = vld [vmem:[%s151 + $0x200] sm:$0xf]
                %282 = vst [vmem:[%s152 + $0x100] sm:$0xf] %v281
                %v283 = vld [vmem:[%s151 + $0x204] sm:$0xf]
                %284 = vst [vmem:[%s152 + $0x104] sm:$0xf] %v283
                %v285 = vld [vmem:[%s151 + $0x208] sm:$0xf]
                %286 = vst [vmem:[%s152 + $0x108] sm:$0xf] %v285
                %v287 = vld [vmem:[%s151 + $0x20c] sm:$0xf]
                %288 = vst [vmem:[%s152 + $0x10c] sm:$0xf] %v287
                %v289 = vld [vmem:[%s151 + $0x210] sm:$0xf]
                %290 = vst [vmem:[%s152 + $0x110] sm:$0xf] %v289
                %v291 = vld [vmem:[%s151 + $0x214] sm:$0xf]
                %292 = vst [vmem:[%s152 + $0x114] sm:$0xf] %v291
                %v293 = vld [vmem:[%s151 + $0x218] sm:$0xf]
                %294 = vst [vmem:[%s152 + $0x118] sm:$0xf] %v293
                %v295 = vld [vmem:[%s151 + $0x21c] sm:$0xf]
                %296 = vst [vmem:[%s152 + $0x11c] sm:$0xf] %v295
                %v297 = vld [vmem:[%s151 + $0x220] sm:$0xf]
                %298 = vst [vmem:[%s152 + $0x120] sm:$0xf] %v297
                %v299 = vld [vmem:[%s151 + $0x224] sm:$0xf]
                %300 = vst [vmem:[%s152 + $0x124] sm:$0xf] %v299
                %v301 = vld [vmem:[%s151 + $0x228] sm:$0xf]
                %302 = vst [vmem:[%s152 + $0x128] sm:$0xf] %v301
                %v303 = vld [vmem:[%s151 + $0x22c] sm:$0xf]
                %304 = vst [vmem:[%s152 + $0x12c] sm:$0xf] %v303
                %v305 = vld [vmem:[%s151 + $0x230] sm:$0xf]
                %306 = vst [vmem:[%s152 + $0x130] sm:$0xf] %v305
                %v307 = vld [vmem:[%s151 + $0x234] sm:$0xf]
                %308 = vst [vmem:[%s152 + $0x134] sm:$0xf] %v307
                %v309 = vld [vmem:[%s151 + $0x238] sm:$0xf]
                %310 = vst [vmem:[%s152 + $0x138] sm:$0xf] %v309
                %v311 = vld [vmem:[%s151 + $0x23c] sm:$0xf]
                %312 = vst [vmem:[%s152 + $0x13c] sm:$0xf] %v311
                %v313 = vld [vmem:[%s151 + $0x240] sm:$0xf]
                %314 = vst [vmem:[%s152 + $0x140] sm:$0xf] %v313
                %v315 = vld [vmem:[%s151 + $0x244] sm:$0xf]
                %316 = vst [vmem:[%s152 + $0x144] sm:$0xf] %v315
                %v317 = vld [vmem:[%s151 + $0x248] sm:$0xf]
                %318 = vst [vmem:[%s152 + $0x148] sm:$0xf] %v317
                %v319 = vld [vmem:[%s151 + $0x24c] sm:$0xf]
                %320 = vst [vmem:[%s152 + $0x14c] sm:$0xf] %v319
                %v321 = vld [vmem:[%s151 + $0x250] sm:$0xf]
                %322 = vst [vmem:[%s152 + $0x150] sm:$0xf] %v321
                %v323 = vld [vmem:[%s151 + $0x254] sm:$0xf]
                %324 = vst [vmem:[%s152 + $0x154] sm:$0xf] %v323
                %v325 = vld [vmem:[%s151 + $0x258] sm:$0xf]
                %326 = vst [vmem:[%s152 + $0x158] sm:$0xf] %v325
                %v327 = vld [vmem:[%s151 + $0x25c] sm:$0xf]
                %328 = vst [vmem:[%s152 + $0x15c] sm:$0xf] %v327
                %v329 = vld [vmem:[%s151 + $0x260] sm:$0xf]
                %330 = vst [vmem:[%s152 + $0x160] sm:$0xf] %v329
                %v331 = vld [vmem:[%s151 + $0x264] sm:$0xf]
                %332 = vst [vmem:[%s152 + $0x164] sm:$0xf] %v331
                %v333 = vld [vmem:[%s151 + $0x268] sm:$0xf]
                %334 = vst [vmem:[%s152 + $0x168] sm:$0xf] %v333
                %v335 = vld [vmem:[%s151 + $0x26c] sm:$0xf]
                %336 = vst [vmem:[%s152 + $0x16c] sm:$0xf] %v335
                %v337 = vld [vmem:[%s151 + $0x270] sm:$0xf]
                %338 = vst [vmem:[%s152 + $0x170] sm:$0xf] %v337
                %v339 = vld [vmem:[%s151 + $0x274] sm:$0xf]
                %340 = vst [vmem:[%s152 + $0x174] sm:$0xf] %v339
                %v341 = vld [vmem:[%s151 + $0x278] sm:$0xf]
                %342 = vst [vmem:[%s152 + $0x178] sm:$0xf] %v341
                %v343 = vld [vmem:[%s151 + $0x27c] sm:$0xf]
                %344 = vst [vmem:[%s152 + $0x17c] sm:$0xf] %v343
                %v345 = vld [vmem:[%s151 + $0x300] sm:$0xf]
                %346 = vst [vmem:[%s152 + $0x180] sm:$0xf] %v345
                %v347 = vld [vmem:[%s151 + $0x304] sm:$0xf]
                %348 = vst [vmem:[%s152 + $0x184] sm:$0xf] %v347
                %v349 = vld [vmem:[%s151 + $0x308] sm:$0xf]
                %350 = vst [vmem:[%s152 + $0x188] sm:$0xf] %v349
                %v351 = vld [vmem:[%s151 + $0x30c] sm:$0xf]
                %352 = vst [vmem:[%s152 + $0x18c] sm:$0xf] %v351
                %v353 = vld [vmem:[%s151 + $0x310] sm:$0xf]
                %354 = vst [vmem:[%s152 + $0x190] sm:$0xf] %v353
                %v355 = vld [vmem:[%s151 + $0x314] sm:$0xf]
                %356 = vst [vmem:[%s152 + $0x194] sm:$0xf] %v355
                %v357 = vld [vmem:[%s151 + $0x318] sm:$0xf]
                %358 = vst [vmem:[%s152 + $0x198] sm:$0xf] %v357
                %v359 = vld [vmem:[%s151 + $0x31c] sm:$0xf]
                %360 = vst [vmem:[%s152 + $0x19c] sm:$0xf] %v359
                %v361 = vld [vmem:[%s151 + $0x320] sm:$0xf]
                %362 = vst [vmem:[%s152 + $0x1a0] sm:$0xf] %v361
                %v363 = vld [vmem:[%s151 + $0x324] sm:$0xf]
                %364 = vst [vmem:[%s152 + $0x1a4] sm:$0xf] %v363
                %v365 = vld [vmem:[%s151 + $0x328] sm:$0xf]
                %366 = vst [vmem:[%s152 + $0x1a8] sm:$0xf] %v365
                %v367 = vld [vmem:[%s151 + $0x32c] sm:$0xf]
                %368 = vst [vmem:[%s152 + $0x1ac] sm:$0xf] %v367
                %v369 = vld [vmem:[%s151 + $0x330] sm:$0xf]
                %370 = vst [vmem:[%s152 + $0x1b0] sm:$0xf] %v369
                %v371 = vld [vmem:[%s151 + $0x334] sm:$0xf]
                %372 = vst [vmem:[%s152 + $0x1b4] sm:$0xf] %v371
                %v373 = vld [vmem:[%s151 + $0x338] sm:$0xf]
                %374 = vst [vmem:[%s152 + $0x1b8] sm:$0xf] %v373
                %v375 = vld [vmem:[%s151 + $0x33c] sm:$0xf]
                %376 = vst [vmem:[%s152 + $0x1bc] sm:$0xf] %v375
                %v377 = vld [vmem:[%s151 + $0x340] sm:$0xf]
                %378 = vst [vmem:[%s152 + $0x1c0] sm:$0xf] %v377
                %v379 = vld [vmem:[%s151 + $0x344] sm:$0xf]
                %380 = vst [vmem:[%s152 + $0x1c4] sm:$0xf] %v379
                %v381 = vld [vmem:[%s151 + $0x348] sm:$0xf]
                %382 = vst [vmem:[%s152 + $0x1c8] sm:$0xf] %v381
                %v383 = vld [vmem:[%s151 + $0x34c] sm:$0xf]
                %384 = vst [vmem:[%s152 + $0x1cc] sm:$0xf] %v383
                %v385 = vld [vmem:[%s151 + $0x350] sm:$0xf]
                %386 = vst [vmem:[%s152 + $0x1d0] sm:$0xf] %v385
                %v387 = vld [vmem:[%s151 + $0x354] sm:$0xf]
                %388 = vst [vmem:[%s152 + $0x1d4] sm:$0xf] %v387
                %v389 = vld [vmem:[%s151 + $0x358] sm:$0xf]
                %390 = vst [vmem:[%s152 + $0x1d8] sm:$0xf] %v389
                %v391 = vld [vmem:[%s151 + $0x35c] sm:$0xf]
                %392 = vst [vmem:[%s152 + $0x1dc] sm:$0xf] %v391
                %v393 = vld [vmem:[%s151 + $0x360] sm:$0xf]
                %394 = vst [vmem:[%s152 + $0x1e0] sm:$0xf] %v393
                %v395 = vld [vmem:[%s151 + $0x364] sm:$0xf]
                %396 = vst [vmem:[%s152 + $0x1e4] sm:$0xf] %v395
                %v397 = vld [vmem:[%s151 + $0x368] sm:$0xf]
                %398 = vst [vmem:[%s152 + $0x1e8] sm:$0xf] %v397
                %v399 = vld [vmem:[%s151 + $0x36c] sm:$0xf]
                %400 = vst [vmem:[%s152 + $0x1ec] sm:$0xf] %v399
                %v401 = vld [vmem:[%s151 + $0x370] sm:$0xf]
                %402 = vst [vmem:[%s152 + $0x1f0] sm:$0xf] %v401
                %v403 = vld [vmem:[%s151 + $0x374] sm:$0xf]
                %404 = vst [vmem:[%s152 + $0x1f4] sm:$0xf] %v403
                %v405 = vld [vmem:[%s151 + $0x378] sm:$0xf]
                %406 = vst [vmem:[%s152 + $0x1f8] sm:$0xf] %v405
                %v407 = vld [vmem:[%s151 + $0x37c] sm:$0xf]
                %408 = vst [vmem:[%s152 + $0x1fc] sm:$0xf] %v407
              $region45: #{net_forward.3} parent=39 // loop_footer
                %s150 = sadd.s32 1, %s146
              $region46: #{net_forward.3} parent=39 // loop_footer_branch
                %145 = sbr.rel target = $region42
              $region47: #{net_forward.3} parent=39 // loop_exit
                _
            $region40: #{net_forward.3} parent=31 // pred_fallthru
              _
          $region32: #{net_forward.3} parent=27 // pred_fallthru
            _
          %684 = vnop
        $region28: #{net_forward.3} parent=23 // pred_fallthru
          _
      $region24: #{net_forward.3} parent=5 // pred_fallthru
        _
      %p685 = scmp.le.s32.totalorder 1, %s9
      %p686 = scmp.lt.s32.totalorder %s9, 3
      %p687 = pnand %p685, %p686
      %p688 = pneg %p687
      // Predicated region
      $region66: #{net_forward.3} parent=5 // pred_check
        _
      $region67: #{net_forward.3} parent=5 // pred_check_branch
        %690 = sbr.rel (%p687) target = $region69
      $region68: #{net_forward.3} parent=5 // pred_region
        %s691 = ssub.s32 %s9, 1
        %s692 = sand.u32 %s22, 1
        %s693 = sand.u32 %s22, 1
        %s694 = smul.addr %s693, 512
        %s695 = scalar_lea.vmem [#allocation2], %s694
        // Predicated region
        $region70: #{net_forward.3} parent=68 // pred_check
          %p696 = pneg %p35
        $region71: #{net_forward.3} parent=68 // pred_check_branch
          %698 = sbr.rel (%p696) target = $region73
        $region72: #{net_forward.3} parent=68 // pred_region
          _
        $region73: #{net_forward.3} parent=68 // pred_fallthru
          _
        %s699 = sand.u32 %s22, 1
        %s700 = sand.u32 %s22, 1
        %s701 = smul.addr %s700, 512
        %s702 = scalar_lea.vmem [#allocation2], %s701
        %p703 = pneg %p35
        %p704 = pneg %p32
        %p705 = pneg %p56
        %p706 = pneg %p53
        %p707 = pneg %p77
        %p708 = pneg %p74
        %p709 = pneg %p103
        %p710 = pneg %p100
        %s711 = smul.u32 32, %s14
        %p712 = scmp.lt.s32.totalorder %s711, 63
        %s713 = scalar_select %p712, %s711, 63
        %s714 = smul.addr %s713, 8
        %s715 = scalar_lea.vmem %s3, %s714
        %s716 = smul.u32 32, %s14
        %s717 = smul.u32 32, %s14
        %p718 = scmp.lt.s32.totalorder %s717, 63
        %s719 = scalar_select %p718, %s717, 63
        %s720 = smul.addr %s719, 8
        %s721 = scalar_lea.vmem %s3, %s720
        %s722 = smul.u32 32, %s14
        %v724 = vld [vmem:[%s1] sm:$0xf]
        %v725 = vld [vmem:[%s1 + $0x4] sm:$0xf]
        %v726 = vld [vmem:[%s1 + $0x8] sm:$0xf]
        %v727 = vld [vmem:[%s1 + $0xc] sm:$0xf]
        %v728 = vld [vmem:[%s1 + $0x10] sm:$0xf]
        %v729 = vld [vmem:[%s1 + $0x14] sm:$0xf]
        %v730 = vld [vmem:[%s1 + $0x18] sm:$0xf]
        %v731 = vld [vmem:[%s1 + $0x1c] sm:$0xf]
        %v732 = vld [vmem:[%s1 + $0x20] sm:$0xf]
        %v733 = vld [vmem:[%s1 + $0x24] sm:$0xf]
        %v734 = vld [vmem:[%s1 + $0x28] sm:$0xf]
        %v735 = vld [vmem:[%s1 + $0x2c] sm:$0xf]
        %v736 = vld [vmem:[%s1 + $0x30] sm:$0xf]
        %v737 = vld [vmem:[%s1 + $0x34] sm:$0xf]
        %v738 = vld [vmem:[%s1 + $0x38] sm:$0xf]
        %v739 = vld [vmem:[%s1 + $0x3c] sm:$0xf]
        %v740 = vld [vmem:[%s2] sm:$0x1]
        %v741 = vld [vmem:[%s695] sm:$0xf]
        %v742 = vld [vmem:[%s695 + $0x4] sm:$0xf]
        %v743 = vld [vmem:[%s695 + $0x8] sm:$0xf]
        %v744 = vld [vmem:[%s695 + $0xc] sm:$0xf]
        %v745 = vld [vmem:[%s695 + $0x10] sm:$0xf]
        %v746 = vld [vmem:[%s695 + $0x14] sm:$0xf]
        %v747 = vld [vmem:[%s695 + $0x18] sm:$0xf]
        %v748 = vld [vmem:[%s695 + $0x1c] sm:$0xf]
        %v749 = vld [vmem:[%s695 + $0x20] sm:$0xf]
        %v750 = vld [vmem:[%s695 + $0x24] sm:$0xf]
        %v751 = vld [vmem:[%s695 + $0x28] sm:$0xf]
        %v752 = vld [vmem:[%s695 + $0x2c] sm:$0xf]
        %v753 = vld [vmem:[%s695 + $0x30] sm:$0xf]
        %v754 = vld [vmem:[%s695 + $0x34] sm:$0xf]
        %v755 = vld [vmem:[%s695 + $0x38] sm:$0xf]
        %v756 = vld [vmem:[%s695 + $0x3c] sm:$0xf]
        %v757 = vld [vmem:[%s695 + $0x40] sm:$0xf]
        %v758 = vld [vmem:[%s695 + $0x44] sm:$0xf]
        %v759 = vld [vmem:[%s695 + $0x48] sm:$0xf]
        %v760 = vld [vmem:[%s695 + $0x4c] sm:$0xf]
        %v761 = vld [vmem:[%s695 + $0x50] sm:$0xf]
        %v762 = vld [vmem:[%s695 + $0x54] sm:$0xf]
        %v763 = vld [vmem:[%s695 + $0x58] sm:$0xf]
        %v764 = vld [vmem:[%s695 + $0x5c] sm:$0xf]
        %v765 = vld [vmem:[%s695 + $0x60] sm:$0xf]
        %v766 = vld [vmem:[%s695 + $0x64] sm:$0xf]
        %v767 = vld [vmem:[%s695 + $0x68] sm:$0xf]
        %v768 = vld [vmem:[%s695 + $0x6c] sm:$0xf]
        %v769 = vld [vmem:[%s695 + $0x70] sm:$0xf]
        %v770 = vld [vmem:[%s695 + $0x74] sm:$0xf]
        %v771 = vld [vmem:[%s695 + $0x78] sm:$0xf]
        %v772 = vld [vmem:[%s695 + $0x7c] sm:$0xf]
        %v774 = vlaneseq
        %v775 = vshrl.u32 %v774, 7
        %v776 = vsub.s32 0, %v775
        %v777 = vrot.slane %v740, %v776
        %v811 = vunpack.c.l.b16 %v741
        %v812 = vunpack.c.l.b16 %v742
        %v813 = vunpack.c.l.b16 %v743
        %v814 = vunpack.c.l.b16 %v744
        %v815 = vunpack.c.l.b16 %v745
        %v816 = vunpack.c.l.b16 %v746
        %v817 = vunpack.c.l.b16 %v747
        %v818 = vunpack.c.l.b16 %v748
        %v819 = vunpack.c.l.b16 %v749
        %v820 = vunpack.c.l.b16 %v750
        %v821 = vunpack.c.l.b16 %v751
        %v822 = vunpack.c.l.b16 %v752
        %v823 = vunpack.c.l.b16 %v753
        %v824 = vunpack.c.l.b16 %v754
        %v825 = vunpack.c.l.b16 %v755
        %v826 = vunpack.c.l.b16 %v756
        %v827 = vunpack.c.l.b16 %v757
        %v828 = vunpack.c.l.b16 %v758
        %v829 = vunpack.c.l.b16 %v759
        %v830 = vunpack.c.l.b16 %v760
        %v831 = vunpack.c.l.b16 %v761
        %v832 = vunpack.c.l.b16 %v762
        %v833 = vunpack.c.l.b16 %v763
        %v834 = vunpack.c.l.b16 %v764
        %v835 = vunpack.c.l.b16 %v765
        %v836 = vunpack.c.l.b16 %v766
        %v837 = vunpack.c.l.b16 %v767
        %v838 = vunpack.c.l.b16 %v768
        %v839 = vunpack.c.l.b16 %v769
        %v840 = vunpack.c.l.b16 %v770
        %v841 = vunpack.c.l.b16 %v771
        %v842 = vunpack.c.l.b16 %v772
        %v843 = vpack.c.b16 %v812, %v811
        %v844 = vpack.c.b16 %v814, %v813
        %v845 = vpack.c.b16 %v816, %v815
        %v846 = vpack.c.b16 %v818, %v817
        %v847 = vpack.c.b16 %v820, %v819
        %v848 = vpack.c.b16 %v822, %v821
        %v849 = vpack.c.b16 %v824, %v823
        %v850 = vpack.c.b16 %v826, %v825
        %v851 = vpack.c.b16 %v828, %v827
        %v852 = vpack.c.b16 %v830, %v829
        %v853 = vpack.c.b16 %v832, %v831
        %v854 = vpack.c.b16 %v834, %v833
        %v855 = vpack.c.b16 %v836, %v835
        %v856 = vpack.c.b16 %v838, %v837
        %v857 = vpack.c.b16 %v840, %v839
        %v858 = vpack.c.b16 %v842, %v841
        %v891 = vunpack.c.l.b16 %v724
        %v892 = vunpack.c.l.b16 %v725
        %v893 = vunpack.c.l.b16 %v726
        %v894 = vunpack.c.l.b16 %v727
        %v895 = vunpack.c.l.b16 %v728
        %v896 = vunpack.c.l.b16 %v729
        %v897 = vunpack.c.l.b16 %v730
        %v898 = vunpack.c.l.b16 %v731
        %v899 = vunpack.c.l.b16 %v732
        %v900 = vunpack.c.l.b16 %v733
        %v901 = vunpack.c.l.b16 %v734
        %v902 = vunpack.c.l.b16 %v735
        %v903 = vunpack.c.l.b16 %v736
        %v904 = vunpack.c.l.b16 %v737
        %v905 = vunpack.c.l.b16 %v738
        %v906 = vunpack.c.l.b16 %v739
        %v907 = vpack.c.b16 %v892, %v891
        %v908 = vpack.c.b16 %v894, %v893
        %v909 = vpack.c.b16 %v896, %v895
        %v910 = vpack.c.b16 %v898, %v897
        %v911 = vpack.c.b16 %v900, %v899
        %v912 = vpack.c.b16 %v902, %v901
        %v913 = vpack.c.b16 %v904, %v903
        %v914 = vpack.c.b16 %v906, %v905
        %923 = vmatprep.subr.bf16.mxu0 0
        %924 = vmatpush1.bf16.msra.mxu0 %v907
        %925 = vmatprep.subr.bf16.mxu0 0
        %926 = vmatpush1.bf16.msra.mxu0 %v908
        %927 = vmatprep.subr.bf16.mxu0 0
        %928 = vmatpush1.bf16.msra.mxu0 %v909
        %929 = vmatprep.subr.bf16.mxu0 0
        %930 = vmatpush1.bf16.msra.mxu0 %v910
        %931 = vmatprep.subr.bf16.mxu0 0
        %932 = vmatpush1.bf16.msra.mxu0 %v911
        %933 = vmatprep.subr.bf16.mxu0 0
        %934 = vmatpush1.bf16.msra.mxu0 %v912
        %935 = vmatprep.subr.bf16.mxu0 0
        %936 = vmatpush1.bf16.msra.mxu0 %v913
        %937 = vmatprep.subr.bf16.mxu0 0
        %938 = vmatpush1.bf16.msra.mxu0 %v914
        %939 = vmatprep.subr.bf16.mxu0 0
        %940 = vmatpush1.bf16.msra.mxu0 0
        %941 = vmatprep.subr.bf16.mxu0 0
        %942 = vmatpush1.bf16.msra.mxu0 0
        %943 = vmatprep.subr.bf16.mxu0 0
        %944 = vmatpush1.bf16.msra.mxu0 0
        %945 = vmatprep.subr.bf16.mxu0 0
        %946 = vmatpush1.bf16.msra.mxu0 0
        %947 = vmatprep.subr.bf16.mxu0 0
        %948 = vmatpush1.bf16.msra.mxu0 0
        %949 = vmatprep.subr.bf16.mxu0 0
        %950 = vmatpush1.bf16.msra.mxu0 0
        %951 = vmatprep.subr.bf16.mxu0 0
        %952 = vmatpush1.bf16.msra.mxu0 0
        %953 = vmatprep.subr.bf16.mxu0 0
        %954 = vmatpush1.bf16.msra.mxu0 0
        %955 = vmatprep.mubr.bf16.mxu0 0
        %956 = vmatmul.mubr.bf16.gmra.mrb[0].mxu0 %v843
        %v957 = vpop.f32.mrb[0].mxu0
        %v958 = vadd.f32 %v777, %v957
        %v959 = vpop.f32.mrb[0].mxu0
        %v960 = vpop.f32.mrb[0].mxu0
        %v961 = vadd.f32 %v777, %v960
        %v962 = vpop.f32.mrb[0].mxu0
        %963 = vmatprep.mubr.bf16.mxu0 0
        %964 = vmatmul.mubr.bf16.gmra.mrb[0].mxu0 %v844
        %v965 = vpop.f32.mrb[0].mxu0
        %v966 = vadd.f32 %v777, %v965
        %v967 = vpop.f32.mrb[0].mxu0
        %v968 = vpop.f32.mrb[0].mxu0
        %v969 = vadd.f32 %v777, %v968
        %v970 = vpop.f32.mrb[0].mxu0
        %971 = vmatprep.mubr.bf16.mxu0 0
        %972 = vmatmul.mubr.bf16.gmra.mrb[0].mxu0 %v845
        %v973 = vpop.f32.mrb[0].mxu0
        %v974 = vadd.f32 %v777, %v973
        %v975 = vpop.f32.mrb[0].mxu0
        %v976 = vpop.f32.mrb[0].mxu0
        %v977 = vadd.f32 %v777, %v976
        %v978 = vpop.f32.mrb[0].mxu0
        %979 = vmatprep.mubr.bf16.mxu0 0
        %980 = vmatmul.mubr.bf16.gmra.mrb[0].mxu0 %v846
        %v981 = vpop.f32.mrb[0].mxu0
        %v982 = vadd.f32 %v777, %v981
        %v983 = vpop.f32.mrb[0].mxu0
        %v984 = vpop.f32.mrb[0].mxu0
        %v985 = vadd.f32 %v777, %v984
        %v986 = vpop.f32.mrb[0].mxu0
        %987 = vmatprep.mubr.bf16.mxu0 0
        %988 = vmatmul.mubr.bf16.gmra.mrb[0].mxu0 %v847
        %v989 = vpop.f32.mrb[0].mxu0
        %v990 = vadd.f32 %v777, %v989
        %v991 = vpop.f32.mrb[0].mxu0
        %v992 = vpop.f32.mrb[0].mxu0
        %v993 = vadd.f32 %v777, %v992
        %v994 = vpop.f32.mrb[0].mxu0
        %995 = vmatprep.mubr.bf16.mxu0 0
        %996 = vmatmul.mubr.bf16.gmra.mrb[0].mxu0 %v848
        %v997 = vpop.f32.mrb[0].mxu0
        %v998 = vadd.f32 %v777, %v997
        %v999 = vpop.f32.mrb[0].mxu0
        %v1000 = vpop.f32.mrb[0].mxu0
        %v1001 = vadd.f32 %v777, %v1000
        %v1002 = vpop.f32.mrb[0].mxu0
        %1003 = vmatprep.mubr.bf16.mxu0 0
        %1004 = vmatmul.mubr.bf16.gmra.mrb[0].mxu0 %v849
        %v1005 = vpop.f32.mrb[0].mxu0
        %v1006 = vadd.f32 %v777, %v1005
        %v1007 = vpop.f32.mrb[0].mxu0
        %v1008 = vpop.f32.mrb[0].mxu0
        %v1009 = vadd.f32 %v777, %v1008
        %v1010 = vpop.f32.mrb[0].mxu0
        %1011 = vmatprep.mubr.bf16.mxu0 0
        %1012 = vmatmul.mubr.bf16.gmra.mrb[0].mxu0 %v850
        %v1013 = vpop.f32.mrb[0].mxu0
        %v1014 = vadd.f32 %v777, %v1013
        %v1015 = vpop.f32.mrb[0].mxu0
        %v1016 = vpop.f32.mrb[0].mxu0
        %v1017 = vadd.f32 %v777, %v1016
        %v1018 = vpop.f32.mrb[0].mxu0
        %1019 = vmatprep.mubr.bf16.mxu0 0
        %1020 = vmatmul.mubr.bf16.gmra.mrb[0].mxu0 %v851
        %v1021 = vpop.f32.mrb[0].mxu0
        %v1022 = vadd.f32 %v777, %v1021
        %v1023 = vpop.f32.mrb[0].mxu0
        %v1024 = vpop.f32.mrb[0].mxu0
        %v1025 = vadd.f32 %v777, %v1024
        %v1026 = vpop.f32.mrb[0].mxu0
        %1027 = vmatprep.mubr.bf16.mxu0 0
        %1028 = vmatmul.mubr.bf16.gmra.mrb[0].mxu0 %v852
        %v1029 = vpop.f32.mrb[0].mxu0
        %v1030 = vadd.f32 %v777, %v1029
        %v1031 = vpop.f32.mrb[0].mxu0
        %v1032 = vpop.f32.mrb[0].mxu0
        %v1033 = vadd.f32 %v777, %v1032
        %v1034 = vpop.f32.mrb[0].mxu0
        %1035 = vmatprep.mubr.bf16.mxu0 0
        %1036 = vmatmul.mubr.bf16.gmra.mrb[0].mxu0 %v853
        %v1037 = vpop.f32.mrb[0].mxu0
        %v1038 = vadd.f32 %v777, %v1037
        %v1039 = vpop.f32.mrb[0].mxu0
        %v1040 = vpop.f32.mrb[0].mxu0
        %v1041 = vadd.f32 %v777, %v1040
        %v1042 = vpop.f32.mrb[0].mxu0
        %1043 = vmatprep.mubr.bf16.mxu0 0
        %1044 = vmatmul.mubr.bf16.gmra.mrb[0].mxu0 %v854
        %v1045 = vpop.f32.mrb[0].mxu0
        %v1046 = vadd.f32 %v777, %v1045
        %v1047 = vpop.f32.mrb[0].mxu0
        %v1048 = vpop.f32.mrb[0].mxu0
        %v1049 = vadd.f32 %v777, %v1048
        %v1050 = vpop.f32.mrb[0].mxu0
        %1051 = vmatprep.mubr.bf16.mxu0 0
        %1052 = vmatmul.mubr.bf16.gmra.mrb[0].mxu0 %v855
        %v1053 = vpop.f32.mrb[0].mxu0
        %v1054 = vadd.f32 %v777, %v1053
        %v1055 = vpop.f32.mrb[0].mxu0
        %v1056 = vpop.f32.mrb[0].mxu0
        %v1057 = vadd.f32 %v777, %v1056
        %v1058 = vpop.f32.mrb[0].mxu0
        %1059 = vmatprep.mubr.bf16.mxu0 0
        %1060 = vmatmul.mubr.bf16.gmra.mrb[0].mxu0 %v856
        %v1061 = vpop.f32.mrb[0].mxu0
        %v1062 = vadd.f32 %v777, %v1061
        %v1063 = vpop.f32.mrb[0].mxu0
        %v1064 = vpop.f32.mrb[0].mxu0
        %v1065 = vadd.f32 %v777, %v1064
        %v1066 = vpop.f32.mrb[0].mxu0
        %1067 = vmatprep.mubr.bf16.mxu0 0
        %1068 = vmatmul.mubr.bf16.gmra.mrb[0].mxu0 %v857
        %v1069 = vpop.f32.mrb[0].mxu0
        %v1070 = vadd.f32 %v777, %v1069
        %v1071 = vpop.f32.mrb[0].mxu0
        %v1072 = vpop.f32.mrb[0].mxu0
        %v1073 = vadd.f32 %v777, %v1072
        %v1074 = vpop.f32.mrb[0].mxu0
        %1075 = vmatprep.mubr.bf16.mxu0 0
        %1076 = vmatmul.mubr.bf16.gmra.mrb[0].mxu0 %v858
        %v1077 = vpop.f32.mrb[0].mxu0
        %v1078 = vadd.f32 %v777, %v1077
        %v1079 = vpop.f32.mrb[0].mxu0
        %v1080 = vpop.f32.mrb[0].mxu0
        %v1081 = vadd.f32 %v777, %v1080
        %v1082 = vpop.f32.mrb[0].mxu0
        %1083 = vdwg.mxu0
        %v1084 = vmax.f32 %v958, 0.0
        %v1085 = vmax.f32 %v961, 0.0
        %v1086 = vmax.f32 %v966, 0.0
        %v1087 = vmax.f32 %v969, 0.0
        %v1088 = vmax.f32 %v974, 0.0
        %v1089 = vmax.f32 %v977, 0.0
        %v1090 = vmax.f32 %v982, 0.0
        %v1091 = vmax.f32 %v985, 0.0
        %v1092 = vmax.f32 %v990, 0.0
        %v1093 = vmax.f32 %v993, 0.0
        %v1094 = vmax.f32 %v998, 0.0
        %v1095 = vmax.f32 %v1001, 0.0
        %v1096 = vmax.f32 %v1006, 0.0
        %v1097 = vmax.f32 %v1009, 0.0
        %v1098 = vmax.f32 %v1014, 0.0
        %v1099 = vmax.f32 %v1017, 0.0
        %v1100 = vmax.f32 %v1022, 0.0
        %v1101 = vmax.f32 %v1025, 0.0
        %v1102 = vmax.f32 %v1030, 0.0
        %v1103 = vmax.f32 %v1033, 0.0
        %v1104 = vmax.f32 %v1038, 0.0
        %v1105 = vmax.f32 %v1041, 0.0
        %v1106 = vmax.f32 %v1046, 0.0
        %v1107 = vmax.f32 %v1049, 0.0
        %v1108 = vmax.f32 %v1054, 0.0
        %v1109 = vmax.f32 %v1057, 0.0
        %v1110 = vmax.f32 %v1062, 0.0
        %v1111 = vmax.f32 %v1065, 0.0
        %v1112 = vmax.f32 %v1070, 0.0
        %v1113 = vmax.f32 %v1073, 0.0
        %v1114 = vmax.f32 %v1078, 0.0
        %v1115 = vmax.f32 %v1081, 0.0
        %s1116 = scalar_lea.vmem %s695, 128 [#allocation2]
        %v1117 = vld [vmem:[%s1116] sm:$0xf]
        %v1118 = vld [vmem:[%s1116 + $0x4] sm:$0xf]
        %v1119 = vld [vmem:[%s1116 + $0x8] sm:$0xf]
        %v1120 = vld [vmem:[%s1116 + $0xc] sm:$0xf]
        %v1121 = vld [vmem:[%s1116 + $0x10] sm:$0xf]
        %v1122 = vld [vmem:[%s1116 + $0x14] sm:$0xf]
        %v1123 = vld [vmem:[%s1116 + $0x18] sm:$0xf]
        %v1124 = vld [vmem:[%s1116 + $0x1c] sm:$0xf]
        %v1125 = vld [vmem:[%s1116 + $0x20] sm:$0xf]
        %v1126 = vld [vmem:[%s1116 + $0x24] sm:$0xf]
        %v1127 = vld [vmem:[%s1116 + $0x28] sm:$0xf]
        %v1128 = vld [vmem:[%s1116 + $0x2c] sm:$0xf]
        %v1129 = vld [vmem:[%s1116 + $0x30] sm:$0xf]
        %v1130 = vld [vmem:[%s1116 + $0x34] sm:$0xf]
        %v1131 = vld [vmem:[%s1116 + $0x38] sm:$0xf]
        %v1132 = vld [vmem:[%s1116 + $0x3c] sm:$0xf]
        %v1133 = vld [vmem:[%s1116 + $0x40] sm:$0xf]
        %v1134 = vld [vmem:[%s1116 + $0x44] sm:$0xf]
        %v1135 = vld [vmem:[%s1116 + $0x48] sm:$0xf]
        %v1136 = vld [vmem:[%s1116 + $0x4c] sm:$0xf]
        %v1137 = vld [vmem:[%s1116 + $0x50] sm:$0xf]
        %v1138 = vld [vmem:[%s1116 + $0x54] sm:$0xf]
        %v1139 = vld [vmem:[%s1116 + $0x58] sm:$0xf]
        %v1140 = vld [vmem:[%s1116 + $0x5c] sm:$0xf]
        %v1141 = vld [vmem:[%s1116 + $0x60] sm:$0xf]
        %v1142 = vld [vmem:[%s1116 + $0x64] sm:$0xf]
        %v1143 = vld [vmem:[%s1116 + $0x68] sm:$0xf]
        %v1144 = vld [vmem:[%s1116 + $0x6c] sm:$0xf]
        %v1145 = vld [vmem:[%s1116 + $0x70] sm:$0xf]
        %v1146 = vld [vmem:[%s1116 + $0x74] sm:$0xf]
        %v1147 = vld [vmem:[%s1116 + $0x78] sm:$0xf]
        %v1148 = vld [vmem:[%s1116 + $0x7c] sm:$0xf]
        %v1181 = vunpack.c.l.b16 %v1117
        %v1182 = vunpack.c.l.b16 %v1118
        %v1183 = vunpack.c.l.b16 %v1119
        %v1184 = vunpack.c.l.b16 %v1120
        %v1185 = vunpack.c.l.b16 %v1121
        %v1186 = vunpack.c.l.b16 %v1122
        %v1187 = vunpack.c.l.b16 %v1123
        %v1188 = vunpack.c.l.b16 %v1124
        %v1189 = vunpack.c.l.b16 %v1125
        %v1190 = vunpack.c.l.b16 %v1126
        %v1191 = vunpack.c.l.b16 %v1127
        %v1192 = vunpack.c.l.b16 %v1128
        %v1193 = vunpack.c.l.b16 %v1129
        %v1194 = vunpack.c.l.b16 %v1130
        %v1195 = vunpack.c.l.b16 %v1131
        %v1196 = vunpack.c.l.b16 %v1132
        %v1197 = vunpack.c.l.b16 %v1133
        %v1198 = vunpack.c.l.b16 %v1134
        %v1199 = vunpack.c.l.b16 %v1135
        %v1200 = vunpack.c.l.b16 %v1136
        %v1201 = vunpack.c.l.b16 %v1137
        %v1202 = vunpack.c.l.b16 %v1138
        %v1203 = vunpack.c.l.b16 %v1139
        %v1204 = vunpack.c.l.b16 %v1140
        %v1205 = vunpack.c.l.b16 %v1141
        %v1206 = vunpack.c.l.b16 %v1142
        %v1207 = vunpack.c.l.b16 %v1143
        %v1208 = vunpack.c.l.b16 %v1144
        %v1209 = vunpack.c.l.b16 %v1145
        %v1210 = vunpack.c.l.b16 %v1146
        %v1211 = vunpack.c.l.b16 %v1147
        %v1212 = vunpack.c.l.b16 %v1148
        %v1213 = vpack.c.b16 %v1182, %v1181
        %v1214 = vpack.c.b16 %v1184, %v1183
        %v1215 = vpack.c.b16 %v1186, %v1185
        %v1216 = vpack.c.b16 %v1188, %v1187
        %v1217 = vpack.c.b16 %v1190, %v1189
        %v1218 = vpack.c.b16 %v1192, %v1191
        %v1219 = vpack.c.b16 %v1194, %v1193
        %v1220 = vpack.c.b16 %v1196, %v1195
        %v1221 = vpack.c.b16 %v1198, %v1197
        %v1222 = vpack.c.b16 %v1200, %v1199
        %v1223 = vpack.c.b16 %v1202, %v1201
        %v1224 = vpack.c.b16 %v1204, %v1203
        %v1225 = vpack.c.b16 %v1206, %v1205
        %v1226 = vpack.c.b16 %v1208, %v1207
        %v1227 = vpack.c.b16 %v1210, %v1209
        %v1228 = vpack.c.b16 %v1212, %v1211
        %1245 = vmatprep.subr.bf16.mxu0 0
        %1246 = vmatpush1.bf16.msra.mxu0 %v907
        %1247 = vmatprep.subr.bf16.mxu0 0
        %1248 = vmatpush1.bf16.msra.mxu0 %v908
        %1249 = vmatprep.subr.bf16.mxu0 0
        %1250 = vmatpush1.bf16.msra.mxu0 %v909
        %1251 = vmatprep.subr.bf16.mxu0 0
        %1252 = vmatpush1.bf16.msra.mxu0 %v910
        %1253 = vmatprep.subr.bf16.mxu0 0
        %1254 = vmatpush1.bf16.msra.mxu0 %v911
        %1255 = vmatprep.subr.bf16.mxu0 0
        %1256 = vmatpush1.bf16.msra.mxu0 %v912
        %1257 = vmatprep.subr.bf16.mxu0 0
        %1258 = vmatpush1.bf16.msra.mxu0 %v913
        %1259 = vmatprep.subr.bf16.mxu0 0
        %1260 = vmatpush1.bf16.msra.mxu0 %v914
        %1261 = vmatprep.subr.bf16.mxu0 0
        %1262 = vmatpush1.bf16.msra.mxu0 0
        %1263 = vmatprep.subr.bf16.mxu0 0
        %1264 = vmatpush1.bf16.msra.mxu0 0
        %1265 = vmatprep.subr.bf16.mxu0 0
        %1266 = vmatpush1.bf16.msra.mxu0 0
        %1267 = vmatprep.subr.bf16.mxu0 0
        %1268 = vmatpush1.bf16.msra.mxu0 0
        %1269 = vmatprep.subr.bf16.mxu0 0
        %1270 = vmatpush1.bf16.msra.mxu0 0
        %1271 = vmatprep.subr.bf16.mxu0 0
        %1272 = vmatpush1.bf16.msra.mxu0 0
        %1273 = vmatprep.subr.bf16.mxu0 0
        %1274 = vmatpush1.bf16.msra.mxu0 0
        %1275 = vmatprep.subr.bf16.mxu0 0
        %1276 = vmatpush1.bf16.msra.mxu0 0
        %1277 = vmatprep.mubr.bf16.mxu0 0
        %1278 = vmatmul.mubr.bf16.gmra.mrb[0].mxu0 %v1213
        %v1279 = vpop.f32.mrb[0].mxu0
        %v1280 = vadd.f32 %v777, %v1279
        %v1281 = vpop.f32.mrb[0].mxu0
        %v1282 = vpop.f32.mrb[0].mxu0
        %v1283 = vadd.f32 %v777, %v1282
        %v1284 = vpop.f32.mrb[0].mxu0
        %1285 = vmatprep.mubr.bf16.mxu0 0
        %1286 = vmatmul.mubr.bf16.gmra.mrb[0].mxu0 %v1214
        %v1287 = vpop.f32.mrb[0].mxu0
        %v1288 = vadd.f32 %v777, %v1287
        %v1289 = vpop.f32.mrb[0].mxu0
        %v1290 = vpop.f32.mrb[0].mxu0
        %v1291 = vadd.f32 %v777, %v1290
        %v1292 = vpop.f32.mrb[0].mxu0
        %1293 = vmatprep.mubr.bf16.mxu0 0
        %1294 = vmatmul.mubr.bf16.gmra.mrb[0].mxu0 %v1215
        %v1295 = vpop.f32.mrb[0].mxu0
        %v1296 = vadd.f32 %v777, %v1295
        %v1297 = vpop.f32.mrb[0].mxu0
        %v1298 = vpop.f32.mrb[0].mxu0
        %v1299 = vadd.f32 %v777, %v1298
        %v1300 = vpop.f32.mrb[0].mxu0
        %1301 = vmatprep.mubr.bf16.mxu0 0
        %1302 = vmatmul.mubr.bf16.gmra.mrb[0].mxu0 %v1216
        %v1303 = vpop.f32.mrb[0].mxu0
        %v1304 = vadd.f32 %v777, %v1303
        %v1305 = vpop.f32.mrb[0].mxu0
        %v1306 = vpop.f32.mrb[0].mxu0
        %v1307 = vadd.f32 %v777, %v1306
        %v1308 = vpop.f32.mrb[0].mxu0
        %1309 = vmatprep.mubr.bf16.mxu0 0
        %1310 = vmatmul.mubr.bf16.gmra.mrb[0].mxu0 %v1217
        %v1311 = vpop.f32.mrb[0].mxu0
        %v1312 = vadd.f32 %v777, %v1311
        %v1313 = vpop.f32.mrb[0].mxu0
        %v1314 = vpop.f32.mrb[0].mxu0
        %v1315 = vadd.f32 %v777, %v1314
        %v1316 = vpop.f32.mrb[0].mxu0
        %1317 = vmatprep.mubr.bf16.mxu0 0
        %1318 = vmatmul.mubr.bf16.gmra.mrb[0].mxu0 %v1218
        %v1319 = vpop.f32.mrb[0].mxu0
        %v1320 = vadd.f32 %v777, %v1319
        %v1321 = vpop.f32.mrb[0].mxu0
        %v1322 = vpop.f32.mrb[0].mxu0
        %v1323 = vadd.f32 %v777, %v1322
        %v1324 = vpop.f32.mrb[0].mxu0
        %1325 = vmatprep.mubr.bf16.mxu0 0
        %1326 = vmatmul.mubr.bf16.gmra.mrb[0].mxu0 %v1219
        %v1327 = vpop.f32.mrb[0].mxu0
        %v1328 = vadd.f32 %v777, %v1327
        %v1329 = vpop.f32.mrb[0].mxu0
        %v1330 = vpop.f32.mrb[0].mxu0
        %v1331 = vadd.f32 %v777, %v1330
        %v1332 = vpop.f32.mrb[0].mxu0
        %1333 = vmatprep.mubr.bf16.mxu0 0
        %1334 = vmatmul.mubr.bf16.gmra.mrb[0].mxu0 %v1220
        %v1335 = vpop.f32.mrb[0].mxu0
        %v1336 = vadd.f32 %v777, %v1335
        %v1337 = vpop.f32.mrb[0].mxu0
        %v1338 = vpop.f32.mrb[0].mxu0
        %v1339 = vadd.f32 %v777, %v1338
        %v1340 = vpop.f32.mrb[0].mxu0
        %1341 = vmatprep.mubr.bf16.mxu0 0
        %1342 = vmatmul.mubr.bf16.gmra.mrb[0].mxu0 %v1221
        %v1343 = vpop.f32.mrb[0].mxu0
        %v1344 = vadd.f32 %v777, %v1343
        %v1345 = vpop.f32.mrb[0].mxu0
        %v1346 = vpop.f32.mrb[0].mxu0
        %v1347 = vadd.f32 %v777, %v1346
        %v1348 = vpop.f32.mrb[0].mxu0
        %1349 = vmatprep.mubr.bf16.mxu0 0
        %1350 = vmatmul.mubr.bf16.gmra.mrb[0].mxu0 %v1222
        %v1351 = vpop.f32.mrb[0].mxu0
        %v1352 = vadd.f32 %v777, %v1351
        %v1353 = vpop.f32.mrb[0].mxu0
        %v1354 = vpop.f32.mrb[0].mxu0
        %v1355 = vadd.f32 %v777, %v1354
        %v1356 = vpop.f32.mrb[0].mxu0
        %1357 = vmatprep.mubr.bf16.mxu0 0
        %1358 = vmatmul.mubr.bf16.gmra.mrb[0].mxu0 %v1223
        %v1359 = vpop.f32.mrb[0].mxu0
        %v1360 = vadd.f32 %v777, %v1359
        %v1361 = vpop.f32.mrb[0].mxu0
        %v1362 = vpop.f32.mrb[0].mxu0
        %v1363 = vadd.f32 %v777, %v1362
        %v1364 = vpop.f32.mrb[0].mxu0
        %1365 = vmatprep.mubr.bf16.mxu0 0
        %1366 = vmatmul.mubr.bf16.gmra.mrb[0].mxu0 %v1224
        %v1367 = vpop.f32.mrb[0].mxu0
        %v1368 = vadd.f32 %v777, %v1367
        %v1369 = vpop.f32.mrb[0].mxu0
        %v1370 = vpop.f32.mrb[0].mxu0
        %v1371 = vadd.f32 %v777, %v1370
        %v1372 = vpop.f32.mrb[0].mxu0
        %1373 = vmatprep.mubr.bf16.mxu0 0
        %1374 = vmatmul.mubr.bf16.gmra.mrb[0].mxu0 %v1225
        %v1375 = vpop.f32.mrb[0].mxu0
        %v1376 = vadd.f32 %v777, %v1375
        %v1377 = vpop.f32.mrb[0].mxu0
        %v1378 = vpop.f32.mrb[0].mxu0
        %v1379 = vadd.f32 %v777, %v1378
        %v1380 = vpop.f32.mrb[0].mxu0
        %1381 = vmatprep.mubr.bf16.mxu0 0
        %1382 = vmatmul.mubr.bf16.gmra.mrb[0].mxu0 %v1226
        %v1383 = vpop.f32.mrb[0].mxu0
        %v1384 = vadd.f32 %v777, %v1383
        %v1385 = vpop.f32.mrb[0].mxu0
        %v1386 = vpop.f32.mrb[0].mxu0
        %v1387 = vadd.f32 %v777, %v1386
        %v1388 = vpop.f32.mrb[0].mxu0
        %1389 = vmatprep.mubr.bf16.mxu0 0
        %1390 = vmatmul.mubr.bf16.gmra.mrb[0].mxu0 %v1227
        %v1391 = vpop.f32.mrb[0].mxu0
        %v1392 = vadd.f32 %v777, %v1391
        %v1393 = vpop.f32.mrb[0].mxu0
        %v1394 = vpop.f32.mrb[0].mxu0
        %v1395 = vadd.f32 %v777, %v1394
        %v1396 = vpop.f32.mrb[0].mxu0
        %1397 = vmatprep.mubr.bf16.mxu0 0
        %1398 = vmatmul.mubr.bf16.gmra.mrb[0].mxu0 %v1228
        %v1399 = vpop.f32.mrb[0].mxu0
        %v1400 = vadd.f32 %v777, %v1399
        %v1401 = vpop.f32.mrb[0].mxu0
        %v1402 = vpop.f32.mrb[0].mxu0
        %v1403 = vadd.f32 %v777, %v1402
        %v1404 = vpop.f32.mrb[0].mxu0
        %1405 = vdwg.mxu0
        %v1406 = vmax.f32 %v1280, 0.0
        %v1407 = vmax.f32 %v1283, 0.0
        %v1408 = vmax.f32 %v1288, 0.0
        %v1409 = vmax.f32 %v1291, 0.0
        %v1410 = vmax.f32 %v1296, 0.0
        %v1411 = vmax.f32 %v1299, 0.0
        %v1412 = vmax.f32 %v1304, 0.0
        %v1413 = vmax.f32 %v1307, 0.0
        %v1414 = vmax.f32 %v1312, 0.0
        %v1415 = vmax.f32 %v1315, 0.0
        %v1416 = vmax.f32 %v1320, 0.0
        %v1417 = vmax.f32 %v1323, 0.0
        %v1418 = vmax.f32 %v1328, 0.0
        %v1419 = vmax.f32 %v1331, 0.0
        %v1420 = vmax.f32 %v1336, 0.0
        %v1421 = vmax.f32 %v1339, 0.0
        %v1422 = vmax.f32 %v1344, 0.0
        %v1423 = vmax.f32 %v1347, 0.0
        %v1424 = vmax.f32 %v1352, 0.0
        %v1425 = vmax.f32 %v1355, 0.0
        %v1426 = vmax.f32 %v1360, 0.0
        %v1427 = vmax.f32 %v1363, 0.0
        %v1428 = vmax.f32 %v1368, 0.0
        %v1429 = vmax.f32 %v1371, 0.0
        %v1430 = vmax.f32 %v1376, 0.0
        %v1431 = vmax.f32 %v1379, 0.0
        %v1432 = vmax.f32 %v1384, 0.0
        %v1433 = vmax.f32 %v1387, 0.0
        %v1434 = vmax.f32 %v1392, 0.0
        %v1435 = vmax.f32 %v1395, 0.0
        %v1436 = vmax.f32 %v1400, 0.0
        %v1437 = vmax.f32 %v1403, 0.0
        %v1438 = vmax.f32 %v1084, %v1406
        %v1439 = vmax.f32 %v1085, %v1407
        %v1440 = vmax.f32 %v1086, %v1408
        %v1441 = vmax.f32 %v1087, %v1409
        %v1442 = vmax.f32 %v1088, %v1410
        %v1443 = vmax.f32 %v1089, %v1411
        %v1444 = vmax.f32 %v1090, %v1412
        %v1445 = vmax.f32 %v1091, %v1413
        %v1446 = vmax.f32 %v1092, %v1414
        %v1447 = vmax.f32 %v1093, %v1415
        %v1448 = vmax.f32 %v1094, %v1416
        %v1449 = vmax.f32 %v1095, %v1417
        %v1450 = vmax.f32 %v1096, %v1418
        %v1451 = vmax.f32 %v1097, %v1419
        %v1452 = vmax.f32 %v1098, %v1420
        %v1453 = vmax.f32 %v1099, %v1421
        %v1454 = vmax.f32 %v1100, %v1422
        %v1455 = vmax.f32 %v1101, %v1423
        %v1456 = vmax.f32 %v1102, %v1424
        %v1457 = vmax.f32 %v1103, %v1425
        %v1458 = vmax.f32 %v1104, %v1426
        %v1459 = vmax.f32 %v1105, %v1427
        %v1460 = vmax.f32 %v1106, %v1428
        %v1461 = vmax.f32 %v1107, %v1429
        %v1462 = vmax.f32 %v1108, %v1430
        %v1463 = vmax.f32 %v1109, %v1431
        %v1464 = vmax.f32 %v1110, %v1432
        %v1465 = vmax.f32 %v1111, %v1433
        %v1466 = vmax.f32 %v1112, %v1434
        %v1467 = vmax.f32 %v1113, %v1435
        %v1468 = vmax.f32 %v1114, %v1436
        %v1469 = vmax.f32 %v1115, %v1437
        %s1470 = scalar_lea.vmem %s695, 256 [#allocation2]
        %v1471 = vld [vmem:[%s1470] sm:$0xf]
        %v1472 = vld [vmem:[%s1470 + $0x4] sm:$0xf]
        %v1473 = vld [vmem:[%s1470 + $0x8] sm:$0xf]
        %v1474 = vld [vmem:[%s1470 + $0xc] sm:$0xf]
        %v1475 = vld [vmem:[%s1470 + $0x10] sm:$0xf]
        %v1476 = vld [vmem:[%s1470 + $0x14] sm:$0xf]
        %v1477 = vld [vmem:[%s1470 + $0x18] sm:$0xf]
        %v1478 = vld [vmem:[%s1470 + $0x1c] sm:$0xf]
        %v1479 = vld [vmem:[%s1470 + $0x20] sm:$0xf]
        %v1480 = vld [vmem:[%s1470 + $0x24] sm:$0xf]
        %v1481 = vld [vmem:[%s1470 + $0x28] sm:$0xf]
        %v1482 = vld [vmem:[%s1470 + $0x2c] sm:$0xf]
        %v1483 = vld [vmem:[%s1470 + $0x30] sm:$0xf]
        %v1484 = vld [vmem:[%s1470 + $0x34] sm:$0xf]
        %v1485 = vld [vmem:[%s1470 + $0x38] sm:$0xf]
        %v1486 = vld [vmem:[%s1470 + $0x3c] sm:$0xf]
        %v1487 = vld [vmem:[%s1470 + $0x40] sm:$0xf]
        %v1488 = vld [vmem:[%s1470 + $0x44] sm:$0xf]
        %v1489 = vld [vmem:[%s1470 + $0x48] sm:$0xf]
        %v1490 = vld [vmem:[%s1470 + $0x4c] sm:$0xf]
        %v1491 = vld [vmem:[%s1470 + $0x50] sm:$0xf]
        %v1492 = vld [vmem:[%s1470 + $0x54] sm:$0xf]
        %v1493 = vld [vmem:[%s1470 + $0x58] sm:$0xf]
        %v1494 = vld [vmem:[%s1470 + $0x5c] sm:$0xf]
        %v1495 = vld [vmem:[%s1470 + $0x60] sm:$0xf]
        %v1496 = vld [vmem:[%s1470 + $0x64] sm:$0xf]
        %v1497 = vld [vmem:[%s1470 + $0x68] sm:$0xf]
        %v1498 = vld [vmem:[%s1470 + $0x6c] sm:$0xf]
        %v1499 = vld [vmem:[%s1470 + $0x70] sm:$0xf]
        %v1500 = vld [vmem:[%s1470 + $0x74] sm:$0xf]
        %v1501 = vld [vmem:[%s1470 + $0x78] sm:$0xf]
        %v1502 = vld [vmem:[%s1470 + $0x7c] sm:$0xf]
        %v1535 = vunpack.c.l.b16 %v1471
        %v1536 = vunpack.c.l.b16 %v1472
        %v1537 = vunpack.c.l.b16 %v1473
        %v1538 = vunpack.c.l.b16 %v1474
        %v1539 = vunpack.c.l.b16 %v1475
        %v1540 = vunpack.c.l.b16 %v1476
        %v1541 = vunpack.c.l.b16 %v1477
        %v1542 = vunpack.c.l.b16 %v1478
        %v1543 = vunpack.c.l.b16 %v1479
        %v1544 = vunpack.c.l.b16 %v1480
        %v1545 = vunpack.c.l.b16 %v1481
        %v1546 = vunpack.c.l.b16 %v1482
        %v1547 = vunpack.c.l.b16 %v1483
        %v1548 = vunpack.c.l.b16 %v1484
        %v1549 = vunpack.c.l.b16 %v1485
        %v1550 = vunpack.c.l.b16 %v1486
        %v1551 = vunpack.c.l.b16 %v1487
        %v1552 = vunpack.c.l.b16 %v1488
        %v1553 = vunpack.c.l.b16 %v1489
        %v1554 = vunpack.c.l.b16 %v1490
        %v1555 = vunpack.c.l.b16 %v1491
        %v1556 = vunpack.c.l.b16 %v1492
        %v1557 = vunpack.c.l.b16 %v1493
        %v1558 = vunpack.c.l.b16 %v1494
        %v1559 = vunpack.c.l.b16 %v1495
        %v1560 = vunpack.c.l.b16 %v1496
        %v1561 = vunpack.c.l.b16 %v1497
        %v1562 = vunpack.c.l.b16 %v1498
        %v1563 = vunpack.c.l.b16 %v1499
        %v1564 = vunpack.c.l.b16 %v1500
        %v1565 = vunpack.c.l.b16 %v1501
        %v1566 = vunpack.c.l.b16 %v1502
        %v1567 = vpack.c.b16 %v1536, %v1535
        %v1568 = vpack.c.b16 %v1538, %v1537
        %v1569 = vpack.c.b16 %v1540, %v1539
        %v1570 = vpack.c.b16 %v1542, %v1541
        %v1571 = vpack.c.b16 %v1544, %v1543
        %v1572 = vpack.c.b16 %v1546, %v1545
        %v1573 = vpack.c.b16 %v1548, %v1547
        %v1574 = vpack.c.b16 %v1550, %v1549
        %v1575 = vpack.c.b16 %v1552, %v1551
        %v1576 = vpack.c.b16 %v1554, %v1553
        %v1577 = vpack.c.b16 %v1556, %v1555
        %v1578 = vpack.c.b16 %v1558, %v1557
        %v1579 = vpack.c.b16 %v1560, %v1559
        %v1580 = vpack.c.b16 %v1562, %v1561
        %v1581 = vpack.c.b16 %v1564, %v1563
        %v1582 = vpack.c.b16 %v1566, %v1565
        %1599 = vmatprep.subr.bf16.mxu0 0
        %1600 = vmatpush1.bf16.msra.mxu0 %v907
        %1601 = vmatprep.subr.bf16.mxu0 0
        %1602 = vmatpush1.bf16.msra.mxu0 %v908
        %1603 = vmatprep.subr.bf16.mxu0 0
        %1604 = vmatpush1.bf16.msra.mxu0 %v909
        %1605 = vmatprep.subr.bf16.mxu0 0
        %1606 = vmatpush1.bf16.msra.mxu0 %v910
        %1607 = vmatprep.subr.bf16.mxu0 0
        %1608 = vmatpush1.bf16.msra.mxu0 %v911
        %1609 = vmatprep.subr.bf16.mxu0 0
        %1610 = vmatpush1.bf16.msra.mxu0 %v912
        %1611 = vmatprep.subr.bf16.mxu0 0
        %1612 = vmatpush1.bf16.msra.mxu0 %v913
        %1613 = vmatprep.subr.bf16.mxu0 0
        %1614 = vmatpush1.bf16.msra.mxu0 %v914
        %1615 = vmatprep.subr.bf16.mxu0 0
        %1616 = vmatpush1.bf16.msra.mxu0 0
        %1617 = vmatprep.subr.bf16.mxu0 0
        %1618 = vmatpush1.bf16.msra.mxu0 0
        %1619 = vmatprep.subr.bf16.mxu0 0
        %1620 = vmatpush1.bf16.msra.mxu0 0
        %1621 = vmatprep.subr.bf16.mxu0 0
        %1622 = vmatpush1.bf16.msra.mxu0 0
        %1623 = vmatprep.subr.bf16.mxu0 0
        %1624 = vmatpush1.bf16.msra.mxu0 0
        %1625 = vmatprep.subr.bf16.mxu0 0
        %1626 = vmatpush1.bf16.msra.mxu0 0
        %1627 = vmatprep.subr.bf16.mxu0 0
        %1628 = vmatpush1.bf16.msra.mxu0 0
        %1629 = vmatprep.subr.bf16.mxu0 0
        %1630 = vmatpush1.bf16.msra.mxu0 0
        %1631 = vmatprep.mubr.bf16.mxu0 0
        %1632 = vmatmul.mubr.bf16.gmra.mrb[0].mxu0 %v1567
        %v1633 = vpop.f32.mrb[0].mxu0
        %v1634 = vadd.f32 %v777, %v1633
        %v1635 = vpop.f32.mrb[0].mxu0
        %v1636 = vpop.f32.mrb[0].mxu0
        %v1637 = vadd.f32 %v777, %v1636
        %v1638 = vpop.f32.mrb[0].mxu0
        %1639 = vmatprep.mubr.bf16.mxu0 0
        %1640 = vmatmul.mubr.bf16.gmra.mrb[0].mxu0 %v1568
        %v1641 = vpop.f32.mrb[0].mxu0
        %v1642 = vadd.f32 %v777, %v1641
        %v1643 = vpop.f32.mrb[0].mxu0
        %v1644 = vpop.f32.mrb[0].mxu0
        %v1645 = vadd.f32 %v777, %v1644
        %v1646 = vpop.f32.mrb[0].mxu0
        %1647 = vmatprep.mubr.bf16.mxu0 0
        %1648 = vmatmul.mubr.bf16.gmra.mrb[0].mxu0 %v1569
        %v1649 = vpop.f32.mrb[0].mxu0
        %v1650 = vadd.f32 %v777, %v1649
        %v1651 = vpop.f32.mrb[0].mxu0
        %v1652 = vpop.f32.mrb[0].mxu0
        %v1653 = vadd.f32 %v777, %v1652
        %v1654 = vpop.f32.mrb[0].mxu0
        %1655 = vmatprep.mubr.bf16.mxu0 0
        %1656 = vmatmul.mubr.bf16.gmra.mrb[0].mxu0 %v1570
        %v1657 = vpop.f32.mrb[0].mxu0
        %v1658 = vadd.f32 %v777, %v1657
        %v1659 = vpop.f32.mrb[0].mxu0
        %v1660 = vpop.f32.mrb[0].mxu0
        %v1661 = vadd.f32 %v777, %v1660
        %v1662 = vpop.f32.mrb[0].mxu0
        %1663 = vmatprep.mubr.bf16.mxu0 0
        %1664 = vmatmul.mubr.bf16.gmra.mrb[0].mxu0 %v1571
        %v1665 = vpop.f32.mrb[0].mxu0
        %v1666 = vadd.f32 %v777, %v1665
        %v1667 = vpop.f32.mrb[0].mxu0
        %v1668 = vpop.f32.mrb[0].mxu0
        %v1669 = vadd.f32 %v777, %v1668
        %v1670 = vpop.f32.mrb[0].mxu0
        %1671 = vmatprep.mubr.bf16.mxu0 0
        %1672 = vmatmul.mubr.bf16.gmra.mrb[0].mxu0 %v1572
        %v1673 = vpop.f32.mrb[0].mxu0
        %v1674 = vadd.f32 %v777, %v1673
        %v1675 = vpop.f32.mrb[0].mxu0
        %v1676 = vpop.f32.mrb[0].mxu0
        %v1677 = vadd.f32 %v777, %v1676
        %v1678 = vpop.f32.mrb[0].mxu0
        %1679 = vmatprep.mubr.bf16.mxu0 0
        %1680 = vmatmul.mubr.bf16.gmra.mrb[0].mxu0 %v1573
        %v1681 = vpop.f32.mrb[0].mxu0
        %v1682 = vadd.f32 %v777, %v1681
        %v1683 = vpop.f32.mrb[0].mxu0
        %v1684 = vpop.f32.mrb[0].mxu0
        %v1685 = vadd.f32 %v777, %v1684
        %v1686 = vpop.f32.mrb[0].mxu0
        %1687 = vmatprep.mubr.bf16.mxu0 0
        %1688 = vmatmul.mubr.bf16.gmra.mrb[0].mxu0 %v1574
        %v1689 = vpop.f32.mrb[0].mxu0
        %v1690 = vadd.f32 %v777, %v1689
        %v1691 = vpop.f32.mrb[0].mxu0
        %v1692 = vpop.f32.mrb[0].mxu0
        %v1693 = vadd.f32 %v777, %v1692
        %v1694 = vpop.f32.mrb[0].mxu0
        %1695 = vmatprep.mubr.bf16.mxu0 0
        %1696 = vmatmul.mubr.bf16.gmra.mrb[0].mxu0 %v1575
        %v1697 = vpop.f32.mrb[0].mxu0
        %v1698 = vadd.f32 %v777, %v1697
        %v1699 = vpop.f32.mrb[0].mxu0
        %v1700 = vpop.f32.mrb[0].mxu0
        %v1701 = vadd.f32 %v777, %v1700
        %v1702 = vpop.f32.mrb[0].mxu0
        %1703 = vmatprep.mubr.bf16.mxu0 0
        %1704 = vmatmul.mubr.bf16.gmra.mrb[0].mxu0 %v1576
        %v1705 = vpop.f32.mrb[0].mxu0
        %v1706 = vadd.f32 %v777, %v1705
        %v1707 = vpop.f32.mrb[0].mxu0
        %v1708 = vpop.f32.mrb[0].mxu0
        %v1709 = vadd.f32 %v777, %v1708
        %v1710 = vpop.f32.mrb[0].mxu0
        %1711 = vmatprep.mubr.bf16.mxu0 0
        %1712 = vmatmul.mubr.bf16.gmra.mrb[0].mxu0 %v1577
        %v1713 = vpop.f32.mrb[0].mxu0
        %v1714 = vadd.f32 %v777, %v1713
        %v1715 = vpop.f32.mrb[0].mxu0
        %v1716 = vpop.f32.mrb[0].mxu0
        %v1717 = vadd.f32 %v777, %v1716
        %v1718 = vpop.f32.mrb[0].mxu0
        %1719 = vmatprep.mubr.bf16.mxu0 0
        %1720 = vmatmul.mubr.bf16.gmra.mrb[0].mxu0 %v1578
        %v1721 = vpop.f32.mrb[0].mxu0
        %v1722 = vadd.f32 %v777, %v1721
        %v1723 = vpop.f32.mrb[0].mxu0
        %v1724 = vpop.f32.mrb[0].mxu0
        %v1725 = vadd.f32 %v777, %v1724
        %v1726 = vpop.f32.mrb[0].mxu0
        %1727 = vmatprep.mubr.bf16.mxu0 0
        %1728 = vmatmul.mubr.bf16.gmra.mrb[0].mxu0 %v1579
        %v1729 = vpop.f32.mrb[0].mxu0
        %v1730 = vadd.f32 %v777, %v1729
        %v1731 = vpop.f32.mrb[0].mxu0
        %v1732 = vpop.f32.mrb[0].mxu0
        %v1733 = vadd.f32 %v777, %v1732
        %v1734 = vpop.f32.mrb[0].mxu0
        %1735 = vmatprep.mubr.bf16.mxu0 0
        %1736 = vmatmul.mubr.bf16.gmra.mrb[0].mxu0 %v1580
        %v1737 = vpop.f32.mrb[0].mxu0
        %v1738 = vadd.f32 %v777, %v1737
        %v1739 = vpop.f32.mrb[0].mxu0
        %v1740 = vpop.f32.mrb[0].mxu0
        %v1741 = vadd.f32 %v777, %v1740
        %v1742 = vpop.f32.mrb[0].mxu0
        %1743 = vmatprep.mubr.bf16.mxu0 0
        %1744 = vmatmul.mubr.bf16.gmra.mrb[0].mxu0 %v1581
        %v1745 = vpop.f32.mrb[0].mxu0
        %v1746 = vadd.f32 %v777, %v1745
        %v1747 = vpop.f32.mrb[0].mxu0
        %v1748 = vpop.f32.mrb[0].mxu0
        %v1749 = vadd.f32 %v777, %v1748
        %v1750 = vpop.f32.mrb[0].mxu0
        %1751 = vmatprep.mubr.bf16.mxu0 0
        %1752 = vmatmul.mubr.bf16.gmra.mrb[0].mxu0 %v1582
        %v1753 = vpop.f32.mrb[0].mxu0
        %v1754 = vadd.f32 %v777, %v1753
        %v1755 = vpop.f32.mrb[0].mxu0
        %v1756 = vpop.f32.mrb[0].mxu0
        %v1757 = vadd.f32 %v777, %v1756
        %v1758 = vpop.f32.mrb[0].mxu0
        %1759 = vdwg.mxu0
        %v1760 = vmax.f32 %v1634, 0.0
        %v1761 = vmax.f32 %v1637, 0.0
        %v1762 = vmax.f32 %v1642, 0.0
        %v1763 = vmax.f32 %v1645, 0.0
        %v1764 = vmax.f32 %v1650, 0.0
        %v1765 = vmax.f32 %v1653, 0.0
        %v1766 = vmax.f32 %v1658, 0.0
        %v1767 = vmax.f32 %v1661, 0.0
        %v1768 = vmax.f32 %v1666, 0.0
        %v1769 = vmax.f32 %v1669, 0.0
        %v1770 = vmax.f32 %v1674, 0.0
        %v1771 = vmax.f32 %v1677, 0.0
        %v1772 = vmax.f32 %v1682, 0.0
        %v1773 = vmax.f32 %v1685, 0.0
        %v1774 = vmax.f32 %v1690, 0.0
        %v1775 = vmax.f32 %v1693, 0.0
        %v1776 = vmax.f32 %v1698, 0.0
        %v1777 = vmax.f32 %v1701, 0.0
        %v1778 = vmax.f32 %v1706, 0.0
        %v1779 = vmax.f32 %v1709, 0.0
        %v1780 = vmax.f32 %v1714, 0.0
        %v1781 = vmax.f32 %v1717, 0.0
        %v1782 = vmax.f32 %v1722, 0.0
        %v1783 = vmax.f32 %v1725, 0.0
        %v1784 = vmax.f32 %v1730, 0.0
        %v1785 = vmax.f32 %v1733, 0.0
        %v1786 = vmax.f32 %v1738, 0.0
        %v1787 = vmax.f32 %v1741, 0.0
        %v1788 = vmax.f32 %v1746, 0.0
        %v1789 = vmax.f32 %v1749, 0.0
        %v1790 = vmax.f32 %v1754, 0.0
        %v1791 = vmax.f32 %v1757, 0.0
        %s1792 = scalar_lea.vmem %s695, 384 [#allocation2]
        %v1793 = vld [vmem:[%s1792] sm:$0xf]
        %v1794 = vld [vmem:[%s1792 + $0x4] sm:$0xf]
        %v1795 = vld [vmem:[%s1792 + $0x8] sm:$0xf]
        %v1796 = vld [vmem:[%s1792 + $0xc] sm:$0xf]
        %v1797 = vld [vmem:[%s1792 + $0x10] sm:$0xf]
        %v1798 = vld [vmem:[%s1792 + $0x14] sm:$0xf]
        %v1799 = vld [vmem:[%s1792 + $0x18] sm:$0xf]
        %v1800 = vld [vmem:[%s1792 + $0x1c] sm:$0xf]
        %v1801 = vld [vmem:[%s1792 + $0x20] sm:$0xf]
        %v1802 = vld [vmem:[%s1792 + $0x24] sm:$0xf]
        %v1803 = vld [vmem:[%s1792 + $0x28] sm:$0xf]
        %v1804 = vld [vmem:[%s1792 + $0x2c] sm:$0xf]
        %v1805 = vld [vmem:[%s1792 + $0x30] sm:$0xf]
        %v1806 = vld [vmem:[%s1792 + $0x34] sm:$0xf]
        %v1807 = vld [vmem:[%s1792 + $0x38] sm:$0xf]
        %v1808 = vld [vmem:[%s1792 + $0x3c] sm:$0xf]
        %v1809 = vld [vmem:[%s1792 + $0x40] sm:$0xf]
        %v1810 = vld [vmem:[%s1792 + $0x44] sm:$0xf]
        %v1811 = vld [vmem:[%s1792 + $0x48] sm:$0xf]
        %v1812 = vld [vmem:[%s1792 + $0x4c] sm:$0xf]
        %v1813 = vld [vmem:[%s1792 + $0x50] sm:$0xf]
        %v1814 = vld [vmem:[%s1792 + $0x54] sm:$0xf]
        %v1815 = vld [vmem:[%s1792 + $0x58] sm:$0xf]
        %v1816 = vld [vmem:[%s1792 + $0x5c] sm:$0xf]
        %v1817 = vld [vmem:[%s1792 + $0x60] sm:$0xf]
        %v1818 = vld [vmem:[%s1792 + $0x64] sm:$0xf]
        %v1819 = vld [vmem:[%s1792 + $0x68] sm:$0xf]
        %v1820 = vld [vmem:[%s1792 + $0x6c] sm:$0xf]
        %v1821 = vld [vmem:[%s1792 + $0x70] sm:$0xf]
        %v1822 = vld [vmem:[%s1792 + $0x74] sm:$0xf]
        %v1823 = vld [vmem:[%s1792 + $0x78] sm:$0xf]
        %v1824 = vld [vmem:[%s1792 + $0x7c] sm:$0xf]
        %v1857 = vunpack.c.l.b16 %v1793
        %v1858 = vunpack.c.l.b16 %v1794
        %v1859 = vunpack.c.l.b16 %v1795
        %v1860 = vunpack.c.l.b16 %v1796
        %v1861 = vunpack.c.l.b16 %v1797
        %v1862 = vunpack.c.l.b16 %v1798
        %v1863 = vunpack.c.l.b16 %v1799
        %v1864 = vunpack.c.l.b16 %v1800
        %v1865 = vunpack.c.l.b16 %v1801
        %v1866 = vunpack.c.l.b16 %v1802
        %v1867 = vunpack.c.l.b16 %v1803
        %v1868 = vunpack.c.l.b16 %v1804
        %v1869 = vunpack.c.l.b16 %v1805
        %v1870 = vunpack.c.l.b16 %v1806
        %v1871 = vunpack.c.l.b16 %v1807
        %v1872 = vunpack.c.l.b16 %v1808
        %v1873 = vunpack.c.l.b16 %v1809
        %v1874 = vunpack.c.l.b16 %v1810
        %v1875 = vunpack.c.l.b16 %v1811
        %v1876 = vunpack.c.l.b16 %v1812
        %v1877 = vunpack.c.l.b16 %v1813
        %v1878 = vunpack.c.l.b16 %v1814
        %v1879 = vunpack.c.l.b16 %v1815
        %v1880 = vunpack.c.l.b16 %v1816
        %v1881 = vunpack.c.l.b16 %v1817
        %v1882 = vunpack.c.l.b16 %v1818
        %v1883 = vunpack.c.l.b16 %v1819
        %v1884 = vunpack.c.l.b16 %v1820
        %v1885 = vunpack.c.l.b16 %v1821
        %v1886 = vunpack.c.l.b16 %v1822
        %v1887 = vunpack.c.l.b16 %v1823
        %v1888 = vunpack.c.l.b16 %v1824
        %v1889 = vpack.c.b16 %v1858, %v1857
        %v1890 = vpack.c.b16 %v1860, %v1859
        %v1891 = vpack.c.b16 %v1862, %v1861
        %v1892 = vpack.c.b16 %v1864, %v1863
        %v1893 = vpack.c.b16 %v1866, %v1865
        %v1894 = vpack.c.b16 %v1868, %v1867
        %v1895 = vpack.c.b16 %v1870, %v1869
        %v1896 = vpack.c.b16 %v1872, %v1871
        %v1897 = vpack.c.b16 %v1874, %v1873
        %v1898 = vpack.c.b16 %v1876, %v1875
        %v1899 = vpack.c.b16 %v1878, %v1877
        %v1900 = vpack.c.b16 %v1880, %v1879
        %v1901 = vpack.c.b16 %v1882, %v1881
        %v1902 = vpack.c.b16 %v1884, %v1883
        %v1903 = vpack.c.b16 %v1886, %v1885
        %v1904 = vpack.c.b16 %v1888, %v1887
        %1921 = vmatprep.subr.bf16.mxu0 0
        %1922 = vmatpush1.bf16.msra.mxu0 %v907
        %1923 = vmatprep.subr.bf16.mxu0 0
        %1924 = vmatpush1.bf16.msra.mxu0 %v908
        %1925 = vmatprep.subr.bf16.mxu0 0
        %1926 = vmatpush1.bf16.msra.mxu0 %v909
        %1927 = vmatprep.subr.bf16.mxu0 0
        %1928 = vmatpush1.bf16.msra.mxu0 %v910
        %1929 = vmatprep.subr.bf16.mxu0 0
        %1930 = vmatpush1.bf16.msra.mxu0 %v911
        %1931 = vmatprep.subr.bf16.mxu0 0
        %1932 = vmatpush1.bf16.msra.mxu0 %v912
        %1933 = vmatprep.subr.bf16.mxu0 0
        %1934 = vmatpush1.bf16.msra.mxu0 %v913
        %1935 = vmatprep.subr.bf16.mxu0 0
        %1936 = vmatpush1.bf16.msra.mxu0 %v914
        %1937 = vmatprep.subr.bf16.mxu0 0
        %1938 = vmatpush1.bf16.msra.mxu0 0
        %1939 = vmatprep.subr.bf16.mxu0 0
        %1940 = vmatpush1.bf16.msra.mxu0 0
        %1941 = vmatprep.subr.bf16.mxu0 0
        %1942 = vmatpush1.bf16.msra.mxu0 0
        %1943 = vmatprep.subr.bf16.mxu0 0
        %1944 = vmatpush1.bf16.msra.mxu0 0
        %1945 = vmatprep.subr.bf16.mxu0 0
        %1946 = vmatpush1.bf16.msra.mxu0 0
        %1947 = vmatprep.subr.bf16.mxu0 0
        %1948 = vmatpush1.bf16.msra.mxu0 0
        %1949 = vmatprep.subr.bf16.mxu0 0
        %1950 = vmatpush1.bf16.msra.mxu0 0
        %1951 = vmatprep.subr.bf16.mxu0 0
        %1952 = vmatpush1.bf16.msra.mxu0 0
        %1953 = vmatprep.mubr.bf16.mxu0 0
        %1954 = vmatmul.mubr.bf16.gmra.mrb[0].mxu0 %v1889
        %v1955 = vpop.f32.mrb[0].mxu0
        %v1956 = vadd.f32 %v777, %v1955
        %v1957 = vpop.f32.mrb[0].mxu0
        %v1958 = vpop.f32.mrb[0].mxu0
        %v1959 = vadd.f32 %v777, %v1958
        %v1960 = vpop.f32.mrb[0].mxu0
        %1961 = vmatprep.mubr.bf16.mxu0 0
        %1962 = vmatmul.mubr.bf16.gmra.mrb[0].mxu0 %v1890
        %v1963 = vpop.f32.mrb[0].mxu0
        %v1964 = vadd.f32 %v777, %v1963
        %v1965 = vpop.f32.mrb[0].mxu0
        %v1966 = vpop.f32.mrb[0].mxu0
        %v1967 = vadd.f32 %v777, %v1966
        %v1968 = vpop.f32.mrb[0].mxu0
        %1969 = vmatprep.mubr.bf16.mxu0 0
        %1970 = vmatmul.mubr.bf16.gmra.mrb[0].mxu0 %v1891
        %v1971 = vpop.f32.mrb[0].mxu0
        %v1972 = vadd.f32 %v777, %v1971
        %v1973 = vpop.f32.mrb[0].mxu0
        %v1974 = vpop.f32.mrb[0].mxu0
        %v1975 = vadd.f32 %v777, %v1974
        %v1976 = vpop.f32.mrb[0].mxu0
        %1977 = vmatprep.mubr.bf16.mxu0 0
        %1978 = vmatmul.mubr.bf16.gmra.mrb[0].mxu0 %v1892
        %v1979 = vpop.f32.mrb[0].mxu0
        %v1980 = vadd.f32 %v777, %v1979
        %v1981 = vpop.f32.mrb[0].mxu0
        %v1982 = vpop.f32.mrb[0].mxu0
        %v1983 = vadd.f32 %v777, %v1982
        %v1984 = vpop.f32.mrb[0].mxu0
        %1985 = vmatprep.mubr.bf16.mxu0 0
        %1986 = vmatmul.mubr.bf16.gmra.mrb[0].mxu0 %v1893
        %v1987 = vpop.f32.mrb[0].mxu0
        %v1988 = vadd.f32 %v777, %v1987
        %v1989 = vpop.f32.mrb[0].mxu0
        %v1990 = vpop.f32.mrb[0].mxu0
        %v1991 = vadd.f32 %v777, %v1990
        %v1992 = vpop.f32.mrb[0].mxu0
        %1993 = vmatprep.mubr.bf16.mxu0 0
        %1994 = vmatmul.mubr.bf16.gmra.mrb[0].mxu0 %v1894
        %v1995 = vpop.f32.mrb[0].mxu0
        %v1996 = vadd.f32 %v777, %v1995
        %v1997 = vpop.f32.mrb[0].mxu0
        %v1998 = vpop.f32.mrb[0].mxu0
        %v1999 = vadd.f32 %v777, %v1998
        %v2000 = vpop.f32.mrb[0].mxu0
        %2001 = vmatprep.mubr.bf16.mxu0 0
        %2002 = vmatmul.mubr.bf16.gmra.mrb[0].mxu0 %v1895
        %v2003 = vpop.f32.mrb[0].mxu0
        %v2004 = vadd.f32 %v777, %v2003
        %v2005 = vpop.f32.mrb[0].mxu0
        %v2006 = vpop.f32.mrb[0].mxu0
        %v2007 = vadd.f32 %v777, %v2006
        %v2008 = vpop.f32.mrb[0].mxu0
        %2009 = vmatprep.mubr.bf16.mxu0 0
        %2010 = vmatmul.mubr.bf16.gmra.mrb[0].mxu0 %v1896
        %v2011 = vpop.f32.mrb[0].mxu0
        %v2012 = vadd.f32 %v777, %v2011
        %v2013 = vpop.f32.mrb[0].mxu0
        %v2014 = vpop.f32.mrb[0].mxu0
        %v2015 = vadd.f32 %v777, %v2014
        %v2016 = vpop.f32.mrb[0].mxu0
        %2017 = vmatprep.mubr.bf16.mxu0 0
        %2018 = vmatmul.mubr.bf16.gmra.mrb[0].mxu0 %v1897
        %v2019 = vpop.f32.mrb[0].mxu0
        %v2020 = vadd.f32 %v777, %v2019
        %v2021 = vpop.f32.mrb[0].mxu0
        %v2022 = vpop.f32.mrb[0].mxu0
        %v2023 = vadd.f32 %v777, %v2022
        %v2024 = vpop.f32.mrb[0].mxu0
        %2025 = vmatprep.mubr.bf16.mxu0 0
        %2026 = vmatmul.mubr.bf16.gmra.mrb[0].mxu0 %v1898
        %v2027 = vpop.f32.mrb[0].mxu0
        %v2028 = vadd.f32 %v777, %v2027
        %v2029 = vpop.f32.mrb[0].mxu0
        %v2030 = vpop.f32.mrb[0].mxu0
        %v2031 = vadd.f32 %v777, %v2030
        %v2032 = vpop.f32.mrb[0].mxu0
        %2033 = vmatprep.mubr.bf16.mxu0 0
        %2034 = vmatmul.mubr.bf16.gmra.mrb[0].mxu0 %v1899
        %v2035 = vpop.f32.mrb[0].mxu0
        %v2036 = vadd.f32 %v777, %v2035
        %v2037 = vpop.f32.mrb[0].mxu0
        %v2038 = vpop.f32.mrb[0].mxu0
        %v2039 = vadd.f32 %v777, %v2038
        %v2040 = vpop.f32.mrb[0].mxu0
        %2041 = vmatprep.mubr.bf16.mxu0 0
        %2042 = vmatmul.mubr.bf16.gmra.mrb[0].mxu0 %v1900
        %v2043 = vpop.f32.mrb[0].mxu0
        %v2044 = vadd.f32 %v777, %v2043
        %v2045 = vpop.f32.mrb[0].mxu0
        %v2046 = vpop.f32.mrb[0].mxu0
        %v2047 = vadd.f32 %v777, %v2046
        %v2048 = vpop.f32.mrb[0].mxu0
        %2049 = vmatprep.mubr.bf16.mxu0 0
        %2050 = vmatmul.mubr.bf16.gmra.mrb[0].mxu0 %v1901
        %v2051 = vpop.f32.mrb[0].mxu0
        %v2052 = vadd.f32 %v777, %v2051
        %v2053 = vpop.f32.mrb[0].mxu0
        %v2054 = vpop.f32.mrb[0].mxu0
        %v2055 = vadd.f32 %v777, %v2054
        %v2056 = vpop.f32.mrb[0].mxu0
        %2057 = vmatprep.mubr.bf16.mxu0 0
        %2058 = vmatmul.mubr.bf16.gmra.mrb[0].mxu0 %v1902
        %v2059 = vpop.f32.mrb[0].mxu0
        %v2060 = vadd.f32 %v777, %v2059
        %v2061 = vpop.f32.mrb[0].mxu0
        %v2062 = vpop.f32.mrb[0].mxu0
        %v2063 = vadd.f32 %v777, %v2062
        %v2064 = vpop.f32.mrb[0].mxu0
        %2065 = vmatprep.mubr.bf16.mxu0 0
        %2066 = vmatmul.mubr.bf16.gmra.mrb[0].mxu0 %v1903
        %v2067 = vpop.f32.mrb[0].mxu0
        %v2068 = vadd.f32 %v777, %v2067
        %v2069 = vpop.f32.mrb[0].mxu0
        %v2070 = vpop.f32.mrb[0].mxu0
        %v2071 = vadd.f32 %v777, %v2070
        %v2072 = vpop.f32.mrb[0].mxu0
        %2073 = vmatprep.mubr.bf16.mxu0 0
        %2074 = vmatmul.mubr.bf16.gmra.mrb[0].mxu0 %v1904
        %v2075 = vpop.f32.mrb[0].mxu0
        %v2076 = vadd.f32 %v777, %v2075
        %v2077 = vpop.f32.mrb[0].mxu0
        %v2078 = vpop.f32.mrb[0].mxu0
        %v2079 = vadd.f32 %v777, %v2078
        %v2080 = vpop.f32.mrb[0].mxu0
        %2081 = vdwg.mxu0
        %v2082 = vmax.f32 %v1956, 0.0
        %v2083 = vmax.f32 %v1959, 0.0
        %v2084 = vmax.f32 %v1964, 0.0
        %v2085 = vmax.f32 %v1967, 0.0
        %v2086 = vmax.f32 %v1972, 0.0
        %v2087 = vmax.f32 %v1975, 0.0
        %v2088 = vmax.f32 %v1980, 0.0
        %v2089 = vmax.f32 %v1983, 0.0
        %v2090 = vmax.f32 %v1988, 0.0
        %v2091 = vmax.f32 %v1991, 0.0
        %v2092 = vmax.f32 %v1996, 0.0
        %v2093 = vmax.f32 %v1999, 0.0
        %v2094 = vmax.f32 %v2004, 0.0
        %v2095 = vmax.f32 %v2007, 0.0
        %v2096 = vmax.f32 %v2012, 0.0
        %v2097 = vmax.f32 %v2015, 0.0
        %v2098 = vmax.f32 %v2020, 0.0
        %v2099 = vmax.f32 %v2023, 0.0
        %v2100 = vmax.f32 %v2028, 0.0
        %v2101 = vmax.f32 %v2031, 0.0
        %v2102 = vmax.f32 %v2036, 0.0
        %v2103 = vmax.f32 %v2039, 0.0
        %v2104 = vmax.f32 %v2044, 0.0
        %v2105 = vmax.f32 %v2047, 0.0
        %v2106 = vmax.f32 %v2052, 0.0
        %v2107 = vmax.f32 %v2055, 0.0
        %v2108 = vmax.f32 %v2060, 0.0
        %v2109 = vmax.f32 %v2063, 0.0
        %v2110 = vmax.f32 %v2068, 0.0
        %v2111 = vmax.f32 %v2071, 0.0
        %v2112 = vmax.f32 %v2076, 0.0
        %v2113 = vmax.f32 %v2079, 0.0
        %v2114 = vmax.f32 %v1760, %v2082
        %v2115 = vmax.f32 %v1761, %v2083
        %v2116 = vmax.f32 %v1762, %v2084
        %v2117 = vmax.f32 %v1763, %v2085
        %v2118 = vmax.f32 %v1764, %v2086
        %v2119 = vmax.f32 %v1765, %v2087
        %v2120 = vmax.f32 %v1766, %v2088
        %v2121 = vmax.f32 %v1767, %v2089
        %v2122 = vmax.f32 %v1768, %v2090
        %v2123 = vmax.f32 %v1769, %v2091
        %v2124 = vmax.f32 %v1770, %v2092
        %v2125 = vmax.f32 %v1771, %v2093
        %v2126 = vmax.f32 %v1772, %v2094
        %v2127 = vmax.f32 %v1773, %v2095
        %v2128 = vmax.f32 %v1774, %v2096
        %v2129 = vmax.f32 %v1775, %v2097
        %v2130 = vmax.f32 %v1776, %v2098
        %v2131 = vmax.f32 %v1777, %v2099
        %v2132 = vmax.f32 %v1778, %v2100
        %v2133 = vmax.f32 %v1779, %v2101
        %v2134 = vmax.f32 %v1780, %v2102
        %v2135 = vmax.f32 %v1781, %v2103
        %v2136 = vmax.f32 %v1782, %v2104
        %v2137 = vmax.f32 %v1783, %v2105
        %v2138 = vmax.f32 %v1784, %v2106
        %v2139 = vmax.f32 %v1785, %v2107
        %v2140 = vmax.f32 %v1786, %v2108
        %v2141 = vmax.f32 %v1787, %v2109
        %v2142 = vmax.f32 %v1788, %v2110
        %v2143 = vmax.f32 %v1789, %v2111
        %v2144 = vmax.f32 %v1790, %v2112
        %v2145 = vmax.f32 %v1791, %v2113
        %v2146 = vmax.f32 %v1438, %v2114
        %v2147 = vmax.f32 %v1439, %v2115
        %v2148 = vmax.f32 %v1440, %v2116
        %v2149 = vmax.f32 %v1441, %v2117
        %v2150 = vmax.f32 %v1442, %v2118
        %v2151 = vmax.f32 %v1443, %v2119
        %v2152 = vmax.f32 %v1444, %v2120
        %v2153 = vmax.f32 %v1445, %v2121
        %v2154 = vmax.f32 %v1446, %v2122
        %v2155 = vmax.f32 %v1447, %v2123
        %v2156 = vmax.f32 %v1448, %v2124
        %v2157 = vmax.f32 %v1449, %v2125
        %v2158 = vmax.f32 %v1450, %v2126
        %v2159 = vmax.f32 %v1451, %v2127
        %v2160 = vmax.f32 %v1452, %v2128
        %v2161 = vmax.f32 %v1453, %v2129
        %v2162 = vmax.f32 %v1454, %v2130
        %v2163 = vmax.f32 %v1455, %v2131
        %v2164 = vmax.f32 %v1456, %v2132
        %v2165 = vmax.f32 %v1457, %v2133
        %v2166 = vmax.f32 %v1458, %v2134
        %v2167 = vmax.f32 %v1459, %v2135
        %v2168 = vmax.f32 %v1460, %v2136
        %v2169 = vmax.f32 %v1461, %v2137
        %v2170 = vmax.f32 %v1462, %v2138
        %v2171 = vmax.f32 %v1463, %v2139
        %v2172 = vmax.f32 %v1464, %v2140
        %v2173 = vmax.f32 %v1465, %v2141
        %v2174 = vmax.f32 %v1466, %v2142
        %v2175 = vmax.f32 %v1467, %v2143
        %v2176 = vmax.f32 %v1468, %v2144
        %v2177 = vmax.f32 %v1469, %v2145
        %2178 = vst [vmem:[%s721] sm:$0xff] %v2146
        %2179 = vst [vmem:[%s721 + $0x8] sm:$0xff] %v2147
        %2180 = vst [vmem:[%s721 + $0x10] sm:$0xff] %v2148
        %2181 = vst [vmem:[%s721 + $0x18] sm:$0xff] %v2149
        %2182 = vst [vmem:[%s721 + $0x20] sm:$0xff] %v2150
        %2183 = vst [vmem:[%s721 + $0x28] sm:$0xff] %v2151
        %2184 = vst [vmem:[%s721 + $0x30] sm:$0xff] %v2152
        %2185 = vst [vmem:[%s721 + $0x38] sm:$0xff] %v2153
        %2186 = vst [vmem:[%s721 + $0x40] sm:$0xff] %v2154
        %2187 = vst [vmem:[%s721 + $0x48] sm:$0xff] %v2155
        %2188 = vst [vmem:[%s721 + $0x50] sm:$0xff] %v2156
        %2189 = vst [vmem:[%s721 + $0x58] sm:$0xff] %v2157
        %2190 = vst [vmem:[%s721 + $0x60] sm:$0xff] %v2158
        %2191 = vst [vmem:[%s721 + $0x68] sm:$0xff] %v2159
        %2192 = vst [vmem:[%s721 + $0x70] sm:$0xff] %v2160
        %2193 = vst [vmem:[%s721 + $0x78] sm:$0xff] %v2161
        %2194 = vst [vmem:[%s721 + $0x80] sm:$0xff] %v2162
        %2195 = vst [vmem:[%s721 + $0x88] sm:$0xff] %v2163
        %2196 = vst [vmem:[%s721 + $0x90] sm:$0xff] %v2164
        %2197 = vst [vmem:[%s721 + $0x98] sm:$0xff] %v2165
        %2198 = vst [vmem:[%s721 + $0xa0] sm:$0xff] %v2166
        %2199 = vst [vmem:[%s721 + $0xa8] sm:$0xff] %v2167
        %2200 = vst [vmem:[%s721 + $0xb0] sm:$0xff] %v2168
        %2201 = vst [vmem:[%s721 + $0xb8] sm:$0xff] %v2169
        %2202 = vst [vmem:[%s721 + $0xc0] sm:$0xff] %v2170
        %2203 = vst [vmem:[%s721 + $0xc8] sm:$0xff] %v2171
        %2204 = vst [vmem:[%s721 + $0xd0] sm:$0xff] %v2172
        %2205 = vst [vmem:[%s721 + $0xd8] sm:$0xff] %v2173
        %2206 = vst [vmem:[%s721 + $0xe0] sm:$0xff] %v2174
        %2207 = vst [vmem:[%s721 + $0xe8] sm:$0xff] %v2175
        %2208 = vst [vmem:[%s721 + $0xf0] sm:$0xff] %v2176
        %2209 = vst [vmem:[%s721 + $0xf8] sm:$0xff] %v2177
        %s2210 = smul.u32 32, %s14
        %p2211 = scmp.lt.s32.totalorder %s2210, 63
        %s2212 = scalar_select %p2211, %s2210, 63
        %s2213 = smul.addr %s2212, 8
        %s2214 = scalar_lea.vmem %s3, %s2213
        // Predicated region
        $region74: #{net_forward.3} parent=68 // pred_check
          %p2215 = pneg %p100
        $region75: #{net_forward.3} parent=68 // pred_check_branch
          %2217 = sbr.rel (%p2215) target = $region77
        $region76: #{net_forward.3} parent=68 // pred_region
          %s2218 = smul.u32 32, %s14
        $region77: #{net_forward.3} parent=68 // pred_fallthru
          _
      $region69: #{net_forward.3} parent=5 // pred_fallthru
        _
      %p2219 = scmp.le.s32.totalorder 2, %s9
      // Predicated region
      $region78: #{net_forward.3} parent=5 // pred_check
        %p2220 = pneg %p2219
      $region79: #{net_forward.3} parent=5 // pred_check_branch
        %2222 = sbr.rel (%p2220) target = $region81
      $region80: #{net_forward.3} parent=5 // pred_region
        %s2223 = ssub.s32 %s9, 2
        // Predicated region
        $region82: #{net_forward.3} parent=80 // pred_check
          %p2224 = pneg %p106
        $region83: #{net_forward.3} parent=80 // pred_check_branch
          %2226 = sbr.rel (%p2224) target = $region85
        $region84: #{net_forward.3} parent=80 // pred_region
          %s2227 = smul.u32 32, %s15
          %p2228 = scmp.lt.s32.totalorder %s2227, 63
          %s2229 = scalar_select %p2228, %s2227, 63
          %s2230 = smul.addr %s2229, 8
          %s2231 = scalar_lea.vmem %s3, %s2230
        $region85: #{net_forward.3} parent=80 // pred_fallthru
          _
      $region81: #{net_forward.3} parent=5 // pred_fallthru
        _
    $region6: #{net_forward.3} parent=1 // loop_footer
      %s13 = sadd.s32 1, %s9
    $region7: #{net_forward.3} parent=1 // loop_footer_branch
      %8 = sbr.rel target = $region3
    $region8: #{net_forward.3} parent=1 // loop_exit
      _

// kernel: net_forward.4
$region0: #{net_forward.4}
  #allocation0 [shape = 'u32[]', space=smem, size = 0x4, offset = 0x4, fixed_abs, tag = 'smem constant byte address 0x4 - core index']
  #allocation1 [shape = 'u32[144,128]{1,0:T(1,128)}', space=vmem, size = 0x12000, scoped, tag = 'internal scratch']
  %s0 = inlined_call_operand.vmem [shape: bf16[4,56,256], index: 0, kind: input, shape index: {}]
  %s1 = inlined_call_operand.vmem [shape: bf16[256,128], index: 1, kind: input, shape index: {}]
  %s2 = inlined_call_operand.vmem [shape: f32[1,128], index: 2, kind: input, shape index: {}]
  %s3 = inlined_call_operand.vmem [shape: f32[56,128], index: 3, kind: output, shape index: {}]
  %s4 = sld [smem:[#allocation0]]
  $region22: #{net_forward.4} parent=0
    _
  %s6 = ssub.s32 1, %s4
  %s7 = scalar_select 0, %s6, %s4
  // Predicated region
  $region2: #{net_forward.4} parent=0 // pred_check
    _
  $region3: #{net_forward.4} parent=0 // pred_check_branch
    %9 = sbr.rel (0) target = $region5
  $region4: #{net_forward.4} parent=0 // pred_region
    _
  $region5: #{net_forward.4} parent=0 // pred_fallthru
    _
  // Predicated region
  $region6: #{net_forward.4} parent=0 // pred_check
    _
  $region7: #{net_forward.4} parent=0 // pred_check_branch
    %11 = sbr.rel (0) target = $region9
  $region8: #{net_forward.4} parent=0 // pred_region
    _
  $region9: #{net_forward.4} parent=0 // pred_fallthru
    _
  // Predicated region
  $region10: #{net_forward.4} parent=0 // pred_check
    _
  $region11: #{net_forward.4} parent=0 // pred_check_branch
    %13 = sbr.rel (0) target = $region13
  $region12: #{net_forward.4} parent=0 // pred_region
    _
  $region13: #{net_forward.4} parent=0 // pred_fallthru
    _
  %v15 = vld [vmem:[%s1] sm:$0xf]
  %v16 = vld [vmem:[%s1 + $0x4] sm:$0xf]
  %v17 = vld [vmem:[%s1 + $0x8] sm:$0xf]
  %v18 = vld [vmem:[%s1 + $0xc] sm:$0xf]
  %v19 = vld [vmem:[%s1 + $0x10] sm:$0xf]
  %v20 = vld [vmem:[%s1 + $0x14] sm:$0xf]
  %v21 = vld [vmem:[%s1 + $0x18] sm:$0xf]
  %v22 = vld [vmem:[%s1 + $0x1c] sm:$0xf]
  %v23 = vld [vmem:[%s1 + $0x20] sm:$0xf]
  %v24 = vld [vmem:[%s1 + $0x24] sm:$0xf]
  %v25 = vld [vmem:[%s1 + $0x28] sm:$0xf]
  %v26 = vld [vmem:[%s1 + $0x2c] sm:$0xf]
  %v27 = vld [vmem:[%s1 + $0x30] sm:$0xf]
  %v28 = vld [vmem:[%s1 + $0x34] sm:$0xf]
  %v29 = vld [vmem:[%s1 + $0x38] sm:$0xf]
  %v30 = vld [vmem:[%s1 + $0x3c] sm:$0xf]
  %v31 = vld [vmem:[%s1 + $0x40] sm:$0xf]
  %v32 = vld [vmem:[%s1 + $0x44] sm:$0xf]
  %v33 = vld [vmem:[%s1 + $0x48] sm:$0xf]
  %v34 = vld [vmem:[%s1 + $0x4c] sm:$0xf]
  %v35 = vld [vmem:[%s1 + $0x50] sm:$0xf]
  %v36 = vld [vmem:[%s1 + $0x54] sm:$0xf]
  %v37 = vld [vmem:[%s1 + $0x58] sm:$0xf]
  %v38 = vld [vmem:[%s1 + $0x5c] sm:$0xf]
  %v39 = vld [vmem:[%s1 + $0x60] sm:$0xf]
  %v40 = vld [vmem:[%s1 + $0x64] sm:$0xf]
  %v41 = vld [vmem:[%s1 + $0x68] sm:$0xf]
  %v42 = vld [vmem:[%s1 + $0x6c] sm:$0xf]
  %v43 = vld [vmem:[%s1 + $0x70] sm:$0xf]
  %v44 = vld [vmem:[%s1 + $0x74] sm:$0xf]
  %v45 = vld [vmem:[%s1 + $0x78] sm:$0xf]
  %v46 = vld [vmem:[%s1 + $0x7c] sm:$0xf]
  %v47 = vld [vmem:[%s2] sm:$0x1]
  %v48 = vld [vmem:[%s0] sm:$0xff]
  %v49 = vld [vmem:[%s0 + $0x8] sm:$0xff]
  %v50 = vld [vmem:[%s0 + $0x10] sm:$0xff]
  %v51 = vld [vmem:[%s0 + $0x18] sm:$0xff]
  %v52 = vld [vmem:[%s0 + $0x20] sm:$0xff]
  %v53 = vld [vmem:[%s0 + $0x28] sm:$0xff]
  %v54 = vld [vmem:[%s0 + $0x30] sm:$0xff]
  %v56 = vlaneseq
  %v57 = vshrl.u32 %v56, 7
  %v58 = vsub.s32 0, %v57
  %v59 = vrot.slane %v47, %v58
  %v68 = vunpack.c.l.b16 %v48
  %v69 = vunpack.c.h.b16 %v48
  %v70 = vunpack.c.l.b16 %v49
  %v71 = vunpack.c.h.b16 %v49
  %v72 = vunpack.c.l.b16 %v50
  %v73 = vunpack.c.h.b16 %v50
  %v74 = vunpack.c.l.b16 %v51
  %v75 = vunpack.c.h.b16 %v51
  %v76 = vunpack.c.l.b16 %v52
  %v77 = vunpack.c.h.b16 %v52
  %v78 = vunpack.c.l.b16 %v53
  %v79 = vunpack.c.h.b16 %v53
  %v80 = vunpack.c.l.b16 %v54
  %v81 = vunpack.c.h.b16 %v54
  %v82 = vpack.c.b16 %v70, %v68
  %v83 = vpack.c.b16 %v71, %v69
  %v84 = vpack.c.b16 %v74, %v72
  %v85 = vpack.c.b16 %v75, %v73
  %v86 = vpack.c.b16 %v78, %v76
  %v87 = vpack.c.b16 %v79, %v77
  %v88 = vpack.c.b16 %v80, %v80
  %v89 = vpack.c.b16 %v81, %v81
  %v130 = vunpack.c.l.b16 %v15
  %v131 = vunpack.c.l.b16 %v16
  %v132 = vunpack.c.l.b16 %v17
  %v133 = vunpack.c.l.b16 %v18
  %v134 = vunpack.c.l.b16 %v19
  %v135 = vunpack.c.l.b16 %v20
  %v136 = vunpack.c.l.b16 %v21
  %v137 = vunpack.c.l.b16 %v22
  %v138 = vunpack.c.l.b16 %v23
  %v139 = vunpack.c.l.b16 %v24
  %v140 = vunpack.c.l.b16 %v25
  %v141 = vunpack.c.l.b16 %v26
  %v142 = vunpack.c.l.b16 %v27
  %v143 = vunpack.c.l.b16 %v28
  %v144 = vunpack.c.l.b16 %v29
  %v145 = vunpack.c.l.b16 %v30
  %v146 = vunpack.c.l.b16 %v31
  %v147 = vunpack.c.l.b16 %v32
  %v148 = vunpack.c.l.b16 %v33
  %v149 = vunpack.c.l.b16 %v34
  %v150 = vunpack.c.l.b16 %v35
  %v151 = vunpack.c.l.b16 %v36
  %v152 = vunpack.c.l.b16 %v37
  %v153 = vunpack.c.l.b16 %v38
  %v154 = vunpack.c.l.b16 %v39
  %v155 = vunpack.c.l.b16 %v40
  %v156 = vunpack.c.l.b16 %v41
  %v157 = vunpack.c.l.b16 %v42
  %v158 = vunpack.c.l.b16 %v43
  %v159 = vunpack.c.l.b16 %v44
  %v160 = vunpack.c.l.b16 %v45
  %v161 = vunpack.c.l.b16 %v46
  %v162 = vpack.c.b16 %v131, %v130
  %v163 = vpack.c.b16 %v133, %v132
  %v164 = vpack.c.b16 %v135, %v134
  %v165 = vpack.c.b16 %v137, %v136
  %v166 = vpack.c.b16 %v139, %v138
  %v167 = vpack.c.b16 %v141, %v140
  %v168 = vpack.c.b16 %v143, %v142
  %v169 = vpack.c.b16 %v145, %v144
  %v170 = vpack.c.b16 %v147, %v146
  %v171 = vpack.c.b16 %v149, %v148
  %v172 = vpack.c.b16 %v151, %v150
  %v173 = vpack.c.b16 %v153, %v152
  %v174 = vpack.c.b16 %v155, %v154
  %v175 = vpack.c.b16 %v157, %v156
  %v176 = vpack.c.b16 %v159, %v158
  %v177 = vpack.c.b16 %v161, %v160
  %194 = vmatprep.subr.bf16.mxu0 0
  %195 = vmatpush1.bf16.msra.mxu0 %v162
  %196 = vmatprep.subr.bf16.mxu0 0
  %197 = vmatpush1.bf16.msra.mxu0 %v163
  %198 = vmatprep.subr.bf16.mxu0 0
  %199 = vmatpush1.bf16.msra.mxu0 %v164
  %200 = vmatprep.subr.bf16.mxu0 0
  %201 = vmatpush1.bf16.msra.mxu0 %v165
  %202 = vmatprep.subr.bf16.mxu0 0
  %203 = vmatpush1.bf16.msra.mxu0 %v166
  %204 = vmatprep.subr.bf16.mxu0 0
  %205 = vmatpush1.bf16.msra.mxu0 %v167
  %206 = vmatprep.subr.bf16.mxu0 0
  %207 = vmatpush1.bf16.msra.mxu0 %v168
  %208 = vmatprep.subr.bf16.mxu0 0
  %209 = vmatpush1.bf16.msra.mxu0 %v169
  %210 = vmatprep.subr.bf16.mxu0 0
  %211 = vmatpush1.bf16.msra.mxu0 %v170
  %212 = vmatprep.subr.bf16.mxu0 0
  %213 = vmatpush1.bf16.msra.mxu0 %v171
  %214 = vmatprep.subr.bf16.mxu0 0
  %215 = vmatpush1.bf16.msra.mxu0 %v172
  %216 = vmatprep.subr.bf16.mxu0 0
  %217 = vmatpush1.bf16.msra.mxu0 %v173
  %218 = vmatprep.subr.bf16.mxu0 0
  %219 = vmatpush1.bf16.msra.mxu0 %v174
  %220 = vmatprep.subr.bf16.mxu0 0
  %221 = vmatpush1.bf16.msra.mxu0 %v175
  %222 = vmatprep.subr.bf16.mxu0 0
  %223 = vmatpush1.bf16.msra.mxu0 %v176
  %224 = vmatprep.subr.bf16.mxu0 0
  %225 = vmatpush1.bf16.msra.mxu0 %v177
  %226 = vmatprep.mubr.bf16.mxu0 %v83
  %227 = vmatmul.mubr.bf16.gmra.mrb[0].mxu0 %v82
  %v228 = vpop.f32.mrb[0].mxu0
  %v229 = vadd.f32 %v59, %v228
  %v230 = vpop.f32.mrb[0].mxu0
  %v231 = vpop.f32.mrb[0].mxu0
  %v232 = vadd.f32 %v59, %v231
  %v233 = vpop.f32.mrb[0].mxu0
  %234 = vmatprep.mubr.bf16.mxu0 %v85
  %235 = vmatmul.mubr.bf16.gmra.mrb[0].mxu0 %v84
  %v236 = vpop.f32.mrb[0].mxu0
  %v237 = vadd.f32 %v59, %v236
  %v238 = vpop.f32.mrb[0].mxu0
  %v239 = vpop.f32.mrb[0].mxu0
  %v240 = vadd.f32 %v59, %v239
  %v241 = vpop.f32.mrb[0].mxu0
  %242 = vmatprep.mubr.bf16.mxu0 %v87
  %243 = vmatmul.mubr.bf16.gmra.mrb[0].mxu0 %v86
  %v244 = vpop.f32.mrb[0].mxu0
  %v245 = vadd.f32 %v59, %v244
  %v246 = vpop.f32.mrb[0].mxu0
  %v247 = vpop.f32.mrb[0].mxu0
  %v248 = vadd.f32 %v59, %v247
  %v249 = vpop.f32.mrb[0].mxu0
  %250 = vmatprep.mubr.bf16.mxu0 %v89
  %251 = vmatmul.mubr.bf16.gmra.mrb[0].mxu0 %v88
  %v252 = vpop.f32.mrb[0].mxu0
  %v253 = vadd.f32 %v59, %v252
  %v254 = vpop.f32.mrb[0].mxu0
  %v255 = vpop.f32.mrb[0].mxu0
  %v256 = vpop.f32.mrb[0].mxu0
  %257 = vdwg.mxu0
  %v258 = vmax.f32 %v229, 0.0
  %v259 = vmax.f32 %v232, 0.0
  %v260 = vmax.f32 %v237, 0.0
  %v261 = vmax.f32 %v240, 0.0
  %v262 = vmax.f32 %v245, 0.0
  %v263 = vmax.f32 %v248, 0.0
  %v264 = vmax.f32 %v253, 0.0
  %s265 = scalar_lea.vmem %s0, 56
  %v266 = vld [vmem:[%s265] sm:$0xff]
  %v267 = vld [vmem:[%s265 + $0x8] sm:$0xff]
  %v268 = vld [vmem:[%s265 + $0x10] sm:$0xff]
  %v269 = vld [vmem:[%s265 + $0x18] sm:$0xff]
  %v270 = vld [vmem:[%s265 + $0x20] sm:$0xff]
  %v271 = vld [vmem:[%s265 + $0x28] sm:$0xff]
  %v272 = vld [vmem:[%s265 + $0x30] sm:$0xff]
  %v280 = vunpack.c.l.b16 %v266
  %v281 = vunpack.c.h.b16 %v266
  %v282 = vunpack.c.l.b16 %v267
  %v283 = vunpack.c.h.b16 %v267
  %v284 = vunpack.c.l.b16 %v268
  %v285 = vunpack.c.h.b16 %v268
  %v286 = vunpack.c.l.b16 %v269
  %v287 = vunpack.c.h.b16 %v269
  %v288 = vunpack.c.l.b16 %v270
  %v289 = vunpack.c.h.b16 %v270
  %v290 = vunpack.c.l.b16 %v271
  %v291 = vunpack.c.h.b16 %v271
  %v292 = vunpack.c.l.b16 %v272
  %v293 = vunpack.c.h.b16 %v272
  %v294 = vpack.c.b16 %v282, %v280
  %v295 = vpack.c.b16 %v283, %v281
  %v296 = vpack.c.b16 %v286, %v284
  %v297 = vpack.c.b16 %v287, %v285
  %v298 = vpack.c.b16 %v290, %v288
  %v299 = vpack.c.b16 %v291, %v289
  %v300 = vpack.c.b16 %v292, %v292
  %v301 = vpack.c.b16 %v293, %v293
  %310 = vmatprep.subr.bf16.mxu0 0
  %311 = vmatpush1.bf16.msra.mxu0 %v162
  %312 = vmatprep.subr.bf16.mxu0 0
  %313 = vmatpush1.bf16.msra.mxu0 %v163
  %314 = vmatprep.subr.bf16.mxu0 0
  %315 = vmatpush1.bf16.msra.mxu0 %v164
  %316 = vmatprep.subr.bf16.mxu0 0
  %317 = vmatpush1.bf16.msra.mxu0 %v165
  %318 = vmatprep.subr.bf16.mxu0 0
  %319 = vmatpush1.bf16.msra.mxu0 %v166
  %320 = vmatprep.subr.bf16.mxu0 0
  %321 = vmatpush1.bf16.msra.mxu0 %v167
  %322 = vmatprep.subr.bf16.mxu0 0
  %323 = vmatpush1.bf16.msra.mxu0 %v168
  %324 = vmatprep.subr.bf16.mxu0 0
  %325 = vmatpush1.bf16.msra.mxu0 %v169
  %326 = vmatprep.subr.bf16.mxu0 0
  %327 = vmatpush1.bf16.msra.mxu0 %v170
  %328 = vmatprep.subr.bf16.mxu0 0
  %329 = vmatpush1.bf16.msra.mxu0 %v171
  %330 = vmatprep.subr.bf16.mxu0 0
  %331 = vmatpush1.bf16.msra.mxu0 %v172
  %332 = vmatprep.subr.bf16.mxu0 0
  %333 = vmatpush1.bf16.msra.mxu0 %v173
  %334 = vmatprep.subr.bf16.mxu0 0
  %335 = vmatpush1.bf16.msra.mxu0 %v174
  %336 = vmatprep.subr.bf16.mxu0 0
  %337 = vmatpush1.bf16.msra.mxu0 %v175
  %338 = vmatprep.subr.bf16.mxu0 0
  %339 = vmatpush1.bf16.msra.mxu0 %v176
  %340 = vmatprep.subr.bf16.mxu0 0
  %341 = vmatpush1.bf16.msra.mxu0 %v177
  %342 = vmatprep.mubr.bf16.mxu0 %v295
  %343 = vmatmul.mubr.bf16.gmra.mrb[0].mxu0 %v294
  %v344 = vpop.f32.mrb[0].mxu0
  %v345 = vadd.f32 %v59, %v344
  %v346 = vpop.f32.mrb[0].mxu0
  %v347 = vpop.f32.mrb[0].mxu0
  %v348 = vadd.f32 %v59, %v347
  %v349 = vpop.f32.mrb[0].mxu0
  %350 = vmatprep.mubr.bf16.mxu0 %v297
  %351 = vmatmul.mubr.bf16.gmra.mrb[0].mxu0 %v296
  %v352 = vpop.f32.mrb[0].mxu0
  %v353 = vadd.f32 %v59, %v352
  %v354 = vpop.f32.mrb[0].mxu0
  %v355 = vpop.f32.mrb[0].mxu0
  %v356 = vadd.f32 %v59, %v355
  %v357 = vpop.f32.mrb[0].mxu0
  %358 = vmatprep.mubr.bf16.mxu0 %v299
  %359 = vmatmul.mubr.bf16.gmra.mrb[0].mxu0 %v298
  %v360 = vpop.f32.mrb[0].mxu0
  %v361 = vadd.f32 %v59, %v360
  %v362 = vpop.f32.mrb[0].mxu0
  %v363 = vpop.f32.mrb[0].mxu0
  %v364 = vadd.f32 %v59, %v363
  %v365 = vpop.f32.mrb[0].mxu0
  %366 = vmatprep.mubr.bf16.mxu0 %v301
  %367 = vmatmul.mubr.bf16.gmra.mrb[0].mxu0 %v300
  %v368 = vpop.f32.mrb[0].mxu0
  %v369 = vadd.f32 %v59, %v368
  %v370 = vpop.f32.mrb[0].mxu0
  %v371 = vpop.f32.mrb[0].mxu0
  %v372 = vpop.f32.mrb[0].mxu0
  %373 = vdwg.mxu0
  %v374 = vmax.f32 %v345, 0.0
  %v375 = vmax.f32 %v348, 0.0
  %v376 = vmax.f32 %v353, 0.0
  %v377 = vmax.f32 %v356, 0.0
  %v378 = vmax.f32 %v361, 0.0
  %v379 = vmax.f32 %v364, 0.0
  %v380 = vmax.f32 %v369, 0.0
  %v381 = vmax.f32 %v258, %v374
  %v382 = vmax.f32 %v259, %v375
  %v383 = vmax.f32 %v260, %v376
  %v384 = vmax.f32 %v261, %v377
  %v385 = vmax.f32 %v262, %v378
  %v386 = vmax.f32 %v263, %v379
  %v387 = vmax.f32 %v264, %v380
  %s388 = scalar_lea.vmem %s0, 112
  %v389 = vld [vmem:[%s388] sm:$0xff]
  %v390 = vld [vmem:[%s388 + $0x8] sm:$0xff]
  %v391 = vld [vmem:[%s388 + $0x10] sm:$0xff]
  %v392 = vld [vmem:[%s388 + $0x18] sm:$0xff]
  %v393 = vld [vmem:[%s388 + $0x20] sm:$0xff]
  %v394 = vld [vmem:[%s388 + $0x28] sm:$0xff]
  %v395 = vld [vmem:[%s388 + $0x30] sm:$0xff]
  %v403 = vunpack.c.l.b16 %v389
  %v404 = vunpack.c.h.b16 %v389
  %v405 = vunpack.c.l.b16 %v390
  %v406 = vunpack.c.h.b16 %v390
  %v407 = vunpack.c.l.b16 %v391
  %v408 = vunpack.c.h.b16 %v391
  %v409 = vunpack.c.l.b16 %v392
  %v410 = vunpack.c.h.b16 %v392
  %v411 = vunpack.c.l.b16 %v393
  %v412 = vunpack.c.h.b16 %v393
  %v413 = vunpack.c.l.b16 %v394
  %v414 = vunpack.c.h.b16 %v394
  %v415 = vunpack.c.l.b16 %v395
  %v416 = vunpack.c.h.b16 %v395
  %v417 = vpack.c.b16 %v405, %v403
  %v418 = vpack.c.b16 %v406, %v404
  %v419 = vpack.c.b16 %v409, %v407
  %v420 = vpack.c.b16 %v410, %v408
  %v421 = vpack.c.b16 %v413, %v411
  %v422 = vpack.c.b16 %v414, %v412
  %v423 = vpack.c.b16 %v415, %v415
  %v424 = vpack.c.b16 %v416, %v416
  %433 = vmatprep.subr.bf16.mxu0 0
  %434 = vmatpush1.bf16.msra.mxu0 %v162
  %435 = vmatprep.subr.bf16.mxu0 0
  %436 = vmatpush1.bf16.msra.mxu0 %v163
  %437 = vmatprep.subr.bf16.mxu0 0
  %438 = vmatpush1.bf16.msra.mxu0 %v164
  %439 = vmatprep.subr.bf16.mxu0 0
  %440 = vmatpush1.bf16.msra.mxu0 %v165
  %441 = vmatprep.subr.bf16.mxu0 0
  %442 = vmatpush1.bf16.msra.mxu0 %v166
  %443 = vmatprep.subr.bf16.mxu0 0
  %444 = vmatpush1.bf16.msra.mxu0 %v167
  %445 = vmatprep.subr.bf16.mxu0 0
  %446 = vmatpush1.bf16.msra.mxu0 %v168
  %447 = vmatprep.subr.bf16.mxu0 0
  %448 = vmatpush1.bf16.msra.mxu0 %v169
  %449 = vmatprep.subr.bf16.mxu0 0
  %450 = vmatpush1.bf16.msra.mxu0 %v170
  %451 = vmatprep.subr.bf16.mxu0 0
  %452 = vmatpush1.bf16.msra.mxu0 %v171
  %453 = vmatprep.subr.bf16.mxu0 0
  %454 = vmatpush1.bf16.msra.mxu0 %v172
  %455 = vmatprep.subr.bf16.mxu0 0
  %456 = vmatpush1.bf16.msra.mxu0 %v173
  %457 = vmatprep.subr.bf16.mxu0 0
  %458 = vmatpush1.bf16.msra.mxu0 %v174
  %459 = vmatprep.subr.bf16.mxu0 0
  %460 = vmatpush1.bf16.msra.mxu0 %v175
  %461 = vmatprep.subr.bf16.mxu0 0
  %462 = vmatpush1.bf16.msra.mxu0 %v176
  %463 = vmatprep.subr.bf16.mxu0 0
  %464 = vmatpush1.bf16.msra.mxu0 %v177
  %465 = vmatprep.mubr.bf16.mxu0 %v418
  %466 = vmatmul.mubr.bf16.gmra.mrb[0].mxu0 %v417
  %v467 = vpop.f32.mrb[0].mxu0
  %v468 = vadd.f32 %v59, %v467
  %v469 = vpop.f32.mrb[0].mxu0
  %v470 = vpop.f32.mrb[0].mxu0
  %v471 = vadd.f32 %v59, %v470
  %v472 = vpop.f32.mrb[0].mxu0
  %473 = vmatprep.mubr.bf16.mxu0 %v420
  %474 = vmatmul.mubr.bf16.gmra.mrb[0].mxu0 %v419
  %v475 = vpop.f32.mrb[0].mxu0
  %v476 = vadd.f32 %v59, %v475
  %v477 = vpop.f32.mrb[0].mxu0
  %v478 = vpop.f32.mrb[0].mxu0
  %v479 = vadd.f32 %v59, %v478
  %v480 = vpop.f32.mrb[0].mxu0
  %481 = vmatprep.mubr.bf16.mxu0 %v422
  %482 = vmatmul.mubr.bf16.gmra.mrb[0].mxu0 %v421
  %v483 = vpop.f32.mrb[0].mxu0
  %v484 = vadd.f32 %v59, %v483
  %v485 = vpop.f32.mrb[0].mxu0
  %v486 = vpop.f32.mrb[0].mxu0
  %v487 = vadd.f32 %v59, %v486
  %v488 = vpop.f32.mrb[0].mxu0
  %489 = vmatprep.mubr.bf16.mxu0 %v424
  %490 = vmatmul.mubr.bf16.gmra.mrb[0].mxu0 %v423
  %v491 = vpop.f32.mrb[0].mxu0
  %v492 = vadd.f32 %v59, %v491
  %v493 = vpop.f32.mrb[0].mxu0
  %v494 = vpop.f32.mrb[0].mxu0
  %v495 = vpop.f32.mrb[0].mxu0
  %496 = vdwg.mxu0
  %v497 = vmax.f32 %v468, 0.0
  %v498 = vmax.f32 %v471, 0.0
  %v499 = vmax.f32 %v476, 0.0
  %v500 = vmax.f32 %v479, 0.0
  %v501 = vmax.f32 %v484, 0.0
  %v502 = vmax.f32 %v487, 0.0
  %v503 = vmax.f32 %v492, 0.0
  %s504 = scalar_lea.vmem %s0, 168
  %v505 = vld [vmem:[%s504] sm:$0xff]
  %v506 = vld [vmem:[%s504 + $0x8] sm:$0xff]
  %v507 = vld [vmem:[%s504 + $0x10] sm:$0xff]
  %v508 = vld [vmem:[%s504 + $0x18] sm:$0xff]
  %v509 = vld [vmem:[%s504 + $0x20] sm:$0xff]
  %v510 = vld [vmem:[%s504 + $0x28] sm:$0xff]
  %v511 = vld [vmem:[%s504 + $0x30] sm:$0xff]
  %v519 = vunpack.c.l.b16 %v505
  %v520 = vunpack.c.h.b16 %v505
  %v521 = vunpack.c.l.b16 %v506
  %v522 = vunpack.c.h.b16 %v506
  %v523 = vunpack.c.l.b16 %v507
  %v524 = vunpack.c.h.b16 %v507
  %v525 = vunpack.c.l.b16 %v508
  %v526 = vunpack.c.h.b16 %v508
  %v527 = vunpack.c.l.b16 %v509
  %v528 = vunpack.c.h.b16 %v509
  %v529 = vunpack.c.l.b16 %v510
  %v530 = vunpack.c.h.b16 %v510
  %v531 = vunpack.c.l.b16 %v511
  %v532 = vunpack.c.h.b16 %v511
  %v533 = vpack.c.b16 %v521, %v519
  %v534 = vpack.c.b16 %v522, %v520
  %v535 = vpack.c.b16 %v525, %v523
  %v536 = vpack.c.b16 %v526, %v524
  %v537 = vpack.c.b16 %v529, %v527
  %v538 = vpack.c.b16 %v530, %v528
  %v539 = vpack.c.b16 %v531, %v531
  %v540 = vpack.c.b16 %v532, %v532
  %549 = vmatprep.subr.bf16.mxu0 0
  %550 = vmatpush1.bf16.msra.mxu0 %v162
  %551 = vmatprep.subr.bf16.mxu0 0
  %552 = vmatpush1.bf16.msra.mxu0 %v163
  %553 = vmatprep.subr.bf16.mxu0 0
  %554 = vmatpush1.bf16.msra.mxu0 %v164
  %555 = vmatprep.subr.bf16.mxu0 0
  %556 = vmatpush1.bf16.msra.mxu0 %v165
  %557 = vmatprep.subr.bf16.mxu0 0
  %558 = vmatpush1.bf16.msra.mxu0 %v166
  %559 = vmatprep.subr.bf16.mxu0 0
  %560 = vmatpush1.bf16.msra.mxu0 %v167
  %561 = vmatprep.subr.bf16.mxu0 0
  %562 = vmatpush1.bf16.msra.mxu0 %v168
  %563 = vmatprep.subr.bf16.mxu0 0
  %564 = vmatpush1.bf16.msra.mxu0 %v169
  %565 = vmatprep.subr.bf16.mxu0 0
  %566 = vmatpush1.bf16.msra.mxu0 %v170
  %567 = vmatprep.subr.bf16.mxu0 0
  %568 = vmatpush1.bf16.msra.mxu0 %v171
  %569 = vmatprep.subr.bf16.mxu0 0
  %570 = vmatpush1.bf16.msra.mxu0 %v172
  %571 = vmatprep.subr.bf16.mxu0 0
  %572 = vmatpush1.bf16.msra.mxu0 %v173
  %573 = vmatprep.subr.bf16.mxu0 0
  %574 = vmatpush1.bf16.msra.mxu0 %v174
  %575 = vmatprep.subr.bf16.mxu0 0
  %576 = vmatpush1.bf16.msra.mxu0 %v175
  %577 = vmatprep.subr.bf16.mxu0 0
  %578 = vmatpush1.bf16.msra.mxu0 %v176
  %579 = vmatprep.subr.bf16.mxu0 0
  %580 = vmatpush1.bf16.msra.mxu0 %v177
  %581 = vmatprep.mubr.bf16.mxu0 %v534
  %582 = vmatmul.mubr.bf16.gmra.mrb[0].mxu0 %v533
  %v583 = vpop.f32.mrb[0].mxu0
  %v584 = vadd.f32 %v59, %v583
  %v585 = vpop.f32.mrb[0].mxu0
  %v586 = vpop.f32.mrb[0].mxu0
  %v587 = vadd.f32 %v59, %v586
  %v588 = vpop.f32.mrb[0].mxu0
  %589 = vmatprep.mubr.bf16.mxu0 %v536
  %590 = vmatmul.mubr.bf16.gmra.mrb[0].mxu0 %v535
  %v591 = vpop.f32.mrb[0].mxu0
  %v592 = vadd.f32 %v59, %v591
  %v593 = vpop.f32.mrb[0].mxu0
  %v594 = vpop.f32.mrb[0].mxu0
  %v595 = vadd.f32 %v59, %v594
  %v596 = vpop.f32.mrb[0].mxu0
  %597 = vmatprep.mubr.bf16.mxu0 %v538
  %598 = vmatmul.mubr.bf16.gmra.mrb[0].mxu0 %v537
  %v599 = vpop.f32.mrb[0].mxu0
  %v600 = vadd.f32 %v59, %v599
  %v601 = vpop.f32.mrb[0].mxu0
  %v602 = vpop.f32.mrb[0].mxu0
  %v603 = vadd.f32 %v59, %v602
  %v604 = vpop.f32.mrb[0].mxu0
  %605 = vmatprep.mubr.bf16.mxu0 %v540
  %606 = vmatmul.mubr.bf16.gmra.mrb[0].mxu0 %v539
  %v607 = vpop.f32.mrb[0].mxu0
  %v608 = vadd.f32 %v59, %v607
  %v609 = vpop.f32.mrb[0].mxu0
  %v610 = vpop.f32.mrb[0].mxu0
  %v611 = vpop.f32.mrb[0].mxu0
  %612 = vdwg.mxu0
  %v613 = vmax.f32 %v584, 0.0
  %v614 = vmax.f32 %v587, 0.0
  %v615 = vmax.f32 %v592, 0.0
  %v616 = vmax.f32 %v595, 0.0
  %v617 = vmax.f32 %v600, 0.0
  %v618 = vmax.f32 %v603, 0.0
  %v619 = vmax.f32 %v608, 0.0
  %v620 = vmax.f32 %v497, %v613
  %v621 = vmax.f32 %v498, %v614
  %v622 = vmax.f32 %v499, %v615
  %v623 = vmax.f32 %v500, %v616
  %v624 = vmax.f32 %v501, %v617
  %v625 = vmax.f32 %v502, %v618
  %v626 = vmax.f32 %v503, %v619
  %v627 = vmax.f32 %v381, %v620
  %v628 = vmax.f32 %v382, %v621
  %v629 = vmax.f32 %v383, %v622
  %v630 = vmax.f32 %v384, %v623
  %v631 = vmax.f32 %v385, %v624
  %v632 = vmax.f32 %v386, %v625
  %v633 = vmax.f32 %v387, %v626
  %634 = vst [vmem:[%s3] sm:$0xff] %v627
  %635 = vst [vmem:[%s3 + $0x8] sm:$0xff] %v628
  %636 = vst [vmem:[%s3 + $0x10] sm:$0xff] %v629
  %637 = vst [vmem:[%s3 + $0x18] sm:$0xff] %v630
  %638 = vst [vmem:[%s3 + $0x20] sm:$0xff] %v631
  %639 = vst [vmem:[%s3 + $0x28] sm:$0xff] %v632
  %640 = vst [vmem:[%s3 + $0x30] sm:$0xff] %v633
  // Predicated region
  $region14: #{net_forward.4} parent=0 // pred_check
    _
  $region15: #{net_forward.4} parent=0 // pred_check_branch
    %642 = sbr.rel (0) target = $region17
  $region16: #{net_forward.4} parent=0 // pred_region
    _
  $region17: #{net_forward.4} parent=0 // pred_fallthru
    _
  // Predicated region
  $region18: #{net_forward.4} parent=0 // pred_check
    _
  $region19: #{net_forward.4} parent=0 // pred_check_branch
    %644 = sbr.rel (0) target = $region21
  $region20: #{net_forward.4} parent=0 // pred_region
    _
  $region21: #{net_forward.4} parent=0 // pred_fallthru
    _

// kernel: net_forward.5
$region0: #{net_forward.5}
  #allocation0 [shape = 'u32[]', space=smem, size = 0x4, offset = 0x4, fixed_abs, tag = 'smem constant byte address 0x4 - core index']
  #allocation1 [shape = 'u32[144,128]{1,0:T(1,128)}', space=vmem, size = 0x12000, scoped, tag = 'internal scratch']
  %s0 = inlined_call_operand.vmem [shape: bf16[8,512], index: 0, kind: input, shape index: {}]
  %s1 = inlined_call_operand.vmem [shape: bf16[512,128], index: 1, kind: input, shape index: {}]
  %s2 = inlined_call_operand.vmem [shape: f32[1,128], index: 2, kind: input, shape index: {}]
  %s3 = inlined_call_operand.vmem [shape: bf16[128,128], index: 3, kind: input, shape index: {}]
  %s4 = inlined_call_operand.vmem [shape: f32[1,128], index: 4, kind: input, shape index: {}]
  %s5 = inlined_call_operand.vmem [shape: bf16[128,128], index: 5, kind: input, shape index: {}]
  %s6 = inlined_call_operand.vmem [shape: f32[1,128], index: 6, kind: input, shape index: {}]
  %s7 = inlined_call_operand.vmem [shape: f32[8,128], index: 7, kind: output, shape index: {}]
  %s8 = sld [smem:[#allocation0]]
  $region38: #{net_forward.5} parent=0
    _
  %s10 = ssub.s32 1, %s8
  %s11 = scalar_select 0, %s10, %s8
  // Predicated region
  $region2: #{net_forward.5} parent=0 // pred_check
    _
  $region3: #{net_forward.5} parent=0 // pred_check_branch
    %13 = sbr.rel (0) target = $region5
  $region4: #{net_forward.5} parent=0 // pred_region
    _
  $region5: #{net_forward.5} parent=0 // pred_fallthru
    _
  // Predicated region
  $region6: #{net_forward.5} parent=0 // pred_check
    _
  $region7: #{net_forward.5} parent=0 // pred_check_branch
    %15 = sbr.rel (0) target = $region9
  $region8: #{net_forward.5} parent=0 // pred_region
    _
  $region9: #{net_forward.5} parent=0 // pred_fallthru
    _
  // Predicated region
  $region10: #{net_forward.5} parent=0 // pred_check
    _
  $region11: #{net_forward.5} parent=0 // pred_check_branch
    %17 = sbr.rel (0) target = $region13
  $region12: #{net_forward.5} parent=0 // pred_region
    _
  $region13: #{net_forward.5} parent=0 // pred_fallthru
    _
  // Predicated region
  $region14: #{net_forward.5} parent=0 // pred_check
    _
  $region15: #{net_forward.5} parent=0 // pred_check_branch
    %19 = sbr.rel (0) target = $region17
  $region16: #{net_forward.5} parent=0 // pred_region
    _
  $region17: #{net_forward.5} parent=0 // pred_fallthru
    _
  // Predicated region
  $region18: #{net_forward.5} parent=0 // pred_check
    _
  $region19: #{net_forward.5} parent=0 // pred_check_branch
    %21 = sbr.rel (0) target = $region21
  $region20: #{net_forward.5} parent=0 // pred_region
    _
  $region21: #{net_forward.5} parent=0 // pred_fallthru
    _
  // Predicated region
  $region22: #{net_forward.5} parent=0 // pred_check
    _
  $region23: #{net_forward.5} parent=0 // pred_check_branch
    %23 = sbr.rel (0) target = $region25
  $region24: #{net_forward.5} parent=0 // pred_region
    _
  $region25: #{net_forward.5} parent=0 // pred_fallthru
    _
  // Predicated region
  $region26: #{net_forward.5} parent=0 // pred_check
    _
  $region27: #{net_forward.5} parent=0 // pred_check_branch
    %25 = sbr.rel (0) target = $region29
  $region28: #{net_forward.5} parent=0 // pred_region
    _
  $region29: #{net_forward.5} parent=0 // pred_fallthru
    _
  %v27 = vld [vmem:[%s0] sm:$0xff]
  %v28 = vld [vmem:[%s0 + $0x8] sm:$0xff]
  %v29 = vld [vmem:[%s1] sm:$0xf]
  %v30 = vld [vmem:[%s1 + $0x4] sm:$0xf]
  %v31 = vld [vmem:[%s1 + $0x8] sm:$0xf]
  %v32 = vld [vmem:[%s1 + $0xc] sm:$0xf]
  %v33 = vld [vmem:[%s1 + $0x10] sm:$0xf]
  %v34 = vld [vmem:[%s1 + $0x14] sm:$0xf]
  %v35 = vld [vmem:[%s1 + $0x18] sm:$0xf]
  %v36 = vld [vmem:[%s1 + $0x1c] sm:$0xf]
  %v37 = vld [vmem:[%s1 + $0x20] sm:$0xf]
  %v38 = vld [vmem:[%s1 + $0x24] sm:$0xf]
  %v39 = vld [vmem:[%s1 + $0x28] sm:$0xf]
  %v40 = vld [vmem:[%s1 + $0x2c] sm:$0xf]
  %v41 = vld [vmem:[%s1 + $0x30] sm:$0xf]
  %v42 = vld [vmem:[%s1 + $0x34] sm:$0xf]
  %v43 = vld [vmem:[%s1 + $0x38] sm:$0xf]
  %v44 = vld [vmem:[%s1 + $0x3c] sm:$0xf]
  %v45 = vld [vmem:[%s1 + $0x40] sm:$0xf]
  %v46 = vld [vmem:[%s1 + $0x44] sm:$0xf]
  %v47 = vld [vmem:[%s1 + $0x48] sm:$0xf]
  %v48 = vld [vmem:[%s1 + $0x4c] sm:$0xf]
  %v49 = vld [vmem:[%s1 + $0x50] sm:$0xf]
  %v50 = vld [vmem:[%s1 + $0x54] sm:$0xf]
  %v51 = vld [vmem:[%s1 + $0x58] sm:$0xf]
  %v52 = vld [vmem:[%s1 + $0x5c] sm:$0xf]
  %v53 = vld [vmem:[%s1 + $0x60] sm:$0xf]
  %v54 = vld [vmem:[%s1 + $0x64] sm:$0xf]
  %v55 = vld [vmem:[%s1 + $0x68] sm:$0xf]
  %v56 = vld [vmem:[%s1 + $0x6c] sm:$0xf]
  %v57 = vld [vmem:[%s1 + $0x70] sm:$0xf]
  %v58 = vld [vmem:[%s1 + $0x74] sm:$0xf]
  %v59 = vld [vmem:[%s1 + $0x78] sm:$0xf]
  %v60 = vld [vmem:[%s1 + $0x7c] sm:$0xf]
  %v61 = vld [vmem:[%s1 + $0x80] sm:$0xf]
  %v62 = vld [vmem:[%s1 + $0x84] sm:$0xf]
  %v63 = vld [vmem:[%s1 + $0x88] sm:$0xf]
  %v64 = vld [vmem:[%s1 + $0x8c] sm:$0xf]
  %v65 = vld [vmem:[%s1 + $0x90] sm:$0xf]
  %v66 = vld [vmem:[%s1 + $0x94] sm:$0xf]
  %v67 = vld [vmem:[%s1 + $0x98] sm:$0xf]
  %v68 = vld [vmem:[%s1 + $0x9c] sm:$0xf]
  %v69 = vld [vmem:[%s1 + $0xa0] sm:$0xf]
  %v70 = vld [vmem:[%s1 + $0xa4] sm:$0xf]
  %v71 = vld [vmem:[%s1 + $0xa8] sm:$0xf]
  %v72 = vld [vmem:[%s1 + $0xac] sm:$0xf]
  %v73 = vld [vmem:[%s1 + $0xb0] sm:$0xf]
  %v74 = vld [vmem:[%s1 + $0xb4] sm:$0xf]
  %v75 = vld [vmem:[%s1 + $0xb8] sm:$0xf]
  %v76 = vld [vmem:[%s1 + $0xbc] sm:$0xf]
  %v77 = vld [vmem:[%s1 + $0xc0] sm:$0xf]
  %v78 = vld [vmem:[%s1 + $0xc4] sm:$0xf]
  %v79 = vld [vmem:[%s1 + $0xc8] sm:$0xf]
  %v80 = vld [vmem:[%s1 + $0xcc] sm:$0xf]
  %v81 = vld [vmem:[%s1 + $0xd0] sm:$0xf]
  %v82 = vld [vmem:[%s1 + $0xd4] sm:$0xf]
  %v83 = vld [vmem:[%s1 + $0xd8] sm:$0xf]
  %v84 = vld [vmem:[%s1 + $0xdc] sm:$0xf]
  %v85 = vld [vmem:[%s1 + $0xe0] sm:$0xf]
  %v86 = vld [vmem:[%s1 + $0xe4] sm:$0xf]
  %v87 = vld [vmem:[%s1 + $0xe8] sm:$0xf]
  %v88 = vld [vmem:[%s1 + $0xec] sm:$0xf]
  %v89 = vld [vmem:[%s1 + $0xf0] sm:$0xf]
  %v90 = vld [vmem:[%s1 + $0xf4] sm:$0xf]
  %v91 = vld [vmem:[%s1 + $0xf8] sm:$0xf]
  %v92 = vld [vmem:[%s1 + $0xfc] sm:$0xf]
  %v93 = vld [vmem:[%s2] sm:$0x1]
  %v95 = vlaneseq
  %v96 = vshrl.u32 %v95, 7
  %v97 = vsub.s32 0, %v96
  %v98 = vrot.slane %v93, %v97
  %v102 = vunpack.c.l.b16 %v27
  %v103 = vunpack.c.h.b16 %v27
  %v104 = vunpack.c.l.b16 %v28
  %v105 = vunpack.c.h.b16 %v28
  %v106 = vpack.c.b16 %v102, %v102
  %v107 = vpack.c.b16 %v103, %v103
  %v108 = vpack.c.b16 %v104, %v104
  %v109 = vpack.c.b16 %v105, %v105
  %v178 = vunpack.c.l.b16 %v29
  %v179 = vunpack.c.l.b16 %v30
  %v180 = vunpack.c.l.b16 %v31
  %v181 = vunpack.c.l.b16 %v32
  %v182 = vunpack.c.l.b16 %v33
  %v183 = vunpack.c.l.b16 %v34
  %v184 = vunpack.c.l.b16 %v35
  %v185 = vunpack.c.l.b16 %v36
  %v186 = vunpack.c.l.b16 %v37
  %v187 = vunpack.c.l.b16 %v38
  %v188 = vunpack.c.l.b16 %v39
  %v189 = vunpack.c.l.b16 %v40
  %v190 = vunpack.c.l.b16 %v41
  %v191 = vunpack.c.l.b16 %v42
  %v192 = vunpack.c.l.b16 %v43
  %v193 = vunpack.c.l.b16 %v44
  %v194 = vunpack.c.l.b16 %v45
  %v195 = vunpack.c.l.b16 %v46
  %v196 = vunpack.c.l.b16 %v47
  %v197 = vunpack.c.l.b16 %v48
  %v198 = vunpack.c.l.b16 %v49
  %v199 = vunpack.c.l.b16 %v50
  %v200 = vunpack.c.l.b16 %v51
  %v201 = vunpack.c.l.b16 %v52
  %v202 = vunpack.c.l.b16 %v53
  %v203 = vunpack.c.l.b16 %v54
  %v204 = vunpack.c.l.b16 %v55
  %v205 = vunpack.c.l.b16 %v56
  %v206 = vunpack.c.l.b16 %v57
  %v207 = vunpack.c.l.b16 %v58
  %v208 = vunpack.c.l.b16 %v59
  %v209 = vunpack.c.l.b16 %v60
  %v210 = vunpack.c.l.b16 %v61
  %v211 = vunpack.c.l.b16 %v62
  %v212 = vunpack.c.l.b16 %v63
  %v213 = vunpack.c.l.b16 %v64
  %v214 = vunpack.c.l.b16 %v65
  %v215 = vunpack.c.l.b16 %v66
  %v216 = vunpack.c.l.b16 %v67
  %v217 = vunpack.c.l.b16 %v68
  %v218 = vunpack.c.l.b16 %v69
  %v219 = vunpack.c.l.b16 %v70
  %v220 = vunpack.c.l.b16 %v71
  %v221 = vunpack.c.l.b16 %v72
  %v222 = vunpack.c.l.b16 %v73
  %v223 = vunpack.c.l.b16 %v74
  %v224 = vunpack.c.l.b16 %v75
  %v225 = vunpack.c.l.b16 %v76
  %v226 = vunpack.c.l.b16 %v77
  %v227 = vunpack.c.l.b16 %v78
  %v228 = vunpack.c.l.b16 %v79
  %v229 = vunpack.c.l.b16 %v80
  %v230 = vunpack.c.l.b16 %v81
  %v231 = vunpack.c.l.b16 %v82
  %v232 = vunpack.c.l.b16 %v83
  %v233 = vunpack.c.l.b16 %v84
  %v234 = vunpack.c.l.b16 %v85
  %v235 = vunpack.c.l.b16 %v86
  %v236 = vunpack.c.l.b16 %v87
  %v237 = vunpack.c.l.b16 %v88
  %v238 = vunpack.c.l.b16 %v89
  %v239 = vunpack.c.l.b16 %v90
  %v240 = vunpack.c.l.b16 %v91
  %v241 = vunpack.c.l.b16 %v92
  %v242 = vpack.c.b16 %v179, %v178
  %v243 = vpack.c.b16 %v181, %v180
  %v244 = vpack.c.b16 %v183, %v182
  %v245 = vpack.c.b16 %v185, %v184
  %v246 = vpack.c.b16 %v187, %v186
  %v247 = vpack.c.b16 %v189, %v188
  %v248 = vpack.c.b16 %v191, %v190
  %v249 = vpack.c.b16 %v193, %v192
  %v250 = vpack.c.b16 %v195, %v194
  %v251 = vpack.c.b16 %v197, %v196
  %v252 = vpack.c.b16 %v199, %v198
  %v253 = vpack.c.b16 %v201, %v200
  %v254 = vpack.c.b16 %v203, %v202
  %v255 = vpack.c.b16 %v205, %v204
  %v256 = vpack.c.b16 %v207, %v206
  %v257 = vpack.c.b16 %v209, %v208
  %v258 = vpack.c.b16 %v211, %v210
  %v259 = vpack.c.b16 %v213, %v212
  %v260 = vpack.c.b16 %v215, %v214
  %v261 = vpack.c.b16 %v217, %v216
  %v262 = vpack.c.b16 %v219, %v218
  %v263 = vpack.c.b16 %v221, %v220
  %v264 = vpack.c.b16 %v223, %v222
  %v265 = vpack.c.b16 %v225, %v224
  %v266 = vpack.c.b16 %v227, %v226
  %v267 = vpack.c.b16 %v229, %v228
  %v268 = vpack.c.b16 %v231, %v230
  %v269 = vpack.c.b16 %v233, %v232
  %v270 = vpack.c.b16 %v235, %v234
  %v271 = vpack.c.b16 %v237, %v236
  %v272 = vpack.c.b16 %v239, %v238
  %v273 = vpack.c.b16 %v241, %v240
  %306 = vmatprep.subr.bf16.mxu0 0
  %307 = vmatpush1.bf16.msra.mxu0 %v242
  %308 = vmatprep.subr.bf16.mxu0 0
  %309 = vmatpush1.bf16.msra.mxu0 %v243
  %310 = vmatprep.subr.bf16.mxu0 0
  %311 = vmatpush1.bf16.msra.mxu0 %v244
  %312 = vmatprep.subr.bf16.mxu0 0
  %313 = vmatpush1.bf16.msra.mxu0 %v245
  %314 = vmatprep.subr.bf16.mxu0 0
  %315 = vmatpush1.bf16.msra.mxu0 %v246
  %316 = vmatprep.subr.bf16.mxu0 0
  %317 = vmatpush1.bf16.msra.mxu0 %v247
  %318 = vmatprep.subr.bf16.mxu0 0
  %319 = vmatpush1.bf16.msra.mxu0 %v248
  %320 = vmatprep.subr.bf16.mxu0 0
  %321 = vmatpush1.bf16.msra.mxu0 %v249
  %322 = vmatprep.subr.bf16.mxu0 0
  %323 = vmatpush1.bf16.msra.mxu0 %v250
  %324 = vmatprep.subr.bf16.mxu0 0
  %325 = vmatpush1.bf16.msra.mxu0 %v251
  %326 = vmatprep.subr.bf16.mxu0 0
  %327 = vmatpush1.bf16.msra.mxu0 %v252
  %328 = vmatprep.subr.bf16.mxu0 0
  %329 = vmatpush1.bf16.msra.mxu0 %v253
  %330 = vmatprep.subr.bf16.mxu0 0
  %331 = vmatpush1.bf16.msra.mxu0 %v254
  %332 = vmatprep.subr.bf16.mxu0 0
  %333 = vmatpush1.bf16.msra.mxu0 %v255
  %334 = vmatprep.subr.bf16.mxu0 0
  %335 = vmatpush1.bf16.msra.mxu0 %v256
  %336 = vmatprep.subr.bf16.mxu0 0
  %337 = vmatpush1.bf16.msra.mxu0 %v257
  %338 = vmatprep.mubr.bf16.mxu0 %v107
  %339 = vmatmul.mubr.bf16.gmra.mrb[0].mxu0 %v106
  %v340 = vpop.f32.mrb[0].mxu0
  %v341 = vadd.f32 %v98, %v340
  %v342 = vpop.f32.mrb[0].mxu0
  %v343 = vpop.f32.mrb[0].mxu0
  %v344 = vpop.f32.mrb[0].mxu0
  %345 = vdwg.mxu0
  %346 = vmatprep.subr.bf16.mxu0 0
  %347 = vmatpush1.bf16.msra.mxu0 %v258
  %348 = vmatprep.subr.bf16.mxu0 0
  %349 = vmatpush1.bf16.msra.mxu0 %v259
  %350 = vmatprep.subr.bf16.mxu0 0
  %351 = vmatpush1.bf16.msra.mxu0 %v260
  %352 = vmatprep.subr.bf16.mxu0 0
  %353 = vmatpush1.bf16.msra.mxu0 %v261
  %354 = vmatprep.subr.bf16.mxu0 0
  %355 = vmatpush1.bf16.msra.mxu0 %v262
  %356 = vmatprep.subr.bf16.mxu0 0
  %357 = vmatpush1.bf16.msra.mxu0 %v263
  %358 = vmatprep.subr.bf16.mxu0 0
  %359 = vmatpush1.bf16.msra.mxu0 %v264
  %360 = vmatprep.subr.bf16.mxu0 0
  %361 = vmatpush1.bf16.msra.mxu0 %v265
  %362 = vmatprep.subr.bf16.mxu0 0
  %363 = vmatpush1.bf16.msra.mxu0 %v266
  %364 = vmatprep.subr.bf16.mxu0 0
  %365 = vmatpush1.bf16.msra.mxu0 %v267
  %366 = vmatprep.subr.bf16.mxu0 0
  %367 = vmatpush1.bf16.msra.mxu0 %v268
  %368 = vmatprep.subr.bf16.mxu0 0
  %369 = vmatpush1.bf16.msra.mxu0 %v269
  %370 = vmatprep.subr.bf16.mxu0 0
  %371 = vmatpush1.bf16.msra.mxu0 %v270
  %372 = vmatprep.subr.bf16.mxu0 0
  %373 = vmatpush1.bf16.msra.mxu0 %v271
  %374 = vmatprep.subr.bf16.mxu0 0
  %375 = vmatpush1.bf16.msra.mxu0 %v272
  %376 = vmatprep.subr.bf16.mxu0 0
  %377 = vmatpush1.bf16.msra.mxu0 %v273
  %378 = vmatprep.mubr.bf16.mxu0 %v109
  %379 = vmatmul.mubr.bf16.gmra.mrb[0].mxu0 %v108
  %v380 = vpop.f32.mrb[0].mxu0
  %v381 = vadd.f32 %v341, %v380
  %v382 = vpop.f32.mrb[0].mxu0
  %v383 = vpop.f32.mrb[0].mxu0
  %v384 = vpop.f32.mrb[0].mxu0
  %385 = vdwg.mxu0
  %v386 = vmax.f32 %v381, 0.0
  %v387 = vpack.c.bf16 %v386, %v386
  %v388 = vld [vmem:[%s3] sm:$0xf]
  %v389 = vld [vmem:[%s3 + $0x4] sm:$0xf]
  %v390 = vld [vmem:[%s3 + $0x8] sm:$0xf]
  %v391 = vld [vmem:[%s3 + $0xc] sm:$0xf]
  %v392 = vld [vmem:[%s3 + $0x10] sm:$0xf]
  %v393 = vld [vmem:[%s3 + $0x14] sm:$0xf]
  %v394 = vld [vmem:[%s3 + $0x18] sm:$0xf]
  %v395 = vld [vmem:[%s3 + $0x1c] sm:$0xf]
  %v396 = vld [vmem:[%s3 + $0x20] sm:$0xf]
  %v397 = vld [vmem:[%s3 + $0x24] sm:$0xf]
  %v398 = vld [vmem:[%s3 + $0x28] sm:$0xf]
  %v399 = vld [vmem:[%s3 + $0x2c] sm:$0xf]
  %v400 = vld [vmem:[%s3 + $0x30] sm:$0xf]
  %v401 = vld [vmem:[%s3 + $0x34] sm:$0xf]
  %v402 = vld [vmem:[%s3 + $0x38] sm:$0xf]
  %v403 = vld [vmem:[%s3 + $0x3c] sm:$0xf]
  %v404 = vld [vmem:[%s4] sm:$0x1]
  %v406 = vlaneseq
  %v407 = vshrl.u32 %v406, 7
  %v408 = vsub.s32 0, %v407
  %v409 = vrot.slane %v404, %v408
  %v427 = vunpack.c.l.b16 %v388
  %v428 = vunpack.c.l.b16 %v389
  %v429 = vunpack.c.l.b16 %v390
  %v430 = vunpack.c.l.b16 %v391
  %v431 = vunpack.c.l.b16 %v392
  %v432 = vunpack.c.l.b16 %v393
  %v433 = vunpack.c.l.b16 %v394
  %v434 = vunpack.c.l.b16 %v395
  %v435 = vunpack.c.l.b16 %v396
  %v436 = vunpack.c.l.b16 %v397
  %v437 = vunpack.c.l.b16 %v398
  %v438 = vunpack.c.l.b16 %v399
  %v439 = vunpack.c.l.b16 %v400
  %v440 = vunpack.c.l.b16 %v401
  %v441 = vunpack.c.l.b16 %v402
  %v442 = vunpack.c.l.b16 %v403
  %v443 = vpack.c.b16 %v428, %v427
  %v444 = vpack.c.b16 %v430, %v429
  %v445 = vpack.c.b16 %v432, %v431
  %v446 = vpack.c.b16 %v434, %v433
  %v447 = vpack.c.b16 %v436, %v435
  %v448 = vpack.c.b16 %v438, %v437
  %v449 = vpack.c.b16 %v440, %v439
  %v450 = vpack.c.b16 %v442, %v441
  %459 = vmatprep.subr.bf16.mxu0 0
  %460 = vmatpush1.bf16.msra.mxu0 %v443
  %461 = vmatprep.subr.bf16.mxu0 0
  %462 = vmatpush1.bf16.msra.mxu0 %v444
  %463 = vmatprep.subr.bf16.mxu0 0
  %464 = vmatpush1.bf16.msra.mxu0 %v445
  %465 = vmatprep.subr.bf16.mxu0 0
  %466 = vmatpush1.bf16.msra.mxu0 %v446
  %467 = vmatprep.subr.bf16.mxu0 0
  %468 = vmatpush1.bf16.msra.mxu0 %v447
  %469 = vmatprep.subr.bf16.mxu0 0
  %470 = vmatpush1.bf16.msra.mxu0 %v448
  %471 = vmatprep.subr.bf16.mxu0 0
  %472 = vmatpush1.bf16.msra.mxu0 %v449
  %473 = vmatprep.subr.bf16.mxu0 0
  %474 = vmatpush1.bf16.msra.mxu0 %v450
  %475 = vmatprep.subr.bf16.mxu0 0
  %476 = vmatpush1.bf16.msra.mxu0 0
  %477 = vmatprep.subr.bf16.mxu0 0
  %478 = vmatpush1.bf16.msra.mxu0 0
  %479 = vmatprep.subr.bf16.mxu0 0
  %480 = vmatpush1.bf16.msra.mxu0 0
  %481 = vmatprep.subr.bf16.mxu0 0
  %482 = vmatpush1.bf16.msra.mxu0 0
  %483 = vmatprep.subr.bf16.mxu0 0
  %484 = vmatpush1.bf16.msra.mxu0 0
  %485 = vmatprep.subr.bf16.mxu0 0
  %486 = vmatpush1.bf16.msra.mxu0 0
  %487 = vmatprep.subr.bf16.mxu0 0
  %488 = vmatpush1.bf16.msra.mxu0 0
  %489 = vmatprep.subr.bf16.mxu0 0
  %490 = vmatpush1.bf16.msra.mxu0 0
  %491 = vmatprep.mubr.bf16.mxu0 0
  %492 = vmatmul.mubr.bf16.gmra.mrb[0].mxu0 %v387
  %v493 = vpop.f32.mrb[0].mxu0
  %v494 = vadd.f32 %v409, %v493
  %v495 = vpop.f32.mrb[0].mxu0
  %v496 = vpop.f32.mrb[0].mxu0
  %v497 = vpop.f32.mrb[0].mxu0
  %498 = vdwg.mxu0
  %v499 = vmax.f32 %v494, 0.0
  %v500 = vpack.c.bf16 %v499, %v499
  %v501 = vld [vmem:[%s5] sm:$0xf]
  %v502 = vld [vmem:[%s5 + $0x4] sm:$0xf]
  %v503 = vld [vmem:[%s5 + $0x8] sm:$0xf]
  %v504 = vld [vmem:[%s5 + $0xc] sm:$0xf]
  %v505 = vld [vmem:[%s5 + $0x10] sm:$0xf]
  %v506 = vld [vmem:[%s5 + $0x14] sm:$0xf]
  %v507 = vld [vmem:[%s5 + $0x18] sm:$0xf]
  %v508 = vld [vmem:[%s5 + $0x1c] sm:$0xf]
  %v509 = vld [vmem:[%s5 + $0x20] sm:$0xf]
  %v510 = vld [vmem:[%s5 + $0x24] sm:$0xf]
  %v511 = vld [vmem:[%s5 + $0x28] sm:$0xf]
  %v512 = vld [vmem:[%s5 + $0x2c] sm:$0xf]
  %v513 = vld [vmem:[%s5 + $0x30] sm:$0xf]
  %v514 = vld [vmem:[%s5 + $0x34] sm:$0xf]
  %v515 = vld [vmem:[%s5 + $0x38] sm:$0xf]
  %v516 = vld [vmem:[%s5 + $0x3c] sm:$0xf]
  %v517 = vld [vmem:[%s6] sm:$0x1]
  %v519 = vlaneseq
  %v520 = vshrl.u32 %v519, 7
  %v521 = vsub.s32 0, %v520
  %v522 = vrot.slane %v517, %v521
  %v540 = vunpack.c.l.b16 %v501
  %v541 = vunpack.c.l.b16 %v502
  %v542 = vunpack.c.l.b16 %v503
  %v543 = vunpack.c.l.b16 %v504
  %v544 = vunpack.c.l.b16 %v505
  %v545 = vunpack.c.l.b16 %v506
  %v546 = vunpack.c.l.b16 %v507
  %v547 = vunpack.c.l.b16 %v508
  %v548 = vunpack.c.l.b16 %v509
  %v549 = vunpack.c.l.b16 %v510
  %v550 = vunpack.c.l.b16 %v511
  %v551 = vunpack.c.l.b16 %v512
  %v552 = vunpack.c.l.b16 %v513
  %v553 = vunpack.c.l.b16 %v514
  %v554 = vunpack.c.l.b16 %v515
  %v555 = vunpack.c.l.b16 %v516
  %v556 = vpack.c.b16 %v541, %v540
  %v557 = vpack.c.b16 %v543, %v542
  %v558 = vpack.c.b16 %v545, %v544
  %v559 = vpack.c.b16 %v547, %v546
  %v560 = vpack.c.b16 %v549, %v548
  %v561 = vpack.c.b16 %v551, %v550
  %v562 = vpack.c.b16 %v553, %v552
  %v563 = vpack.c.b16 %v555, %v554
  %572 = vmatprep.subr.bf16.mxu0 0
  %573 = vmatpush1.bf16.msra.mxu0 %v556
  %574 = vmatprep.subr.bf16.mxu0 0
  %575 = vmatpush1.bf16.msra.mxu0 %v557
  %576 = vmatprep.subr.bf16.mxu0 0
  %577 = vmatpush1.bf16.msra.mxu0 %v558
  %578 = vmatprep.subr.bf16.mxu0 0
  %579 = vmatpush1.bf16.msra.mxu0 %v559
  %580 = vmatprep.subr.bf16.mxu0 0
  %581 = vmatpush1.bf16.msra.mxu0 %v560
  %582 = vmatprep.subr.bf16.mxu0 0
  %583 = vmatpush1.bf16.msra.mxu0 %v561
  %584 = vmatprep.subr.bf16.mxu0 0
  %585 = vmatpush1.bf16.msra.mxu0 %v562
  %586 = vmatprep.subr.bf16.mxu0 0
  %587 = vmatpush1.bf16.msra.mxu0 %v563
  %588 = vmatprep.subr.bf16.mxu0 0
  %589 = vmatpush1.bf16.msra.mxu0 0
  %590 = vmatprep.subr.bf16.mxu0 0
  %591 = vmatpush1.bf16.msra.mxu0 0
  %592 = vmatprep.subr.bf16.mxu0 0
  %593 = vmatpush1.bf16.msra.mxu0 0
  %594 = vmatprep.subr.bf16.mxu0 0
  %595 = vmatpush1.bf16.msra.mxu0 0
  %596 = vmatprep.subr.bf16.mxu0 0
  %597 = vmatpush1.bf16.msra.mxu0 0
  %598 = vmatprep.subr.bf16.mxu0 0
  %599 = vmatpush1.bf16.msra.mxu0 0
  %600 = vmatprep.subr.bf16.mxu0 0
  %601 = vmatpush1.bf16.msra.mxu0 0
  %602 = vmatprep.subr.bf16.mxu0 0
  %603 = vmatpush1.bf16.msra.mxu0 0
  %604 = vmatprep.mubr.bf16.mxu0 0
  %605 = vmatmul.mubr.bf16.gmra.mrb[0].mxu0 %v500
  %v606 = vpop.f32.mrb[0].mxu0
  %v607 = vadd.f32 %v522, %v606
  %v608 = vpop.f32.mrb[0].mxu0
  %v609 = vpop.f32.mrb[0].mxu0
  %v610 = vpop.f32.mrb[0].mxu0
  %611 = vdwg.mxu0
  %612 = vst [vmem:[%s7] sm:$0xff] %v607
  // Predicated region
  $region30: #{net_forward.5} parent=0 // pred_check
    _
  $region31: #{net_forward.5} parent=0 // pred_check_branch
    %614 = sbr.rel (0) target = $region33
  $region32: #{net_forward.5} parent=0 // pred_region
    _
  $region33: #{net_forward.5} parent=0 // pred_fallthru
    _
  // Predicated region
  $region34: #{net_forward.5} parent=0 // pred_check
    _
  $region35: #{net_forward.5} parent=0 // pred_check_branch
    %616 = sbr.rel (0) target = $region37
  $region36: #{net_forward.5} parent=0 // pred_region
    _
  $region37: #{net_forward.5} parent=0 // pred_fallthru
    _

</llo_original>
